<compile_context>
chip_gen: v7x
topology: tpu7x:2x2x1
jax: 0.10.0
libtpu: 0.0.40
codegen_flags: <defaults>
</compile_context>

<pallas_src>
import jax
import jax.numpy as jnp
from jax.experimental import pallas as pl
from jax.experimental.pallas import tpu as pltpu

INPUT_DIM = 1404
INPUT_PAD = 1408          # next multiple of 128
HIDDEN = (512, 256, 128)
NUM_CLASSES = 6
OUT_PAD = 128             # lane-dense logits slab; real logits are [:, :6]
BN_EPS = 1e-5


def _round_up(x, m):
    return (x + m - 1) // m * m


def _mlp_kernel(x_ref,
                w1_ref, s1_ref, t1_ref,
                w2_ref, s2_ref, t2_ref,
                w3_ref, s3_ref, t3_ref,
                w4_ref, b4_ref,
                o_ref):
    # Layer 1: Linear (bf16 MXU, f32 acc) + folded BatchNorm + ReLU.
    x = x_ref[...]
    h = jnp.dot(x.astype(jnp.bfloat16), w1_ref[...],
                preferred_element_type=jnp.float32)
    h = jnp.maximum(h * s1_ref[...] + t1_ref[...], 0.0)
    # Layer 2
    h = jnp.dot(h.astype(jnp.bfloat16), w2_ref[...],
                preferred_element_type=jnp.float32)
    h = jnp.maximum(h * s2_ref[...] + t2_ref[...], 0.0)
    # Layer 3
    h = jnp.dot(h.astype(jnp.bfloat16), w3_ref[...],
                preferred_element_type=jnp.float32)
    h = jnp.maximum(h * s3_ref[...] + t3_ref[...], 0.0)
    # Output layer: plain Linear, written as a lane-dense (TB, 128) slab.
    o_ref[...] = (jnp.dot(h.astype(jnp.bfloat16), w4_ref[...],
                          preferred_element_type=jnp.float32)
                  + b4_ref[...])


@jax.jit
def simple_classifier_forward(x, params):
    """x: (B, INPUT_DIM) float32 -> logits (B, NUM_CLASSES) float32."""
    B = x.shape[0]
    (w1, s1, t1, w2, s2, t2, w3, s3, t3, w4, b4) = params

    # Batch tile: multiples of 256 fill the v6e/v7x MXU at large B; for small B
    # just round up to the 8-row sublane granule.
    TB = 256 if B >= 256 else _round_up(B, 8)
    B_pad = _round_up(B, TB)

    # Zero-pad batch and feature dims to (8,128)-aligned shapes (zeros are harmless:
    # padded rows are sliced off, padded feature columns hit zero weight rows).
    x_p = jnp.zeros((B_pad, INPUT_PAD), jnp.float32)
    x_p = x_p.at[:B, :INPUT_DIM].set(x)

    def pinned(shape):
        # Weight / scale / shift: same block every grid step -> stays VMEM-resident.
        return pl.BlockSpec(shape, lambda i: (0,) * len(shape))

    weights = (w1, s1, t1, w2, s2, t2, w3, s3, t3, w4, b4)
    in_specs = [pl.BlockSpec((TB, INPUT_PAD), lambda i: (i, 0))]
    in_specs += [pinned(w.shape) for w in weights]

    out_pad = pl.pallas_call(
        _mlp_kernel,
        out_shape=jax.ShapeDtypeStruct((B_pad, OUT_PAD), jnp.float32),
        grid=(B_pad // TB,),
        in_specs=in_specs,
        out_specs=pl.BlockSpec((TB, OUT_PAD), lambda i: (i, 0)),
        compiler_params=pltpu.CompilerParams(
            dimension_semantics=("parallel",),
            vmem_limit_bytes=16 << 20,
        ),
    )(x_p, *weights)

    return out_pad[:B, :NUM_CLASSES]


def init_params(key):
    """Deterministic synthetic parameters mirroring the PyTorch module's shapes.

    Weights are stored transposed vs. PyTorch ((in, out)), pre-padded to aligned
    shapes, and cast to bfloat16; BN is folded into f32 per-feature (s, t).
    """
    dims = (INPUT_DIM,) + HIDDEN + (NUM_CLASSES,)
    params = []
    for li in range(4):
        fan_in, fan_out = dims[li], dims[li + 1]
        key, kw, kb, kg, kbe, km, kv = jax.random.split(key, 7)
        bound = 1.0 / jnp.sqrt(jnp.float32(fan_in))
        w = jax.random.uniform(kw, (fan_in, fan_out), jnp.float32, -bound, bound)
        b = jax.random.uniform(kb, (fan_out,), jnp.float32, -bound, bound)
        if li < 3:
            # BatchNorm1d params + running stats (non-trivial, deterministic).
            gamma = 1.0 + 0.1 * jax.random.normal(kg, (fan_out,), jnp.float32)
            beta = 0.1 * jax.random.normal(kbe, (fan_out,), jnp.float32)
            mean = 0.05 * jax.random.normal(km, (fan_out,), jnp.float32)
            var = 1.0 + 0.1 * jax.random.uniform(kv, (fan_out,), jnp.float32)
            s = gamma / jnp.sqrt(var + BN_EPS)
            t = s * (b - mean) + beta
            if li == 0:
                # Pad input-feature rows 1404 -> 1408 with zeros.
                w = jnp.zeros((INPUT_PAD, fan_out), jnp.float32).at[:fan_in, :].set(w)
            params += [w.astype(jnp.bfloat16),
                       s.reshape(1, fan_out),
                       t.reshape(1, fan_out)]
        else:
            # Pad output columns 6 -> 128 with zeros (lane-dense logits slab).
            w_pad = jnp.zeros((fan_in, OUT_PAD), jnp.float32).at[:, :fan_out].set(w)
            b_pad = jnp.zeros((OUT_PAD,), jnp.float32).at[:fan_out].set(b)
            params += [w_pad.astype(jnp.bfloat16), b_pad.reshape(1, OUT_PAD)]
    return tuple(params)


def reference_forward(x, params):
    """Pure-JAX reference of the same eval-mode forward pass (bf16 weights, f32 acc)."""
    (w1, s1, t1, w2, s2, t2, w3, s3, t3, w4, b4) = params
    B = x.shape[0]
    x_p = jnp.zeros((B, INPUT_PAD), jnp.float32).at[:, :INPUT_DIM].set(x)

    def dense(h, w):
        return jnp.dot(h.astype(jnp.bfloat16), w, preferred_element_type=jnp.float32)

    h = jnp.maximum(dense(x_p, w1) * s1 + t1, 0.0)
    h = jnp.maximum(dense(h, w2) * s2 + t2, 0.0)
    h = jnp.maximum(dense(h, w3) * s3 + t3, 0.0)
    return (dense(h, w4) + b4)[:, :NUM_CLASSES]


if __name__ == "__main__":
    key = jax.random.PRNGKey(0)
    kp, kx = jax.random.split(key)
    params = init_params(kp)

    batch = 8
    x = jax.random.normal(kx, (batch, INPUT_DIM), jnp.float32)

    out = simple_classifier_forward(x, params)
    out = jax.block_until_ready(out)

    ref = reference_forward(x, params)
    assert out.shape == (batch, NUM_CLASSES), out.shape
    assert jnp.allclose(out, ref, atol=1e-3, rtol=1e-3), \
        float(jnp.max(jnp.abs(out - ref)))

    print("KERNEL_OK")
</pallas_src>

<mosaic_0001>
module attributes {stable_mosaic.version = 11 : i64} {
  func.func @_mlp_kernel(%arg0: i32, %arg1: memref<8x1408xf32, #tpu.memory_space<vmem>>, %arg2: memref<1408x512xbf16, #tpu.memory_space<vmem>>, %arg3: memref<1x512xf32, #tpu.memory_space<vmem>>, %arg4: memref<1x512xf32, #tpu.memory_space<vmem>>, %arg5: memref<512x256xbf16, #tpu.memory_space<vmem>>, %arg6: memref<1x256xf32, #tpu.memory_space<vmem>>, %arg7: memref<1x256xf32, #tpu.memory_space<vmem>>, %arg8: memref<256x128xbf16, #tpu.memory_space<vmem>>, %arg9: memref<1x128xf32, #tpu.memory_space<vmem>>, %arg10: memref<1x128xf32, #tpu.memory_space<vmem>>, %arg11: memref<128x128xbf16, #tpu.memory_space<vmem>>, %arg12: memref<1x128xf32, #tpu.memory_space<vmem>>, %arg13: memref<8x128xf32, #tpu.memory_space<vmem>>) attributes {dimension_semantics = [#tpu.dimension_semantics<parallel>], iteration_bounds = array<i64: 1>, scalar_prefetch = 0 : i64, scratch_operands = 0 : i64, tpu.core_type = #tpu.core_type<tc>, window_params = [{transform_indices = @transform_0, window_bounds = array<i64: 8, 1408>}, {pipeline_mode = #tpu.pipeline_mode<synchronous>, transform_indices = @transform_1, window_bounds = array<i64: 1408, 512>}, {pipeline_mode = #tpu.pipeline_mode<synchronous>, transform_indices = @transform_2, window_bounds = array<i64: 1, 512>}, {pipeline_mode = #tpu.pipeline_mode<synchronous>, transform_indices = @transform_3, window_bounds = array<i64: 1, 512>}, {pipeline_mode = #tpu.pipeline_mode<synchronous>, transform_indices = @transform_4, window_bounds = array<i64: 512, 256>}, {pipeline_mode = #tpu.pipeline_mode<synchronous>, transform_indices = @transform_5, window_bounds = array<i64: 1, 256>}, {pipeline_mode = #tpu.pipeline_mode<synchronous>, transform_indices = @transform_6, window_bounds = array<i64: 1, 256>}, {pipeline_mode = #tpu.pipeline_mode<synchronous>, transform_indices = @transform_7, window_bounds = array<i64: 256, 128>}, {pipeline_mode = #tpu.pipeline_mode<synchronous>, transform_indices = @transform_8, window_bounds = array<i64: 1, 128>}, {pipeline_mode = #tpu.pipeline_mode<synchronous>, transform_indices = @transform_9, window_bounds = array<i64: 1, 128>}, {pipeline_mode = #tpu.pipeline_mode<synchronous>, transform_indices = @transform_10, window_bounds = array<i64: 128, 128>}, {pipeline_mode = #tpu.pipeline_mode<synchronous>, transform_indices = @transform_11, window_bounds = array<i64: 1, 128>}, {transform_indices = @transform_12, window_bounds = array<i64: 8, 128>}]} {
    %c0 = arith.constant 0 : index
    %c0_0 = arith.constant 0 : index
    %0 = vector.load %arg1[%c0, %c0_0] : memref<8x1408xf32, #tpu.memory_space<vmem>>, vector<8x1408xf32>
    %1 = arith.truncf %0 : vector<8x1408xf32> to vector<8x1408xbf16>
    %c0_1 = arith.constant 0 : index
    %c0_2 = arith.constant 0 : index
    %2 = vector.load %arg2[%c0_1, %c0_2] : memref<1408x512xbf16, #tpu.memory_space<vmem>>, vector<1408x512xbf16>
    %cst = arith.constant dense<0.000000e+00> : vector<8x512xf32>
    %3 = tpu.matmul %1, %2, %cst {dimension_numbers = #tpu.dot_dimension_numbers<[1], [0], [0], [1], [0, 0, 1, 1], [], []>} : vector<8x1408xbf16>, vector<1408x512xbf16>, vector<8x512xf32> -> vector<8x512xf32>
    %c0_3 = arith.constant 0 : index
    %c0_4 = arith.constant 0 : index
    %4 = vector.load %arg3[%c0_3, %c0_4] : memref<1x512xf32, #tpu.memory_space<vmem>>, vector<1x512xf32>
    %5 = vector.broadcast %4 : vector<1x512xf32> to vector<8x512xf32>
    %6 = arith.mulf %3, %5 : vector<8x512xf32>
    %c0_5 = arith.constant 0 : index
    %c0_6 = arith.constant 0 : index
    %7 = vector.load %arg4[%c0_5, %c0_6] : memref<1x512xf32, #tpu.memory_space<vmem>>, vector<1x512xf32>
    %8 = vector.broadcast %7 : vector<1x512xf32> to vector<8x512xf32>
    %9 = arith.addf %6, %8 : vector<8x512xf32>
    %cst_7 = arith.constant 0.000000e+00 : f32
    %10 = vector.broadcast %cst_7 : f32 to vector<8x512xf32>
    %11 = arith.maximumf %9, %10 : vector<8x512xf32>
    %12 = arith.truncf %11 : vector<8x512xf32> to vector<8x512xbf16>
    %c0_8 = arith.constant 0 : index
    %c0_9 = arith.constant 0 : index
    %13 = vector.load %arg5[%c0_8, %c0_9] : memref<512x256xbf16, #tpu.memory_space<vmem>>, vector<512x256xbf16>
    %cst_10 = arith.constant dense<0.000000e+00> : vector<8x256xf32>
    %14 = tpu.matmul %12, %13, %cst_10 {dimension_numbers = #tpu.dot_dimension_numbers<[1], [0], [0], [1], [0, 0, 1, 1], [], []>} : vector<8x512xbf16>, vector<512x256xbf16>, vector<8x256xf32> -> vector<8x256xf32>
    %c0_11 = arith.constant 0 : index
    %c0_12 = arith.constant 0 : index
    %15 = vector.load %arg6[%c0_11, %c0_12] : memref<1x256xf32, #tpu.memory_space<vmem>>, vector<1x256xf32>
    %16 = vector.broadcast %15 : vector<1x256xf32> to vector<8x256xf32>
    %17 = arith.mulf %14, %16 : vector<8x256xf32>
    %c0_13 = arith.constant 0 : index
    %c0_14 = arith.constant 0 : index
    %18 = vector.load %arg7[%c0_13, %c0_14] : memref<1x256xf32, #tpu.memory_space<vmem>>, vector<1x256xf32>
    %19 = vector.broadcast %18 : vector<1x256xf32> to vector<8x256xf32>
    %20 = arith.addf %17, %19 : vector<8x256xf32>
    %cst_15 = arith.constant 0.000000e+00 : f32
    %21 = vector.broadcast %cst_15 : f32 to vector<8x256xf32>
    %22 = arith.maximumf %20, %21 : vector<8x256xf32>
    %23 = arith.truncf %22 : vector<8x256xf32> to vector<8x256xbf16>
    %c0_16 = arith.constant 0 : index
    %c0_17 = arith.constant 0 : index
    %24 = vector.load %arg8[%c0_16, %c0_17] : memref<256x128xbf16, #tpu.memory_space<vmem>>, vector<256x128xbf16>
    %cst_18 = arith.constant dense<0.000000e+00> : vector<8x128xf32>
    %25 = tpu.matmul %23, %24, %cst_18 {dimension_numbers = #tpu.dot_dimension_numbers<[1], [0], [0], [1], [0, 0, 1, 1], [], []>} : vector<8x256xbf16>, vector<256x128xbf16>, vector<8x128xf32> -> vector<8x128xf32>
    %c0_19 = arith.constant 0 : index
    %c0_20 = arith.constant 0 : index
    %26 = vector.load %arg9[%c0_19, %c0_20] : memref<1x128xf32, #tpu.memory_space<vmem>>, vector<1x128xf32>
    %27 = vector.broadcast %26 : vector<1x128xf32> to vector<8x128xf32>
    %28 = arith.mulf %25, %27 : vector<8x128xf32>
    %c0_21 = arith.constant 0 : index
    %c0_22 = arith.constant 0 : index
    %29 = vector.load %arg10[%c0_21, %c0_22] : memref<1x128xf32, #tpu.memory_space<vmem>>, vector<1x128xf32>
    %30 = vector.broadcast %29 : vector<1x128xf32> to vector<8x128xf32>
    %31 = arith.addf %28, %30 : vector<8x128xf32>
    %cst_23 = arith.constant 0.000000e+00 : f32
    %32 = vector.broadcast %cst_23 : f32 to vector<8x128xf32>
    %33 = arith.maximumf %31, %32 : vector<8x128xf32>
    %34 = arith.truncf %33 : vector<8x128xf32> to vector<8x128xbf16>
    %c0_24 = arith.constant 0 : index
    %c0_25 = arith.constant 0 : index
    %35 = vector.load %arg11[%c0_24, %c0_25] : memref<128x128xbf16, #tpu.memory_space<vmem>>, vector<128x128xbf16>
    %cst_26 = arith.constant dense<0.000000e+00> : vector<8x128xf32>
    %36 = tpu.matmul %34, %35, %cst_26 {dimension_numbers = #tpu.dot_dimension_numbers<[1], [0], [0], [1], [0, 0, 1, 1], [], []>} : vector<8x128xbf16>, vector<128x128xbf16>, vector<8x128xf32> -> vector<8x128xf32>
    %c0_27 = arith.constant 0 : index
    %c0_28 = arith.constant 0 : index
    %37 = vector.load %arg12[%c0_27, %c0_28] : memref<1x128xf32, #tpu.memory_space<vmem>>, vector<1x128xf32>
    %38 = vector.broadcast %37 : vector<1x128xf32> to vector<8x128xf32>
    %39 = arith.addf %36, %38 : vector<8x128xf32>
    %c0_29 = arith.constant 0 : index
    %c0_30 = arith.constant 0 : index
    %40 = vector.load %arg13[%c0_29, %c0_30] : memref<8x128xf32, #tpu.memory_space<vmem>>, vector<8x128xf32>
    tpu.vector_store %arg13[%c0_29, %c0_30], %39 {strides = array<i32>} : memref<8x128xf32, #tpu.memory_space<vmem>>, vector<8x128xf32>,
    return
  }
  func.func @transform_0(%arg0: i32) -> (i32, i32) {
    %c0_i32 = arith.constant 0 : i32
    %c0_i32_0 = arith.constant 0 : i32
    return %arg0, %c0_i32 : i32, i32
  }
  func.func @transform_1(%arg0: i32) -> (i32, i32) {
    %c0_i32 = arith.constant 0 : i32
    %c0_i32_0 = arith.constant 0 : i32
    %c0_i32_1 = arith.constant 0 : i32
    return %c0_i32, %c0_i32_0 : i32, i32
  }
  func.func @transform_2(%arg0: i32) -> (i32, i32) {
    %c0_i32 = arith.constant 0 : i32
    %c0_i32_0 = arith.constant 0 : i32
    %c0_i32_1 = arith.constant 0 : i32
    return %c0_i32, %c0_i32_0 : i32, i32
  }
  func.func @transform_3(%arg0: i32) -> (i32, i32) {
    %c0_i32 = arith.constant 0 : i32
    %c0_i32_0 = arith.constant 0 : i32
    %c0_i32_1 = arith.constant 0 : i32
    return %c0_i32, %c0_i32_0 : i32, i32
  }
  func.func @transform_4(%arg0: i32) -> (i32, i32) {
    %c0_i32 = arith.constant 0 : i32
    %c0_i32_0 = arith.constant 0 : i32
    %c0_i32_1 = arith.constant 0 : i32
    return %c0_i32, %c0_i32_0 : i32, i32
  }
  func.func @transform_5(%arg0: i32) -> (i32, i32) {
    %c0_i32 = arith.constant 0 : i32
    %c0_i32_0 = arith.constant 0 : i32
    %c0_i32_1 = arith.constant 0 : i32
    return %c0_i32, %c0_i32_0 : i32, i32
  }
  func.func @transform_6(%arg0: i32) -> (i32, i32) {
    %c0_i32 = arith.constant 0 : i32
    %c0_i32_0 = arith.constant 0 : i32
    %c0_i32_1 = arith.constant 0 : i32
    return %c0_i32, %c0_i32_0 : i32, i32
  }
  func.func @transform_7(%arg0: i32) -> (i32, i32) {
    %c0_i32 = arith.constant 0 : i32
    %c0_i32_0 = arith.constant 0 : i32
    %c0_i32_1 = arith.constant 0 : i32
    return %c0_i32, %c0_i32_0 : i32, i32
  }
  func.func @transform_8(%arg0: i32) -> (i32, i32) {
    %c0_i32 = arith.constant 0 : i32
    %c0_i32_0 = arith.constant 0 : i32
    %c0_i32_1 = arith.constant 0 : i32
    return %c0_i32, %c0_i32_0 : i32, i32
  }
  func.func @transform_9(%arg0: i32) -> (i32, i32) {
    %c0_i32 = arith.constant 0 : i32
    %c0_i32_0 = arith.constant 0 : i32
    %c0_i32_1 = arith.constant 0 : i32
    return %c0_i32, %c0_i32_0 : i32, i32
  }
  func.func @transform_10(%arg0: i32) -> (i32, i32) {
    %c0_i32 = arith.constant 0 : i32
    %c0_i32_0 = arith.constant 0 : i32
    %c0_i32_1 = arith.constant 0 : i32
    return %c0_i32, %c0_i32_0 : i32, i32
  }
  func.func @transform_11(%arg0: i32) -> (i32, i32) {
    %c0_i32 = arith.constant 0 : i32
    %c0_i32_0 = arith.constant 0 : i32
    %c0_i32_1 = arith.constant 0 : i32
    return %c0_i32, %c0_i32_0 : i32, i32
  }
  func.func @transform_12(%arg0: i32) -> (i32, i32) {
    %c0_i32 = arith.constant 0 : i32
    %c0_i32_0 = arith.constant 0 : i32
    return %arg0, %c0_i32 : i32, i32
  }
}

</mosaic_0001>

<llo_original>
// kernel: simple_classifier_forward.1
$region0: #{simple_classifier_forward.1}
  #allocation0 [shape = 'u32[]', space=smem, size = 0x4, offset = 0x4, fixed_abs, tag = 'smem constant byte address 0x4 - core index']
  #allocation1 [shape = 'u32[144,128]{1,0:T(1,128)}', space=vmem, size = 0x12000, scoped, tag = 'internal scratch']
  %s0 = inlined_call_operand.vmem [shape: f32[8,1408], index: 0, kind: input, shape index: {}]
  %s1 = inlined_call_operand.hbm [shape: bf16[1408,512], index: 1, kind: input, shape index: {}]
  %s2 = inlined_call_operand.hbm [shape: f32[1,512], index: 2, kind: input, shape index: {}]
  %s3 = inlined_call_operand.hbm [shape: f32[1,512], index: 3, kind: input, shape index: {}]
  %s4 = inlined_call_operand.hbm [shape: bf16[512,256], index: 4, kind: input, shape index: {}]
  %s5 = inlined_call_operand.hbm [shape: f32[1,256], index: 5, kind: input, shape index: {}]
  %s6 = inlined_call_operand.hbm [shape: f32[1,256], index: 6, kind: input, shape index: {}]
  %s7 = inlined_call_operand.hbm [shape: bf16[256,128], index: 7, kind: input, shape index: {}]
  %s8 = inlined_call_operand.hbm [shape: f32[1,128], index: 8, kind: input, shape index: {}]
  %s9 = inlined_call_operand.hbm [shape: f32[1,128], index: 9, kind: input, shape index: {}]
  %s10 = inlined_call_operand.hbm [shape: bf16[128,128], index: 10, kind: input, shape index: {}]
  %s11 = inlined_call_operand.hbm [shape: f32[1,128], index: 11, kind: input, shape index: {}]
  %s12 = inlined_call_operand.hbm [shape: f32[8,128], index: 12, kind: output, shape index: {}]
  %s13 = sld [smem:[#allocation0]]
  $region102: #{simple_classifier_forward.1} parent=0
    _
  %s15 = ssub.s32 1, %s13
  %s16 = scalar_select 0, %s15, %s13
  $region1: #{simple_classifier_forward.1} parent=0
    #allocation2 [shape = 'u8[1441792]{0}', space=vmem, size = 0x160000, scoped, tag = 'input window, operand 1, single buffered']
    #allocation3 [shape = 's32[1]{0}', space=sflag, size = 0x4, scoped, tag = 'scoped memory for simple_classifier_forward.1']
    #allocation4 [shape = 's32[1]{0}', space=sflag, size = 0x4, scoped, tag = 'scoped memory for simple_classifier_forward.1']
    #allocation5 [shape = 'u8[2048]{0}', space=vmem, size = 0x800, scoped, tag = 'input window, operand 2, single buffered']
    #allocation6 [shape = 's32[1]{0}', space=sflag, size = 0x4, scoped, tag = 'scoped memory for simple_classifier_forward.1']
    #allocation7 [shape = 'u8[2048]{0}', space=vmem, size = 0x800, scoped, tag = 'input window, operand 3, single buffered']
    #allocation8 [shape = 'u8[262144]{0}', space=vmem, size = 0x40000, scoped, tag = 'input window, operand 4, single buffered']
    #allocation9 [shape = 's32[1]{0}', space=sflag, size = 0x4, scoped, tag = 'scoped memory for simple_classifier_forward.1']
    #allocation10 [shape = 'u8[1024]{0}', space=vmem, size = 0x400, scoped, tag = 'input window, operand 5, single buffered']
    #allocation11 [shape = 'u8[1024]{0}', space=vmem, size = 0x400, scoped, tag = 'input window, operand 6, single buffered']
    #allocation12 [shape = 's32[1]{0}', space=sflag, size = 0x4, scoped, tag = 'scoped memory for simple_classifier_forward.1']
    #allocation13 [shape = 'u8[65536]{0}', space=vmem, size = 0x10000, scoped, tag = 'input window, operand 7, single buffered']
    #allocation14 [shape = 'u8[512]{0}', space=vmem, size = 0x400, scoped, tag = 'input window, operand 8, single buffered']
    #allocation15 [shape = 's32[1]{0}', space=sflag, size = 0x4, scoped, tag = 'scoped memory for simple_classifier_forward.1']
    #allocation16 [shape = 'u8[512]{0}', space=vmem, size = 0x400, scoped, tag = 'input window, operand 9, single buffered']
    #allocation17 [shape = 'u8[32768]{0}', space=vmem, size = 0x8000, scoped, tag = 'input window, operand 10, single buffered']
    #allocation18 [shape = 's32[1]{0}', space=sflag, size = 0x4, scoped, tag = 'scoped memory for simple_classifier_forward.1']
    #allocation19 [shape = 'u8[512]{0}', space=vmem, size = 0x400, scoped, tag = 'input window, operand 11, single buffered']
    #allocation20 [shape = 'u8[4096]{0}', space=vmem, size = 0x1000, scoped, tag = 'output window, operand 0, single buffered']
    %17 = vsyncpa [#allocation3], 0
    %18 = vsyncpa [#allocation6], 0
    %19 = vsyncpa [#allocation9], 0
    %20 = vsyncpa [#allocation12], 0
    %21 = vsyncpa [#allocation15], 0
    %22 = vsyncpa [#allocation18], 0
    %23 = vsyncpa [#allocation4], 0
    // Predicated region
    $region2: #{simple_classifier_forward.1} parent=1 // pred_check
      _
    $region3: #{simple_classifier_forward.1} parent=1 // pred_check_branch
      %25 = sbr.rel (0) target = $region5
    $region4: #{simple_classifier_forward.1} parent=1 // pred_region
      _
    $region5: #{simple_classifier_forward.1} parent=1 // pred_fallthru
      _
    // Predicated region
    $region6: #{simple_classifier_forward.1} parent=1 // pred_check
      _
    $region7: #{simple_classifier_forward.1} parent=1 // pred_check_branch
      %27 = sbr.rel (0) target = $region9
    $region8: #{simple_classifier_forward.1} parent=1 // pred_region
      %s29 = ssub.s32 45056, 45056
      %30 = vsyncadd [#allocation3], %s29
      %s31 = sshll.u32 [#allocation2], 4
      %s32 = int_to_ptr.vmem [resolvable:$true] %s31
      %37 = dma.hbm_to_vmem [thread:$0]  %s1, 45056, %s32, [#allocation3], 256, 256, 16
    $region9: #{simple_classifier_forward.1} parent=1 // pred_fallthru
      _
    // Predicated region
    $region10: #{simple_classifier_forward.1} parent=1 // pred_check
      _
    $region11: #{simple_classifier_forward.1} parent=1 // pred_check_branch
      %39 = sbr.rel (0) target = $region13
    $region12: #{simple_classifier_forward.1} parent=1 // pred_region
      %s41 = ssub.s32 64, 64
      %42 = vsyncadd [#allocation6], %s41
      %s44 = sshll.u32 [#allocation5], 4
      %s45 = int_to_ptr.vmem [resolvable:$true] %s44
      %47 = dma.hbm_to_vmem [thread:$0]  %s2, 64, %s45, [#allocation6]
    $region13: #{simple_classifier_forward.1} parent=1 // pred_fallthru
      _
    // Predicated region
    $region14: #{simple_classifier_forward.1} parent=1 // pred_check
      _
    $region15: #{simple_classifier_forward.1} parent=1 // pred_check_branch
      %49 = sbr.rel (0) target = $region17
    $region16: #{simple_classifier_forward.1} parent=1 // pred_region
      %s51 = ssub.s32 64, 64
      %52 = vsyncadd [#allocation6], %s51
      %s54 = sshll.u32 [#allocation7], 4
      %s55 = int_to_ptr.vmem [resolvable:$true] %s54
      %57 = dma.hbm_to_vmem [thread:$0]  %s3, 64, %s55, [#allocation6]
    $region17: #{simple_classifier_forward.1} parent=1 // pred_fallthru
      _
    // Predicated region
    $region18: #{simple_classifier_forward.1} parent=1 // pred_check
      _
    $region19: #{simple_classifier_forward.1} parent=1 // pred_check_branch
      %59 = sbr.rel (0) target = $region21
    $region20: #{simple_classifier_forward.1} parent=1 // pred_region
      %s61 = ssub.s32 8192, 8192
      %62 = vsyncadd [#allocation9], %s61
      %s63 = sshll.u32 [#allocation8], 4
      %s64 = int_to_ptr.vmem [resolvable:$true] %s63
      %69 = dma.hbm_to_vmem [thread:$0]  %s4, 8192, %s64, [#allocation9], 128, 128, 8
    $region21: #{simple_classifier_forward.1} parent=1 // pred_fallthru
      _
    // Predicated region
    $region22: #{simple_classifier_forward.1} parent=1 // pred_check
      _
    $region23: #{simple_classifier_forward.1} parent=1 // pred_check_branch
      %71 = sbr.rel (0) target = $region25
    $region24: #{simple_classifier_forward.1} parent=1 // pred_region
      %s73 = ssub.s32 32, 32
      %74 = vsyncadd [#allocation9], %s73
      %s76 = sshll.u32 [#allocation10], 4
      %s77 = int_to_ptr.vmem [resolvable:$true] %s76
      %79 = dma.hbm_to_vmem [thread:$0]  %s5, 32, %s77, [#allocation9]
    $region25: #{simple_classifier_forward.1} parent=1 // pred_fallthru
      _
    // Predicated region
    $region26: #{simple_classifier_forward.1} parent=1 // pred_check
      _
    $region27: #{simple_classifier_forward.1} parent=1 // pred_check_branch
      %81 = sbr.rel (0) target = $region29
    $region28: #{simple_classifier_forward.1} parent=1 // pred_region
      %s83 = ssub.s32 32, 32
      %84 = vsyncadd [#allocation12], %s83
      %s86 = sshll.u32 [#allocation11], 4
      %s87 = int_to_ptr.vmem [resolvable:$true] %s86
      %89 = dma.hbm_to_vmem [thread:$0]  %s6, 32, %s87, [#allocation12]
    $region29: #{simple_classifier_forward.1} parent=1 // pred_fallthru
      _
    // Predicated region
    $region30: #{simple_classifier_forward.1} parent=1 // pred_check
      _
    $region31: #{simple_classifier_forward.1} parent=1 // pred_check_branch
      %91 = sbr.rel (0) target = $region33
    $region32: #{simple_classifier_forward.1} parent=1 // pred_region
      %s93 = ssub.s32 2048, 2048
      %94 = vsyncadd [#allocation12], %s93
      %s95 = sshll.u32 [#allocation13], 4
      %s96 = int_to_ptr.vmem [resolvable:$true] %s95
      %101 = dma.hbm_to_vmem [thread:$0]  %s7, 2048, %s96, [#allocation12], 64, 64, 4
    $region33: #{simple_classifier_forward.1} parent=1 // pred_fallthru
      _
    // Predicated region
    $region34: #{simple_classifier_forward.1} parent=1 // pred_check
      _
    $region35: #{simple_classifier_forward.1} parent=1 // pred_check_branch
      %103 = sbr.rel (0) target = $region37
    $region36: #{simple_classifier_forward.1} parent=1 // pred_region
      %s105 = ssub.s32 16, 16
      %106 = vsyncadd [#allocation15], %s105
      %s108 = sshll.u32 [#allocation14], 4
      %s109 = int_to_ptr.vmem [resolvable:$true] %s108
      %111 = dma.hbm_to_vmem [thread:$0]  %s8, 16, %s109, [#allocation15]
    $region37: #{simple_classifier_forward.1} parent=1 // pred_fallthru
      _
    // Predicated region
    $region38: #{simple_classifier_forward.1} parent=1 // pred_check
      _
    $region39: #{simple_classifier_forward.1} parent=1 // pred_check_branch
      %113 = sbr.rel (0) target = $region41
    $region40: #{simple_classifier_forward.1} parent=1 // pred_region
      %s115 = ssub.s32 16, 16
      %116 = vsyncadd [#allocation15], %s115
      %s118 = sshll.u32 [#allocation16], 4
      %s119 = int_to_ptr.vmem [resolvable:$true] %s118
      %121 = dma.hbm_to_vmem [thread:$0]  %s9, 16, %s119, [#allocation15]
    $region41: #{simple_classifier_forward.1} parent=1 // pred_fallthru
      _
    // Predicated region
    $region42: #{simple_classifier_forward.1} parent=1 // pred_check
      _
    $region43: #{simple_classifier_forward.1} parent=1 // pred_check_branch
      %123 = sbr.rel (0) target = $region45
    $region44: #{simple_classifier_forward.1} parent=1 // pred_region
      %s125 = ssub.s32 1024, 1024
      %126 = vsyncadd [#allocation18], %s125
      %s127 = sshll.u32 [#allocation17], 4
      %s128 = int_to_ptr.vmem [resolvable:$true] %s127
      %133 = dma.hbm_to_vmem [thread:$0]  %s10, 1024, %s128, [#allocation18], 64, 64, 4
    $region45: #{simple_classifier_forward.1} parent=1 // pred_fallthru
      _
    // Predicated region
    $region46: #{simple_classifier_forward.1} parent=1 // pred_check
      _
    $region47: #{simple_classifier_forward.1} parent=1 // pred_check_branch
      %135 = sbr.rel (0) target = $region49
    $region48: #{simple_classifier_forward.1} parent=1 // pred_region
      %s137 = ssub.s32 16, 16
      %138 = vsyncadd [#allocation18], %s137
      %s140 = sshll.u32 [#allocation19], 4
      %s141 = int_to_ptr.vmem [resolvable:$true] %s140
      %143 = dma.hbm_to_vmem [thread:$0]  %s11, 16, %s141, [#allocation18]
    $region49: #{simple_classifier_forward.1} parent=1 // pred_fallthru
      _
    // Predicated region
    $region50: #{simple_classifier_forward.1} parent=1 // pred_check
      _
    $region51: #{simple_classifier_forward.1} parent=1 // pred_check_branch
      %145 = sbr.rel (0) target = $region53
    $region52: #{simple_classifier_forward.1} parent=1 // pred_region
      %146 = dma.done [#allocation3], 45056
    $region53: #{simple_classifier_forward.1} parent=1 // pred_fallthru
      _
    // Predicated region
    $region54: #{simple_classifier_forward.1} parent=1 // pred_check
      _
    $region55: #{simple_classifier_forward.1} parent=1 // pred_check_branch
      %148 = sbr.rel (0) target = $region57
    $region56: #{simple_classifier_forward.1} parent=1 // pred_region
      %149 = dma.done [#allocation6], 64
    $region57: #{simple_classifier_forward.1} parent=1 // pred_fallthru
      _
    // Predicated region
    $region58: #{simple_classifier_forward.1} parent=1 // pred_check
      _
    $region59: #{simple_classifier_forward.1} parent=1 // pred_check_branch
      %151 = sbr.rel (0) target = $region61
    $region60: #{simple_classifier_forward.1} parent=1 // pred_region
      %152 = dma.done [#allocation6], 64
    $region61: #{simple_classifier_forward.1} parent=1 // pred_fallthru
      _
    // Predicated region
    $region62: #{simple_classifier_forward.1} parent=1 // pred_check
      _
    $region63: #{simple_classifier_forward.1} parent=1 // pred_check_branch
      %154 = sbr.rel (0) target = $region65
    $region64: #{simple_classifier_forward.1} parent=1 // pred_region
      %155 = dma.done [#allocation9], 8192
    $region65: #{simple_classifier_forward.1} parent=1 // pred_fallthru
      _
    // Predicated region
    $region66: #{simple_classifier_forward.1} parent=1 // pred_check
      _
    $region67: #{simple_classifier_forward.1} parent=1 // pred_check_branch
      %157 = sbr.rel (0) target = $region69
    $region68: #{simple_classifier_forward.1} parent=1 // pred_region
      %158 = dma.done [#allocation9], 32
    $region69: #{simple_classifier_forward.1} parent=1 // pred_fallthru
      _
    // Predicated region
    $region70: #{simple_classifier_forward.1} parent=1 // pred_check
      _
    $region71: #{simple_classifier_forward.1} parent=1 // pred_check_branch
      %160 = sbr.rel (0) target = $region73
    $region72: #{simple_classifier_forward.1} parent=1 // pred_region
      %161 = dma.done [#allocation12], 32
    $region73: #{simple_classifier_forward.1} parent=1 // pred_fallthru
      _
    // Predicated region
    $region74: #{simple_classifier_forward.1} parent=1 // pred_check
      _
    $region75: #{simple_classifier_forward.1} parent=1 // pred_check_branch
      %163 = sbr.rel (0) target = $region77
    $region76: #{simple_classifier_forward.1} parent=1 // pred_region
      %164 = dma.done [#allocation12], 2048
    $region77: #{simple_classifier_forward.1} parent=1 // pred_fallthru
      _
    // Predicated region
    $region78: #{simple_classifier_forward.1} parent=1 // pred_check
      _
    $region79: #{simple_classifier_forward.1} parent=1 // pred_check_branch
      %166 = sbr.rel (0) target = $region81
    $region80: #{simple_classifier_forward.1} parent=1 // pred_region
      %167 = dma.done [#allocation15], 16
    $region81: #{simple_classifier_forward.1} parent=1 // pred_fallthru
      _
    // Predicated region
    $region82: #{simple_classifier_forward.1} parent=1 // pred_check
      _
    $region83: #{simple_classifier_forward.1} parent=1 // pred_check_branch
      %169 = sbr.rel (0) target = $region85
    $region84: #{simple_classifier_forward.1} parent=1 // pred_region
      %170 = dma.done [#allocation15], 16
    $region85: #{simple_classifier_forward.1} parent=1 // pred_fallthru
      _
    // Predicated region
    $region86: #{simple_classifier_forward.1} parent=1 // pred_check
      _
    $region87: #{simple_classifier_forward.1} parent=1 // pred_check_branch
      %172 = sbr.rel (0) target = $region89
    $region88: #{simple_classifier_forward.1} parent=1 // pred_region
      %173 = dma.done [#allocation18], 1024
    $region89: #{simple_classifier_forward.1} parent=1 // pred_fallthru
      _
    // Predicated region
    $region90: #{simple_classifier_forward.1} parent=1 // pred_check
      _
    $region91: #{simple_classifier_forward.1} parent=1 // pred_check_branch
      %175 = sbr.rel (0) target = $region93
    $region92: #{simple_classifier_forward.1} parent=1 // pred_region
      %176 = dma.done [#allocation18], 16
    $region93: #{simple_classifier_forward.1} parent=1 // pred_fallthru
      _
    %v178 = vld [vmem:[%s0] sm:$0xff]
    %v179 = vld [vmem:[%s0 + $0x8] sm:$0xff]
    %v180 = vld [vmem:[%s0 + $0x10] sm:$0xff]
    %v181 = vld [vmem:[%s0 + $0x18] sm:$0xff]
    %v182 = vld [vmem:[%s0 + $0x20] sm:$0xff]
    %v183 = vld [vmem:[%s0 + $0x28] sm:$0xff]
    %v184 = vld [vmem:[%s0 + $0x30] sm:$0xff]
    %v185 = vld [vmem:[%s0 + $0x38] sm:$0xff]
    %v186 = vld [vmem:[%s0 + $0x40] sm:$0xff]
    %v187 = vld [vmem:[%s0 + $0x48] sm:$0xff]
    %v188 = vld [vmem:[%s0 + $0x50] sm:$0xff]
    %v189 = vpack.c.bf16 %v178, %v178
    %v190 = vpack.c.bf16 %v179, %v179
    %v191 = vpack.c.bf16 %v180, %v180
    %v192 = vpack.c.bf16 %v181, %v181
    %v193 = vpack.c.bf16 %v182, %v182
    %v194 = vpack.c.bf16 %v183, %v183
    %v195 = vpack.c.bf16 %v184, %v184
    %v196 = vpack.c.bf16 %v185, %v185
    %v197 = vpack.c.bf16 %v186, %v186
    %v198 = vpack.c.bf16 %v187, %v187
    %v199 = vpack.c.bf16 %v188, %v188
    %v200 = vld [vmem:[#allocation2] sm:$0xff]
    %v201 = vld [vmem:[#allocation2 + $0x8] sm:$0xff]
    %v202 = vld [vmem:[#allocation2 + $0x10] sm:$0xff]
    %v203 = vld [vmem:[#allocation2 + $0x18] sm:$0xff]
    %v204 = vld [vmem:[#allocation2 + $0x20] sm:$0xff]
    %v205 = vld [vmem:[#allocation2 + $0x28] sm:$0xff]
    %v206 = vld [vmem:[#allocation2 + $0x30] sm:$0xff]
    %v207 = vld [vmem:[#allocation2 + $0x38] sm:$0xff]
    %v208 = vld [vmem:[#allocation2 + $0x40] sm:$0xff]
    %v209 = vld [vmem:[#allocation2 + $0x48] sm:$0xff]
    %v210 = vld [vmem:[#allocation2 + $0x50] sm:$0xff]
    %v211 = vld [vmem:[#allocation2 + $0x58] sm:$0xff]
    %v212 = vld [vmem:[#allocation2 + $0x60] sm:$0xff]
    %v213 = vld [vmem:[#allocation2 + $0x68] sm:$0xff]
    %v214 = vld [vmem:[#allocation2 + $0x70] sm:$0xff]
    %v215 = vld [vmem:[#allocation2 + $0x78] sm:$0xff]
    %v216 = vld [vmem:[#allocation2 + $0x80] sm:$0xff]
    %v217 = vld [vmem:[#allocation2 + $0x88] sm:$0xff]
    %v218 = vld [vmem:[#allocation2 + $0x90] sm:$0xff]
    %v219 = vld [vmem:[#allocation2 + $0x98] sm:$0xff]
    %v220 = vld [vmem:[#allocation2 + $0xa0] sm:$0xff]
    %v221 = vld [vmem:[#allocation2 + $0xa8] sm:$0xff]
    %v222 = vld [vmem:[#allocation2 + $0xb0] sm:$0xff]
    %v223 = vld [vmem:[#allocation2 + $0xb8] sm:$0xff]
    %v224 = vld [vmem:[#allocation2 + $0xc0] sm:$0xff]
    %v225 = vld [vmem:[#allocation2 + $0xc8] sm:$0xff]
    %v226 = vld [vmem:[#allocation2 + $0xd0] sm:$0xff]
    %v227 = vld [vmem:[#allocation2 + $0xd8] sm:$0xff]
    %v228 = vld [vmem:[#allocation2 + $0xe0] sm:$0xff]
    %v229 = vld [vmem:[#allocation2 + $0xe8] sm:$0xff]
    %v230 = vld [vmem:[#allocation2 + $0xf0] sm:$0xff]
    %v231 = vld [vmem:[#allocation2 + $0xf8] sm:$0xff]
    %v232 = vld [vmem:[#allocation2 + $0x100] sm:$0xff]
    %v233 = vld [vmem:[#allocation2 + $0x108] sm:$0xff]
    %v234 = vld [vmem:[#allocation2 + $0x110] sm:$0xff]
    %v235 = vld [vmem:[#allocation2 + $0x118] sm:$0xff]
    %v236 = vld [vmem:[#allocation2 + $0x120] sm:$0xff]
    %v237 = vld [vmem:[#allocation2 + $0x128] sm:$0xff]
    %v238 = vld [vmem:[#allocation2 + $0x130] sm:$0xff]
    %v239 = vld [vmem:[#allocation2 + $0x138] sm:$0xff]
    %v240 = vld [vmem:[#allocation2 + $0x140] sm:$0xff]
    %v241 = vld [vmem:[#allocation2 + $0x148] sm:$0xff]
    %v242 = vld [vmem:[#allocation2 + $0x150] sm:$0xff]
    %v243 = vld [vmem:[#allocation2 + $0x158] sm:$0xff]
    %v244 = vld [vmem:[#allocation2 + $0x160] sm:$0xff]
    %v245 = vld [vmem:[#allocation2 + $0x168] sm:$0xff]
    %v246 = vld [vmem:[#allocation2 + $0x170] sm:$0xff]
    %v247 = vld [vmem:[#allocation2 + $0x178] sm:$0xff]
    %v248 = vld [vmem:[#allocation2 + $0x180] sm:$0xff]
    %v249 = vld [vmem:[#allocation2 + $0x188] sm:$0xff]
    %v250 = vld [vmem:[#allocation2 + $0x190] sm:$0xff]
    %v251 = vld [vmem:[#allocation2 + $0x198] sm:$0xff]
    %v252 = vld [vmem:[#allocation2 + $0x1a0] sm:$0xff]
    %v253 = vld [vmem:[#allocation2 + $0x1a8] sm:$0xff]
    %v254 = vld [vmem:[#allocation2 + $0x1b0] sm:$0xff]
    %v255 = vld [vmem:[#allocation2 + $0x1b8] sm:$0xff]
    %v256 = vld [vmem:[#allocation2 + $0x1c0] sm:$0xff]
    %v257 = vld [vmem:[#allocation2 + $0x1c8] sm:$0xff]
    %v258 = vld [vmem:[#allocation2 + $0x1d0] sm:$0xff]
    %v259 = vld [vmem:[#allocation2 + $0x1d8] sm:$0xff]
    %v260 = vld [vmem:[#allocation2 + $0x1e0] sm:$0xff]
    %v261 = vld [vmem:[#allocation2 + $0x1e8] sm:$0xff]
    %v262 = vld [vmem:[#allocation2 + $0x1f0] sm:$0xff]
    %v263 = vld [vmem:[#allocation2 + $0x1f8] sm:$0xff]
    %v264 = vld [vmem:[#allocation2 + $0x200] sm:$0xff]
    %v265 = vld [vmem:[#allocation2 + $0x208] sm:$0xff]
    %v266 = vld [vmem:[#allocation2 + $0x210] sm:$0xff]
    %v267 = vld [vmem:[#allocation2 + $0x218] sm:$0xff]
    %v268 = vld [vmem:[#allocation2 + $0x220] sm:$0xff]
    %v269 = vld [vmem:[#allocation2 + $0x228] sm:$0xff]
    %v270 = vld [vmem:[#allocation2 + $0x230] sm:$0xff]
    %v271 = vld [vmem:[#allocation2 + $0x238] sm:$0xff]
    %v272 = vld [vmem:[#allocation2 + $0x240] sm:$0xff]
    %v273 = vld [vmem:[#allocation2 + $0x248] sm:$0xff]
    %v274 = vld [vmem:[#allocation2 + $0x250] sm:$0xff]
    %v275 = vld [vmem:[#allocation2 + $0x258] sm:$0xff]
    %v276 = vld [vmem:[#allocation2 + $0x260] sm:$0xff]
    %v277 = vld [vmem:[#allocation2 + $0x268] sm:$0xff]
    %v278 = vld [vmem:[#allocation2 + $0x270] sm:$0xff]
    %v279 = vld [vmem:[#allocation2 + $0x278] sm:$0xff]
    %v280 = vld [vmem:[#allocation2 + $0x280] sm:$0xff]
    %v281 = vld [vmem:[#allocation2 + $0x288] sm:$0xff]
    %v282 = vld [vmem:[#allocation2 + $0x290] sm:$0xff]
    %v283 = vld [vmem:[#allocation2 + $0x298] sm:$0xff]
    %v284 = vld [vmem:[#allocation2 + $0x2a0] sm:$0xff]
    %v285 = vld [vmem:[#allocation2 + $0x2a8] sm:$0xff]
    %v286 = vld [vmem:[#allocation2 + $0x2b0] sm:$0xff]
    %v287 = vld [vmem:[#allocation2 + $0x2b8] sm:$0xff]
    %v288 = vld [vmem:[#allocation2 + $0x2c0] sm:$0xff]
    %v289 = vld [vmem:[#allocation2 + $0x2c8] sm:$0xff]
    %v290 = vld [vmem:[#allocation2 + $0x2d0] sm:$0xff]
    %v291 = vld [vmem:[#allocation2 + $0x2d8] sm:$0xff]
    %v292 = vld [vmem:[#allocation2 + $0x2e0] sm:$0xff]
    %v293 = vld [vmem:[#allocation2 + $0x2e8] sm:$0xff]
    %v294 = vld [vmem:[#allocation2 + $0x2f0] sm:$0xff]
    %v295 = vld [vmem:[#allocation2 + $0x2f8] sm:$0xff]
    %v296 = vld [vmem:[#allocation2 + $0x300] sm:$0xff]
    %v297 = vld [vmem:[#allocation2 + $0x308] sm:$0xff]
    %v298 = vld [vmem:[#allocation2 + $0x310] sm:$0xff]
    %v299 = vld [vmem:[#allocation2 + $0x318] sm:$0xff]
    %v300 = vld [vmem:[#allocation2 + $0x320] sm:$0xff]
    %v301 = vld [vmem:[#allocation2 + $0x328] sm:$0xff]
    %v302 = vld [vmem:[#allocation2 + $0x330] sm:$0xff]
    %v303 = vld [vmem:[#allocation2 + $0x338] sm:$0xff]
    %v304 = vld [vmem:[#allocation2 + $0x340] sm:$0xff]
    %v305 = vld [vmem:[#allocation2 + $0x348] sm:$0xff]
    %v306 = vld [vmem:[#allocation2 + $0x350] sm:$0xff]
    %v307 = vld [vmem:[#allocation2 + $0x358] sm:$0xff]
    %v308 = vld [vmem:[#allocation2 + $0x360] sm:$0xff]
    %v309 = vld [vmem:[#allocation2 + $0x368] sm:$0xff]
    %v310 = vld [vmem:[#allocation2 + $0x370] sm:$0xff]
    %v311 = vld [vmem:[#allocation2 + $0x378] sm:$0xff]
    %v312 = vld [vmem:[#allocation2 + $0x380] sm:$0xff]
    %v313 = vld [vmem:[#allocation2 + $0x388] sm:$0xff]
    %v314 = vld [vmem:[#allocation2 + $0x390] sm:$0xff]
    %v315 = vld [vmem:[#allocation2 + $0x398] sm:$0xff]
    %v316 = vld [vmem:[#allocation2 + $0x3a0] sm:$0xff]
    %v317 = vld [vmem:[#allocation2 + $0x3a8] sm:$0xff]
    %v318 = vld [vmem:[#allocation2 + $0x3b0] sm:$0xff]
    %v319 = vld [vmem:[#allocation2 + $0x3b8] sm:$0xff]
    %v320 = vld [vmem:[#allocation2 + $0x3c0] sm:$0xff]
    %v321 = vld [vmem:[#allocation2 + $0x3c8] sm:$0xff]
    %v322 = vld [vmem:[#allocation2 + $0x3d0] sm:$0xff]
    %v323 = vld [vmem:[#allocation2 + $0x3d8] sm:$0xff]
    %v324 = vld [vmem:[#allocation2 + $0x3e0] sm:$0xff]
    %v325 = vld [vmem:[#allocation2 + $0x3e8] sm:$0xff]
    %v326 = vld [vmem:[#allocation2 + $0x3f0] sm:$0xff]
    %v327 = vld [vmem:[#allocation2 + $0x3f8] sm:$0xff]
    %v328 = vld [vmem:[#allocation2 + $0x400] sm:$0xff]
    %v329 = vld [vmem:[#allocation2 + $0x408] sm:$0xff]
    %v330 = vld [vmem:[#allocation2 + $0x410] sm:$0xff]
    %v331 = vld [vmem:[#allocation2 + $0x418] sm:$0xff]
    %v332 = vld [vmem:[#allocation2 + $0x420] sm:$0xff]
    %v333 = vld [vmem:[#allocation2 + $0x428] sm:$0xff]
    %v334 = vld [vmem:[#allocation2 + $0x430] sm:$0xff]
    %v335 = vld [vmem:[#allocation2 + $0x438] sm:$0xff]
    %v336 = vld [vmem:[#allocation2 + $0x440] sm:$0xff]
    %v337 = vld [vmem:[#allocation2 + $0x448] sm:$0xff]
    %v338 = vld [vmem:[#allocation2 + $0x450] sm:$0xff]
    %v339 = vld [vmem:[#allocation2 + $0x458] sm:$0xff]
    %v340 = vld [vmem:[#allocation2 + $0x460] sm:$0xff]
    %v341 = vld [vmem:[#allocation2 + $0x468] sm:$0xff]
    %v342 = vld [vmem:[#allocation2 + $0x470] sm:$0xff]
    %v343 = vld [vmem:[#allocation2 + $0x478] sm:$0xff]
    %v344 = vld [vmem:[#allocation2 + $0x480] sm:$0xff]
    %v345 = vld [vmem:[#allocation2 + $0x488] sm:$0xff]
    %v346 = vld [vmem:[#allocation2 + $0x490] sm:$0xff]
    %v347 = vld [vmem:[#allocation2 + $0x498] sm:$0xff]
    %v348 = vld [vmem:[#allocation2 + $0x4a0] sm:$0xff]
    %v349 = vld [vmem:[#allocation2 + $0x4a8] sm:$0xff]
    %v350 = vld [vmem:[#allocation2 + $0x4b0] sm:$0xff]
    %v351 = vld [vmem:[#allocation2 + $0x4b8] sm:$0xff]
    %v352 = vld [vmem:[#allocation2 + $0x4c0] sm:$0xff]
    %v353 = vld [vmem:[#allocation2 + $0x4c8] sm:$0xff]
    %v354 = vld [vmem:[#allocation2 + $0x4d0] sm:$0xff]
    %v355 = vld [vmem:[#allocation2 + $0x4d8] sm:$0xff]
    %v356 = vld [vmem:[#allocation2 + $0x4e0] sm:$0xff]
    %v357 = vld [vmem:[#allocation2 + $0x4e8] sm:$0xff]
    %v358 = vld [vmem:[#allocation2 + $0x4f0] sm:$0xff]
    %v359 = vld [vmem:[#allocation2 + $0x4f8] sm:$0xff]
    %v360 = vld [vmem:[#allocation2 + $0x500] sm:$0xff]
    %v361 = vld [vmem:[#allocation2 + $0x508] sm:$0xff]
    %v362 = vld [vmem:[#allocation2 + $0x510] sm:$0xff]
    %v363 = vld [vmem:[#allocation2 + $0x518] sm:$0xff]
    %v364 = vld [vmem:[#allocation2 + $0x520] sm:$0xff]
    %v365 = vld [vmem:[#allocation2 + $0x528] sm:$0xff]
    %v366 = vld [vmem:[#allocation2 + $0x530] sm:$0xff]
    %v367 = vld [vmem:[#allocation2 + $0x538] sm:$0xff]
    %v368 = vld [vmem:[#allocation2 + $0x540] sm:$0xff]
    %v369 = vld [vmem:[#allocation2 + $0x548] sm:$0xff]
    %v370 = vld [vmem:[#allocation2 + $0x550] sm:$0xff]
    %v371 = vld [vmem:[#allocation2 + $0x558] sm:$0xff]
    %v372 = vld [vmem:[#allocation2 + $0x560] sm:$0xff]
    %v373 = vld [vmem:[#allocation2 + $0x568] sm:$0xff]
    %v374 = vld [vmem:[#allocation2 + $0x570] sm:$0xff]
    %v375 = vld [vmem:[#allocation2 + $0x578] sm:$0xff]
    %v376 = vld [vmem:[#allocation2 + $0x580] sm:$0xff]
    %v377 = vld [vmem:[#allocation2 + $0x588] sm:$0xff]
    %v378 = vld [vmem:[#allocation2 + $0x590] sm:$0xff]
    %v379 = vld [vmem:[#allocation2 + $0x598] sm:$0xff]
    %v380 = vld [vmem:[#allocation2 + $0x5a0] sm:$0xff]
    %v381 = vld [vmem:[#allocation2 + $0x5a8] sm:$0xff]
    %v382 = vld [vmem:[#allocation2 + $0x5b0] sm:$0xff]
    %v383 = vld [vmem:[#allocation2 + $0x5b8] sm:$0xff]
    %v384 = vld [vmem:[#allocation2 + $0x5c0] sm:$0xff]
    %v385 = vld [vmem:[#allocation2 + $0x5c8] sm:$0xff]
    %v386 = vld [vmem:[#allocation2 + $0x5d0] sm:$0xff]
    %v387 = vld [vmem:[#allocation2 + $0x5d8] sm:$0xff]
    %v388 = vld [vmem:[#allocation2 + $0x5e0] sm:$0xff]
    %v389 = vld [vmem:[#allocation2 + $0x5e8] sm:$0xff]
    %v390 = vld [vmem:[#allocation2 + $0x5f0] sm:$0xff]
    %v391 = vld [vmem:[#allocation2 + $0x5f8] sm:$0xff]
    %v392 = vld [vmem:[#allocation2 + $0x600] sm:$0xff]
    %v393 = vld [vmem:[#allocation2 + $0x608] sm:$0xff]
    %v394 = vld [vmem:[#allocation2 + $0x610] sm:$0xff]
    %v395 = vld [vmem:[#allocation2 + $0x618] sm:$0xff]
    %v396 = vld [vmem:[#allocation2 + $0x620] sm:$0xff]
    %v397 = vld [vmem:[#allocation2 + $0x628] sm:$0xff]
    %v398 = vld [vmem:[#allocation2 + $0x630] sm:$0xff]
    %v399 = vld [vmem:[#allocation2 + $0x638] sm:$0xff]
    %v400 = vld [vmem:[#allocation2 + $0x640] sm:$0xff]
    %v401 = vld [vmem:[#allocation2 + $0x648] sm:$0xff]
    %v402 = vld [vmem:[#allocation2 + $0x650] sm:$0xff]
    %v403 = vld [vmem:[#allocation2 + $0x658] sm:$0xff]
    %v404 = vld [vmem:[#allocation2 + $0x660] sm:$0xff]
    %v405 = vld [vmem:[#allocation2 + $0x668] sm:$0xff]
    %v406 = vld [vmem:[#allocation2 + $0x670] sm:$0xff]
    %v407 = vld [vmem:[#allocation2 + $0x678] sm:$0xff]
    %v408 = vld [vmem:[#allocation2 + $0x680] sm:$0xff]
    %v409 = vld [vmem:[#allocation2 + $0x688] sm:$0xff]
    %v410 = vld [vmem:[#allocation2 + $0x690] sm:$0xff]
    %v411 = vld [vmem:[#allocation2 + $0x698] sm:$0xff]
    %v412 = vld [vmem:[#allocation2 + $0x6a0] sm:$0xff]
    %v413 = vld [vmem:[#allocation2 + $0x6a8] sm:$0xff]
    %v414 = vld [vmem:[#allocation2 + $0x6b0] sm:$0xff]
    %v415 = vld [vmem:[#allocation2 + $0x6b8] sm:$0xff]
    %v416 = vld [vmem:[#allocation2 + $0x6c0] sm:$0xff]
    %v417 = vld [vmem:[#allocation2 + $0x6c8] sm:$0xff]
    %v418 = vld [vmem:[#allocation2 + $0x6d0] sm:$0xff]
    %v419 = vld [vmem:[#allocation2 + $0x6d8] sm:$0xff]
    %v420 = vld [vmem:[#allocation2 + $0x6e0] sm:$0xff]
    %v421 = vld [vmem:[#allocation2 + $0x6e8] sm:$0xff]
    %v422 = vld [vmem:[#allocation2 + $0x6f0] sm:$0xff]
    %v423 = vld [vmem:[#allocation2 + $0x6f8] sm:$0xff]
    %v424 = vld [vmem:[#allocation2 + $0x700] sm:$0xff]
    %v425 = vld [vmem:[#allocation2 + $0x708] sm:$0xff]
    %v426 = vld [vmem:[#allocation2 + $0x710] sm:$0xff]
    %v427 = vld [vmem:[#allocation2 + $0x718] sm:$0xff]
    %v428 = vld [vmem:[#allocation2 + $0x720] sm:$0xff]
    %v429 = vld [vmem:[#allocation2 + $0x728] sm:$0xff]
    %v430 = vld [vmem:[#allocation2 + $0x730] sm:$0xff]
    %v431 = vld [vmem:[#allocation2 + $0x738] sm:$0xff]
    %v432 = vld [vmem:[#allocation2 + $0x740] sm:$0xff]
    %v433 = vld [vmem:[#allocation2 + $0x748] sm:$0xff]
    %v434 = vld [vmem:[#allocation2 + $0x750] sm:$0xff]
    %v435 = vld [vmem:[#allocation2 + $0x758] sm:$0xff]
    %v436 = vld [vmem:[#allocation2 + $0x760] sm:$0xff]
    %v437 = vld [vmem:[#allocation2 + $0x768] sm:$0xff]
    %v438 = vld [vmem:[#allocation2 + $0x770] sm:$0xff]
    %v439 = vld [vmem:[#allocation2 + $0x778] sm:$0xff]
    %v440 = vld [vmem:[#allocation2 + $0x780] sm:$0xff]
    %v441 = vld [vmem:[#allocation2 + $0x788] sm:$0xff]
    %v442 = vld [vmem:[#allocation2 + $0x790] sm:$0xff]
    %v443 = vld [vmem:[#allocation2 + $0x798] sm:$0xff]
    %v444 = vld [vmem:[#allocation2 + $0x7a0] sm:$0xff]
    %v445 = vld [vmem:[#allocation2 + $0x7a8] sm:$0xff]
    %v446 = vld [vmem:[#allocation2 + $0x7b0] sm:$0xff]
    %v447 = vld [vmem:[#allocation2 + $0x7b8] sm:$0xff]
    %v448 = vld [vmem:[#allocation2 + $0x7c0] sm:$0xff]
    %v449 = vld [vmem:[#allocation2 + $0x7c8] sm:$0xff]
    %v450 = vld [vmem:[#allocation2 + $0x7d0] sm:$0xff]
    %v451 = vld [vmem:[#allocation2 + $0x7d8] sm:$0xff]
    %v452 = vld [vmem:[#allocation2 + $0x7e0] sm:$0xff]
    %v453 = vld [vmem:[#allocation2 + $0x7e8] sm:$0xff]
    %v454 = vld [vmem:[#allocation2 + $0x7f0] sm:$0xff]
    %v455 = vld [vmem:[#allocation2 + $0x7f8] sm:$0xff]
    %v456 = vld [vmem:[#allocation2 + $0x800] sm:$0xff]
    %v457 = vld [vmem:[#allocation2 + $0x808] sm:$0xff]
    %v458 = vld [vmem:[#allocation2 + $0x810] sm:$0xff]
    %v459 = vld [vmem:[#allocation2 + $0x818] sm:$0xff]
    %v460 = vld [vmem:[#allocation2 + $0x820] sm:$0xff]
    %v461 = vld [vmem:[#allocation2 + $0x828] sm:$0xff]
    %v462 = vld [vmem:[#allocation2 + $0x830] sm:$0xff]
    %v463 = vld [vmem:[#allocation2 + $0x838] sm:$0xff]
    %v464 = vld [vmem:[#allocation2 + $0x840] sm:$0xff]
    %v465 = vld [vmem:[#allocation2 + $0x848] sm:$0xff]
    %v466 = vld [vmem:[#allocation2 + $0x850] sm:$0xff]
    %v467 = vld [vmem:[#allocation2 + $0x858] sm:$0xff]
    %v468 = vld [vmem:[#allocation2 + $0x860] sm:$0xff]
    %v469 = vld [vmem:[#allocation2 + $0x868] sm:$0xff]
    %v470 = vld [vmem:[#allocation2 + $0x870] sm:$0xff]
    %v471 = vld [vmem:[#allocation2 + $0x878] sm:$0xff]
    %v472 = vld [vmem:[#allocation2 + $0x880] sm:$0xff]
    %v473 = vld [vmem:[#allocation2 + $0x888] sm:$0xff]
    %v474 = vld [vmem:[#allocation2 + $0x890] sm:$0xff]
    %v475 = vld [vmem:[#allocation2 + $0x898] sm:$0xff]
    %v476 = vld [vmem:[#allocation2 + $0x8a0] sm:$0xff]
    %v477 = vld [vmem:[#allocation2 + $0x8a8] sm:$0xff]
    %v478 = vld [vmem:[#allocation2 + $0x8b0] sm:$0xff]
    %v479 = vld [vmem:[#allocation2 + $0x8b8] sm:$0xff]
    %v480 = vld [vmem:[#allocation2 + $0x8c0] sm:$0xff]
    %v481 = vld [vmem:[#allocation2 + $0x8c8] sm:$0xff]
    %v482 = vld [vmem:[#allocation2 + $0x8d0] sm:$0xff]
    %v483 = vld [vmem:[#allocation2 + $0x8d8] sm:$0xff]
    %v484 = vld [vmem:[#allocation2 + $0x8e0] sm:$0xff]
    %v485 = vld [vmem:[#allocation2 + $0x8e8] sm:$0xff]
    %v486 = vld [vmem:[#allocation2 + $0x8f0] sm:$0xff]
    %v487 = vld [vmem:[#allocation2 + $0x8f8] sm:$0xff]
    %v488 = vld [vmem:[#allocation2 + $0x900] sm:$0xff]
    %v489 = vld [vmem:[#allocation2 + $0x908] sm:$0xff]
    %v490 = vld [vmem:[#allocation2 + $0x910] sm:$0xff]
    %v491 = vld [vmem:[#allocation2 + $0x918] sm:$0xff]
    %v492 = vld [vmem:[#allocation2 + $0x920] sm:$0xff]
    %v493 = vld [vmem:[#allocation2 + $0x928] sm:$0xff]
    %v494 = vld [vmem:[#allocation2 + $0x930] sm:$0xff]
    %v495 = vld [vmem:[#allocation2 + $0x938] sm:$0xff]
    %v496 = vld [vmem:[#allocation2 + $0x940] sm:$0xff]
    %v497 = vld [vmem:[#allocation2 + $0x948] sm:$0xff]
    %v498 = vld [vmem:[#allocation2 + $0x950] sm:$0xff]
    %v499 = vld [vmem:[#allocation2 + $0x958] sm:$0xff]
    %v500 = vld [vmem:[#allocation2 + $0x960] sm:$0xff]
    %v501 = vld [vmem:[#allocation2 + $0x968] sm:$0xff]
    %v502 = vld [vmem:[#allocation2 + $0x970] sm:$0xff]
    %v503 = vld [vmem:[#allocation2 + $0x978] sm:$0xff]
    %v504 = vld [vmem:[#allocation2 + $0x980] sm:$0xff]
    %v505 = vld [vmem:[#allocation2 + $0x988] sm:$0xff]
    %v506 = vld [vmem:[#allocation2 + $0x990] sm:$0xff]
    %v507 = vld [vmem:[#allocation2 + $0x998] sm:$0xff]
    %v508 = vld [vmem:[#allocation2 + $0x9a0] sm:$0xff]
    %v509 = vld [vmem:[#allocation2 + $0x9a8] sm:$0xff]
    %v510 = vld [vmem:[#allocation2 + $0x9b0] sm:$0xff]
    %v511 = vld [vmem:[#allocation2 + $0x9b8] sm:$0xff]
    %v512 = vld [vmem:[#allocation2 + $0x9c0] sm:$0xff]
    %v513 = vld [vmem:[#allocation2 + $0x9c8] sm:$0xff]
    %v514 = vld [vmem:[#allocation2 + $0x9d0] sm:$0xff]
    %v515 = vld [vmem:[#allocation2 + $0x9d8] sm:$0xff]
    %v516 = vld [vmem:[#allocation2 + $0x9e0] sm:$0xff]
    %v517 = vld [vmem:[#allocation2 + $0x9e8] sm:$0xff]
    %v518 = vld [vmem:[#allocation2 + $0x9f0] sm:$0xff]
    %v519 = vld [vmem:[#allocation2 + $0x9f8] sm:$0xff]
    %v520 = vld [vmem:[#allocation2 + $0xa00] sm:$0xff]
    %v521 = vld [vmem:[#allocation2 + $0xa08] sm:$0xff]
    %v522 = vld [vmem:[#allocation2 + $0xa10] sm:$0xff]
    %v523 = vld [vmem:[#allocation2 + $0xa18] sm:$0xff]
    %v524 = vld [vmem:[#allocation2 + $0xa20] sm:$0xff]
    %v525 = vld [vmem:[#allocation2 + $0xa28] sm:$0xff]
    %v526 = vld [vmem:[#allocation2 + $0xa30] sm:$0xff]
    %v527 = vld [vmem:[#allocation2 + $0xa38] sm:$0xff]
    %v528 = vld [vmem:[#allocation2 + $0xa40] sm:$0xff]
    %v529 = vld [vmem:[#allocation2 + $0xa48] sm:$0xff]
    %v530 = vld [vmem:[#allocation2 + $0xa50] sm:$0xff]
    %v531 = vld [vmem:[#allocation2 + $0xa58] sm:$0xff]
    %v532 = vld [vmem:[#allocation2 + $0xa60] sm:$0xff]
    %v533 = vld [vmem:[#allocation2 + $0xa68] sm:$0xff]
    %v534 = vld [vmem:[#allocation2 + $0xa70] sm:$0xff]
    %v535 = vld [vmem:[#allocation2 + $0xa78] sm:$0xff]
    %v536 = vld [vmem:[#allocation2 + $0xa80] sm:$0xff]
    %v537 = vld [vmem:[#allocation2 + $0xa88] sm:$0xff]
    %v538 = vld [vmem:[#allocation2 + $0xa90] sm:$0xff]
    %v539 = vld [vmem:[#allocation2 + $0xa98] sm:$0xff]
    %v540 = vld [vmem:[#allocation2 + $0xaa0] sm:$0xff]
    %v541 = vld [vmem:[#allocation2 + $0xaa8] sm:$0xff]
    %v542 = vld [vmem:[#allocation2 + $0xab0] sm:$0xff]
    %v543 = vld [vmem:[#allocation2 + $0xab8] sm:$0xff]
    %v544 = vld [vmem:[#allocation2 + $0xac0] sm:$0xff]
    %v545 = vld [vmem:[#allocation2 + $0xac8] sm:$0xff]
    %v546 = vld [vmem:[#allocation2 + $0xad0] sm:$0xff]
    %v547 = vld [vmem:[#allocation2 + $0xad8] sm:$0xff]
    %v548 = vld [vmem:[#allocation2 + $0xae0] sm:$0xff]
    %v549 = vld [vmem:[#allocation2 + $0xae8] sm:$0xff]
    %v550 = vld [vmem:[#allocation2 + $0xaf0] sm:$0xff]
    %v551 = vld [vmem:[#allocation2 + $0xaf8] sm:$0xff]
    %v904 = vunpack.c.l.b16 %v200
    %v905 = vunpack.c.h.b16 %v200
    %v906 = vunpack.c.l.b16 %v201
    %v907 = vunpack.c.h.b16 %v201
    %v908 = vunpack.c.l.b16 %v202
    %v909 = vunpack.c.h.b16 %v202
    %v910 = vunpack.c.l.b16 %v203
    %v911 = vunpack.c.h.b16 %v203
    %v912 = vunpack.c.l.b16 %v204
    %v913 = vunpack.c.h.b16 %v204
    %v914 = vunpack.c.l.b16 %v205
    %v915 = vunpack.c.h.b16 %v205
    %v916 = vunpack.c.l.b16 %v206
    %v917 = vunpack.c.h.b16 %v206
    %v918 = vunpack.c.l.b16 %v207
    %v919 = vunpack.c.h.b16 %v207
    %v920 = vunpack.c.l.b16 %v208
    %v921 = vunpack.c.h.b16 %v208
    %v922 = vunpack.c.l.b16 %v209
    %v923 = vunpack.c.h.b16 %v209
    %v924 = vunpack.c.l.b16 %v210
    %v925 = vunpack.c.h.b16 %v210
    %v926 = vunpack.c.l.b16 %v211
    %v927 = vunpack.c.h.b16 %v211
    %v928 = vunpack.c.l.b16 %v212
    %v929 = vunpack.c.h.b16 %v212
    %v930 = vunpack.c.l.b16 %v213
    %v931 = vunpack.c.h.b16 %v213
    %v932 = vunpack.c.l.b16 %v214
    %v933 = vunpack.c.h.b16 %v214
    %v934 = vunpack.c.l.b16 %v215
    %v935 = vunpack.c.h.b16 %v215
    %v936 = vunpack.c.l.b16 %v216
    %v937 = vunpack.c.h.b16 %v216
    %v938 = vunpack.c.l.b16 %v217
    %v939 = vunpack.c.h.b16 %v217
    %v940 = vunpack.c.l.b16 %v218
    %v941 = vunpack.c.h.b16 %v218
    %v942 = vunpack.c.l.b16 %v219
    %v943 = vunpack.c.h.b16 %v219
    %v944 = vunpack.c.l.b16 %v220
    %v945 = vunpack.c.h.b16 %v220
    %v946 = vunpack.c.l.b16 %v221
    %v947 = vunpack.c.h.b16 %v221
    %v948 = vunpack.c.l.b16 %v222
    %v949 = vunpack.c.h.b16 %v222
    %v950 = vunpack.c.l.b16 %v223
    %v951 = vunpack.c.h.b16 %v223
    %v952 = vunpack.c.l.b16 %v224
    %v953 = vunpack.c.h.b16 %v224
    %v954 = vunpack.c.l.b16 %v225
    %v955 = vunpack.c.h.b16 %v225
    %v956 = vunpack.c.l.b16 %v226
    %v957 = vunpack.c.h.b16 %v226
    %v958 = vunpack.c.l.b16 %v227
    %v959 = vunpack.c.h.b16 %v227
    %v960 = vunpack.c.l.b16 %v228
    %v961 = vunpack.c.h.b16 %v228
    %v962 = vunpack.c.l.b16 %v229
    %v963 = vunpack.c.h.b16 %v229
    %v964 = vunpack.c.l.b16 %v230
    %v965 = vunpack.c.h.b16 %v230
    %v966 = vunpack.c.l.b16 %v231
    %v967 = vunpack.c.h.b16 %v231
    %v968 = vunpack.c.l.b16 %v232
    %v969 = vunpack.c.h.b16 %v232
    %v970 = vunpack.c.l.b16 %v233
    %v971 = vunpack.c.h.b16 %v233
    %v972 = vunpack.c.l.b16 %v234
    %v973 = vunpack.c.h.b16 %v234
    %v974 = vunpack.c.l.b16 %v235
    %v975 = vunpack.c.h.b16 %v235
    %v976 = vunpack.c.l.b16 %v236
    %v977 = vunpack.c.h.b16 %v236
    %v978 = vunpack.c.l.b16 %v237
    %v979 = vunpack.c.h.b16 %v237
    %v980 = vunpack.c.l.b16 %v238
    %v981 = vunpack.c.h.b16 %v238
    %v982 = vunpack.c.l.b16 %v239
    %v983 = vunpack.c.h.b16 %v239
    %v984 = vunpack.c.l.b16 %v240
    %v985 = vunpack.c.h.b16 %v240
    %v986 = vunpack.c.l.b16 %v241
    %v987 = vunpack.c.h.b16 %v241
    %v988 = vunpack.c.l.b16 %v242
    %v989 = vunpack.c.h.b16 %v242
    %v990 = vunpack.c.l.b16 %v243
    %v991 = vunpack.c.h.b16 %v243
    %v992 = vunpack.c.l.b16 %v244
    %v993 = vunpack.c.h.b16 %v244
    %v994 = vunpack.c.l.b16 %v245
    %v995 = vunpack.c.h.b16 %v245
    %v996 = vunpack.c.l.b16 %v246
    %v997 = vunpack.c.h.b16 %v246
    %v998 = vunpack.c.l.b16 %v247
    %v999 = vunpack.c.h.b16 %v247
    %v1000 = vunpack.c.l.b16 %v248
    %v1001 = vunpack.c.h.b16 %v248
    %v1002 = vunpack.c.l.b16 %v249
    %v1003 = vunpack.c.h.b16 %v249
    %v1004 = vunpack.c.l.b16 %v250
    %v1005 = vunpack.c.h.b16 %v250
    %v1006 = vunpack.c.l.b16 %v251
    %v1007 = vunpack.c.h.b16 %v251
    %v1008 = vunpack.c.l.b16 %v252
    %v1009 = vunpack.c.h.b16 %v252
    %v1010 = vunpack.c.l.b16 %v253
    %v1011 = vunpack.c.h.b16 %v253
    %v1012 = vunpack.c.l.b16 %v254
    %v1013 = vunpack.c.h.b16 %v254
    %v1014 = vunpack.c.l.b16 %v255
    %v1015 = vunpack.c.h.b16 %v255
    %v1016 = vunpack.c.l.b16 %v256
    %v1017 = vunpack.c.h.b16 %v256
    %v1018 = vunpack.c.l.b16 %v257
    %v1019 = vunpack.c.h.b16 %v257
    %v1020 = vunpack.c.l.b16 %v258
    %v1021 = vunpack.c.h.b16 %v258
    %v1022 = vunpack.c.l.b16 %v259
    %v1023 = vunpack.c.h.b16 %v259
    %v1024 = vunpack.c.l.b16 %v260
    %v1025 = vunpack.c.h.b16 %v260
    %v1026 = vunpack.c.l.b16 %v261
    %v1027 = vunpack.c.h.b16 %v261
    %v1028 = vunpack.c.l.b16 %v262
    %v1029 = vunpack.c.h.b16 %v262
    %v1030 = vunpack.c.l.b16 %v263
    %v1031 = vunpack.c.h.b16 %v263
    %v1032 = vunpack.c.l.b16 %v264
    %v1033 = vunpack.c.h.b16 %v264
    %v1034 = vunpack.c.l.b16 %v265
    %v1035 = vunpack.c.h.b16 %v265
    %v1036 = vunpack.c.l.b16 %v266
    %v1037 = vunpack.c.h.b16 %v266
    %v1038 = vunpack.c.l.b16 %v267
    %v1039 = vunpack.c.h.b16 %v267
    %v1040 = vunpack.c.l.b16 %v268
    %v1041 = vunpack.c.h.b16 %v268
    %v1042 = vunpack.c.l.b16 %v269
    %v1043 = vunpack.c.h.b16 %v269
    %v1044 = vunpack.c.l.b16 %v270
    %v1045 = vunpack.c.h.b16 %v270
    %v1046 = vunpack.c.l.b16 %v271
    %v1047 = vunpack.c.h.b16 %v271
    %v1048 = vunpack.c.l.b16 %v272
    %v1049 = vunpack.c.h.b16 %v272
    %v1050 = vunpack.c.l.b16 %v273
    %v1051 = vunpack.c.h.b16 %v273
    %v1052 = vunpack.c.l.b16 %v274
    %v1053 = vunpack.c.h.b16 %v274
    %v1054 = vunpack.c.l.b16 %v275
    %v1055 = vunpack.c.h.b16 %v275
    %v1056 = vunpack.c.l.b16 %v276
    %v1057 = vunpack.c.h.b16 %v276
    %v1058 = vunpack.c.l.b16 %v277
    %v1059 = vunpack.c.h.b16 %v277
    %v1060 = vunpack.c.l.b16 %v278
    %v1061 = vunpack.c.h.b16 %v278
    %v1062 = vunpack.c.l.b16 %v279
    %v1063 = vunpack.c.h.b16 %v279
    %v1064 = vunpack.c.l.b16 %v280
    %v1065 = vunpack.c.h.b16 %v280
    %v1066 = vunpack.c.l.b16 %v281
    %v1067 = vunpack.c.h.b16 %v281
    %v1068 = vunpack.c.l.b16 %v282
    %v1069 = vunpack.c.h.b16 %v282
    %v1070 = vunpack.c.l.b16 %v283
    %v1071 = vunpack.c.h.b16 %v283
    %v1072 = vunpack.c.l.b16 %v284
    %v1073 = vunpack.c.h.b16 %v284
    %v1074 = vunpack.c.l.b16 %v285
    %v1075 = vunpack.c.h.b16 %v285
    %v1076 = vunpack.c.l.b16 %v286
    %v1077 = vunpack.c.h.b16 %v286
    %v1078 = vunpack.c.l.b16 %v287
    %v1079 = vunpack.c.h.b16 %v287
    %v1080 = vunpack.c.l.b16 %v288
    %v1081 = vunpack.c.h.b16 %v288
    %v1082 = vunpack.c.l.b16 %v289
    %v1083 = vunpack.c.h.b16 %v289
    %v1084 = vunpack.c.l.b16 %v290
    %v1085 = vunpack.c.h.b16 %v290
    %v1086 = vunpack.c.l.b16 %v291
    %v1087 = vunpack.c.h.b16 %v291
    %v1088 = vunpack.c.l.b16 %v292
    %v1089 = vunpack.c.h.b16 %v292
    %v1090 = vunpack.c.l.b16 %v293
    %v1091 = vunpack.c.h.b16 %v293
    %v1092 = vunpack.c.l.b16 %v294
    %v1093 = vunpack.c.h.b16 %v294
    %v1094 = vunpack.c.l.b16 %v295
    %v1095 = vunpack.c.h.b16 %v295
    %v1096 = vunpack.c.l.b16 %v296
    %v1097 = vunpack.c.h.b16 %v296
    %v1098 = vunpack.c.l.b16 %v297
    %v1099 = vunpack.c.h.b16 %v297
    %v1100 = vunpack.c.l.b16 %v298
    %v1101 = vunpack.c.h.b16 %v298
    %v1102 = vunpack.c.l.b16 %v299
    %v1103 = vunpack.c.h.b16 %v299
    %v1104 = vunpack.c.l.b16 %v300
    %v1105 = vunpack.c.h.b16 %v300
    %v1106 = vunpack.c.l.b16 %v301
    %v1107 = vunpack.c.h.b16 %v301
    %v1108 = vunpack.c.l.b16 %v302
    %v1109 = vunpack.c.h.b16 %v302
    %v1110 = vunpack.c.l.b16 %v303
    %v1111 = vunpack.c.h.b16 %v303
    %v1112 = vunpack.c.l.b16 %v304
    %v1113 = vunpack.c.h.b16 %v304
    %v1114 = vunpack.c.l.b16 %v305
    %v1115 = vunpack.c.h.b16 %v305
    %v1116 = vunpack.c.l.b16 %v306
    %v1117 = vunpack.c.h.b16 %v306
    %v1118 = vunpack.c.l.b16 %v307
    %v1119 = vunpack.c.h.b16 %v307
    %v1120 = vunpack.c.l.b16 %v308
    %v1121 = vunpack.c.h.b16 %v308
    %v1122 = vunpack.c.l.b16 %v309
    %v1123 = vunpack.c.h.b16 %v309
    %v1124 = vunpack.c.l.b16 %v310
    %v1125 = vunpack.c.h.b16 %v310
    %v1126 = vunpack.c.l.b16 %v311
    %v1127 = vunpack.c.h.b16 %v311
    %v1128 = vunpack.c.l.b16 %v312
    %v1129 = vunpack.c.h.b16 %v312
    %v1130 = vunpack.c.l.b16 %v313
    %v1131 = vunpack.c.h.b16 %v313
    %v1132 = vunpack.c.l.b16 %v314
    %v1133 = vunpack.c.h.b16 %v314
    %v1134 = vunpack.c.l.b16 %v315
    %v1135 = vunpack.c.h.b16 %v315
    %v1136 = vunpack.c.l.b16 %v316
    %v1137 = vunpack.c.h.b16 %v316
    %v1138 = vunpack.c.l.b16 %v317
    %v1139 = vunpack.c.h.b16 %v317
    %v1140 = vunpack.c.l.b16 %v318
    %v1141 = vunpack.c.h.b16 %v318
    %v1142 = vunpack.c.l.b16 %v319
    %v1143 = vunpack.c.h.b16 %v319
    %v1144 = vunpack.c.l.b16 %v320
    %v1145 = vunpack.c.h.b16 %v320
    %v1146 = vunpack.c.l.b16 %v321
    %v1147 = vunpack.c.h.b16 %v321
    %v1148 = vunpack.c.l.b16 %v322
    %v1149 = vunpack.c.h.b16 %v322
    %v1150 = vunpack.c.l.b16 %v323
    %v1151 = vunpack.c.h.b16 %v323
    %v1152 = vunpack.c.l.b16 %v324
    %v1153 = vunpack.c.h.b16 %v324
    %v1154 = vunpack.c.l.b16 %v325
    %v1155 = vunpack.c.h.b16 %v325
    %v1156 = vunpack.c.l.b16 %v326
    %v1157 = vunpack.c.h.b16 %v326
    %v1158 = vunpack.c.l.b16 %v327
    %v1159 = vunpack.c.h.b16 %v327
    %v1160 = vunpack.c.l.b16 %v328
    %v1161 = vunpack.c.h.b16 %v328
    %v1162 = vunpack.c.l.b16 %v329
    %v1163 = vunpack.c.h.b16 %v329
    %v1164 = vunpack.c.l.b16 %v330
    %v1165 = vunpack.c.h.b16 %v330
    %v1166 = vunpack.c.l.b16 %v331
    %v1167 = vunpack.c.h.b16 %v331
    %v1168 = vunpack.c.l.b16 %v332
    %v1169 = vunpack.c.h.b16 %v332
    %v1170 = vunpack.c.l.b16 %v333
    %v1171 = vunpack.c.h.b16 %v333
    %v1172 = vunpack.c.l.b16 %v334
    %v1173 = vunpack.c.h.b16 %v334
    %v1174 = vunpack.c.l.b16 %v335
    %v1175 = vunpack.c.h.b16 %v335
    %v1176 = vunpack.c.l.b16 %v336
    %v1177 = vunpack.c.h.b16 %v336
    %v1178 = vunpack.c.l.b16 %v337
    %v1179 = vunpack.c.h.b16 %v337
    %v1180 = vunpack.c.l.b16 %v338
    %v1181 = vunpack.c.h.b16 %v338
    %v1182 = vunpack.c.l.b16 %v339
    %v1183 = vunpack.c.h.b16 %v339
    %v1184 = vunpack.c.l.b16 %v340
    %v1185 = vunpack.c.h.b16 %v340
    %v1186 = vunpack.c.l.b16 %v341
    %v1187 = vunpack.c.h.b16 %v341
    %v1188 = vunpack.c.l.b16 %v342
    %v1189 = vunpack.c.h.b16 %v342
    %v1190 = vunpack.c.l.b16 %v343
    %v1191 = vunpack.c.h.b16 %v343
    %v1192 = vunpack.c.l.b16 %v344
    %v1193 = vunpack.c.h.b16 %v344
    %v1194 = vunpack.c.l.b16 %v345
    %v1195 = vunpack.c.h.b16 %v345
    %v1196 = vunpack.c.l.b16 %v346
    %v1197 = vunpack.c.h.b16 %v346
    %v1198 = vunpack.c.l.b16 %v347
    %v1199 = vunpack.c.h.b16 %v347
    %v1200 = vunpack.c.l.b16 %v348
    %v1201 = vunpack.c.h.b16 %v348
    %v1202 = vunpack.c.l.b16 %v349
    %v1203 = vunpack.c.h.b16 %v349
    %v1204 = vunpack.c.l.b16 %v350
    %v1205 = vunpack.c.h.b16 %v350
    %v1206 = vunpack.c.l.b16 %v351
    %v1207 = vunpack.c.h.b16 %v351
    %v1208 = vunpack.c.l.b16 %v352
    %v1209 = vunpack.c.h.b16 %v352
    %v1210 = vunpack.c.l.b16 %v353
    %v1211 = vunpack.c.h.b16 %v353
    %v1212 = vunpack.c.l.b16 %v354
    %v1213 = vunpack.c.h.b16 %v354
    %v1214 = vunpack.c.l.b16 %v355
    %v1215 = vunpack.c.h.b16 %v355
    %v1216 = vunpack.c.l.b16 %v356
    %v1217 = vunpack.c.h.b16 %v356
    %v1218 = vunpack.c.l.b16 %v357
    %v1219 = vunpack.c.h.b16 %v357
    %v1220 = vunpack.c.l.b16 %v358
    %v1221 = vunpack.c.h.b16 %v358
    %v1222 = vunpack.c.l.b16 %v359
    %v1223 = vunpack.c.h.b16 %v359
    %v1224 = vunpack.c.l.b16 %v360
    %v1225 = vunpack.c.h.b16 %v360
    %v1226 = vunpack.c.l.b16 %v361
    %v1227 = vunpack.c.h.b16 %v361
    %v1228 = vunpack.c.l.b16 %v362
    %v1229 = vunpack.c.h.b16 %v362
    %v1230 = vunpack.c.l.b16 %v363
    %v1231 = vunpack.c.h.b16 %v363
    %v1232 = vunpack.c.l.b16 %v364
    %v1233 = vunpack.c.h.b16 %v364
    %v1234 = vunpack.c.l.b16 %v365
    %v1235 = vunpack.c.h.b16 %v365
    %v1236 = vunpack.c.l.b16 %v366
    %v1237 = vunpack.c.h.b16 %v366
    %v1238 = vunpack.c.l.b16 %v367
    %v1239 = vunpack.c.h.b16 %v367
    %v1240 = vunpack.c.l.b16 %v368
    %v1241 = vunpack.c.h.b16 %v368
    %v1242 = vunpack.c.l.b16 %v369
    %v1243 = vunpack.c.h.b16 %v369
    %v1244 = vunpack.c.l.b16 %v370
    %v1245 = vunpack.c.h.b16 %v370
    %v1246 = vunpack.c.l.b16 %v371
    %v1247 = vunpack.c.h.b16 %v371
    %v1248 = vunpack.c.l.b16 %v372
    %v1249 = vunpack.c.h.b16 %v372
    %v1250 = vunpack.c.l.b16 %v373
    %v1251 = vunpack.c.h.b16 %v373
    %v1252 = vunpack.c.l.b16 %v374
    %v1253 = vunpack.c.h.b16 %v374
    %v1254 = vunpack.c.l.b16 %v375
    %v1255 = vunpack.c.h.b16 %v375
    %v1256 = vunpack.c.l.b16 %v376
    %v1257 = vunpack.c.h.b16 %v376
    %v1258 = vunpack.c.l.b16 %v377
    %v1259 = vunpack.c.h.b16 %v377
    %v1260 = vunpack.c.l.b16 %v378
    %v1261 = vunpack.c.h.b16 %v378
    %v1262 = vunpack.c.l.b16 %v379
    %v1263 = vunpack.c.h.b16 %v379
    %v1264 = vunpack.c.l.b16 %v380
    %v1265 = vunpack.c.h.b16 %v380
    %v1266 = vunpack.c.l.b16 %v381
    %v1267 = vunpack.c.h.b16 %v381
    %v1268 = vunpack.c.l.b16 %v382
    %v1269 = vunpack.c.h.b16 %v382
    %v1270 = vunpack.c.l.b16 %v383
    %v1271 = vunpack.c.h.b16 %v383
    %v1272 = vunpack.c.l.b16 %v384
    %v1273 = vunpack.c.h.b16 %v384
    %v1274 = vunpack.c.l.b16 %v385
    %v1275 = vunpack.c.h.b16 %v385
    %v1276 = vunpack.c.l.b16 %v386
    %v1277 = vunpack.c.h.b16 %v386
    %v1278 = vunpack.c.l.b16 %v387
    %v1279 = vunpack.c.h.b16 %v387
    %v1280 = vunpack.c.l.b16 %v388
    %v1281 = vunpack.c.h.b16 %v388
    %v1282 = vunpack.c.l.b16 %v389
    %v1283 = vunpack.c.h.b16 %v389
    %v1284 = vunpack.c.l.b16 %v390
    %v1285 = vunpack.c.h.b16 %v390
    %v1286 = vunpack.c.l.b16 %v391
    %v1287 = vunpack.c.h.b16 %v391
    %v1288 = vunpack.c.l.b16 %v392
    %v1289 = vunpack.c.h.b16 %v392
    %v1290 = vunpack.c.l.b16 %v393
    %v1291 = vunpack.c.h.b16 %v393
    %v1292 = vunpack.c.l.b16 %v394
    %v1293 = vunpack.c.h.b16 %v394
    %v1294 = vunpack.c.l.b16 %v395
    %v1295 = vunpack.c.h.b16 %v395
    %v1296 = vunpack.c.l.b16 %v396
    %v1297 = vunpack.c.h.b16 %v396
    %v1298 = vunpack.c.l.b16 %v397
    %v1299 = vunpack.c.h.b16 %v397
    %v1300 = vunpack.c.l.b16 %v398
    %v1301 = vunpack.c.h.b16 %v398
    %v1302 = vunpack.c.l.b16 %v399
    %v1303 = vunpack.c.h.b16 %v399
    %v1304 = vunpack.c.l.b16 %v400
    %v1305 = vunpack.c.h.b16 %v400
    %v1306 = vunpack.c.l.b16 %v401
    %v1307 = vunpack.c.h.b16 %v401
    %v1308 = vunpack.c.l.b16 %v402
    %v1309 = vunpack.c.h.b16 %v402
    %v1310 = vunpack.c.l.b16 %v403
    %v1311 = vunpack.c.h.b16 %v403
    %v1312 = vunpack.c.l.b16 %v404
    %v1313 = vunpack.c.h.b16 %v404
    %v1314 = vunpack.c.l.b16 %v405
    %v1315 = vunpack.c.h.b16 %v405
    %v1316 = vunpack.c.l.b16 %v406
    %v1317 = vunpack.c.h.b16 %v406
    %v1318 = vunpack.c.l.b16 %v407
    %v1319 = vunpack.c.h.b16 %v407
    %v1320 = vunpack.c.l.b16 %v408
    %v1321 = vunpack.c.h.b16 %v408
    %v1322 = vunpack.c.l.b16 %v409
    %v1323 = vunpack.c.h.b16 %v409
    %v1324 = vunpack.c.l.b16 %v410
    %v1325 = vunpack.c.h.b16 %v410
    %v1326 = vunpack.c.l.b16 %v411
    %v1327 = vunpack.c.h.b16 %v411
    %v1328 = vunpack.c.l.b16 %v412
    %v1329 = vunpack.c.h.b16 %v412
    %v1330 = vunpack.c.l.b16 %v413
    %v1331 = vunpack.c.h.b16 %v413
    %v1332 = vunpack.c.l.b16 %v414
    %v1333 = vunpack.c.h.b16 %v414
    %v1334 = vunpack.c.l.b16 %v415
    %v1335 = vunpack.c.h.b16 %v415
    %v1336 = vunpack.c.l.b16 %v416
    %v1337 = vunpack.c.h.b16 %v416
    %v1338 = vunpack.c.l.b16 %v417
    %v1339 = vunpack.c.h.b16 %v417
    %v1340 = vunpack.c.l.b16 %v418
    %v1341 = vunpack.c.h.b16 %v418
    %v1342 = vunpack.c.l.b16 %v419
    %v1343 = vunpack.c.h.b16 %v419
    %v1344 = vunpack.c.l.b16 %v420
    %v1345 = vunpack.c.h.b16 %v420
    %v1346 = vunpack.c.l.b16 %v421
    %v1347 = vunpack.c.h.b16 %v421
    %v1348 = vunpack.c.l.b16 %v422
    %v1349 = vunpack.c.h.b16 %v422
    %v1350 = vunpack.c.l.b16 %v423
    %v1351 = vunpack.c.h.b16 %v423
    %v1352 = vunpack.c.l.b16 %v424
    %v1353 = vunpack.c.h.b16 %v424
    %v1354 = vunpack.c.l.b16 %v425
    %v1355 = vunpack.c.h.b16 %v425
    %v1356 = vunpack.c.l.b16 %v426
    %v1357 = vunpack.c.h.b16 %v426
    %v1358 = vunpack.c.l.b16 %v427
    %v1359 = vunpack.c.h.b16 %v427
    %v1360 = vunpack.c.l.b16 %v428
    %v1361 = vunpack.c.h.b16 %v428
    %v1362 = vunpack.c.l.b16 %v429
    %v1363 = vunpack.c.h.b16 %v429
    %v1364 = vunpack.c.l.b16 %v430
    %v1365 = vunpack.c.h.b16 %v430
    %v1366 = vunpack.c.l.b16 %v431
    %v1367 = vunpack.c.h.b16 %v431
    %v1368 = vunpack.c.l.b16 %v432
    %v1369 = vunpack.c.h.b16 %v432
    %v1370 = vunpack.c.l.b16 %v433
    %v1371 = vunpack.c.h.b16 %v433
    %v1372 = vunpack.c.l.b16 %v434
    %v1373 = vunpack.c.h.b16 %v434
    %v1374 = vunpack.c.l.b16 %v435
    %v1375 = vunpack.c.h.b16 %v435
    %v1376 = vunpack.c.l.b16 %v436
    %v1377 = vunpack.c.h.b16 %v436
    %v1378 = vunpack.c.l.b16 %v437
    %v1379 = vunpack.c.h.b16 %v437
    %v1380 = vunpack.c.l.b16 %v438
    %v1381 = vunpack.c.h.b16 %v438
    %v1382 = vunpack.c.l.b16 %v439
    %v1383 = vunpack.c.h.b16 %v439
    %v1384 = vunpack.c.l.b16 %v440
    %v1385 = vunpack.c.h.b16 %v440
    %v1386 = vunpack.c.l.b16 %v441
    %v1387 = vunpack.c.h.b16 %v441
    %v1388 = vunpack.c.l.b16 %v442
    %v1389 = vunpack.c.h.b16 %v442
    %v1390 = vunpack.c.l.b16 %v443
    %v1391 = vunpack.c.h.b16 %v443
    %v1392 = vunpack.c.l.b16 %v444
    %v1393 = vunpack.c.h.b16 %v444
    %v1394 = vunpack.c.l.b16 %v445
    %v1395 = vunpack.c.h.b16 %v445
    %v1396 = vunpack.c.l.b16 %v446
    %v1397 = vunpack.c.h.b16 %v446
    %v1398 = vunpack.c.l.b16 %v447
    %v1399 = vunpack.c.h.b16 %v447
    %v1400 = vunpack.c.l.b16 %v448
    %v1401 = vunpack.c.h.b16 %v448
    %v1402 = vunpack.c.l.b16 %v449
    %v1403 = vunpack.c.h.b16 %v449
    %v1404 = vunpack.c.l.b16 %v450
    %v1405 = vunpack.c.h.b16 %v450
    %v1406 = vunpack.c.l.b16 %v451
    %v1407 = vunpack.c.h.b16 %v451
    %v1408 = vunpack.c.l.b16 %v452
    %v1409 = vunpack.c.h.b16 %v452
    %v1410 = vunpack.c.l.b16 %v453
    %v1411 = vunpack.c.h.b16 %v453
    %v1412 = vunpack.c.l.b16 %v454
    %v1413 = vunpack.c.h.b16 %v454
    %v1414 = vunpack.c.l.b16 %v455
    %v1415 = vunpack.c.h.b16 %v455
    %v1416 = vunpack.c.l.b16 %v456
    %v1417 = vunpack.c.h.b16 %v456
    %v1418 = vunpack.c.l.b16 %v457
    %v1419 = vunpack.c.h.b16 %v457
    %v1420 = vunpack.c.l.b16 %v458
    %v1421 = vunpack.c.h.b16 %v458
    %v1422 = vunpack.c.l.b16 %v459
    %v1423 = vunpack.c.h.b16 %v459
    %v1424 = vunpack.c.l.b16 %v460
    %v1425 = vunpack.c.h.b16 %v460
    %v1426 = vunpack.c.l.b16 %v461
    %v1427 = vunpack.c.h.b16 %v461
    %v1428 = vunpack.c.l.b16 %v462
    %v1429 = vunpack.c.h.b16 %v462
    %v1430 = vunpack.c.l.b16 %v463
    %v1431 = vunpack.c.h.b16 %v463
    %v1432 = vunpack.c.l.b16 %v464
    %v1433 = vunpack.c.h.b16 %v464
    %v1434 = vunpack.c.l.b16 %v465
    %v1435 = vunpack.c.h.b16 %v465
    %v1436 = vunpack.c.l.b16 %v466
    %v1437 = vunpack.c.h.b16 %v466
    %v1438 = vunpack.c.l.b16 %v467
    %v1439 = vunpack.c.h.b16 %v467
    %v1440 = vunpack.c.l.b16 %v468
    %v1441 = vunpack.c.h.b16 %v468
    %v1442 = vunpack.c.l.b16 %v469
    %v1443 = vunpack.c.h.b16 %v469
    %v1444 = vunpack.c.l.b16 %v470
    %v1445 = vunpack.c.h.b16 %v470
    %v1446 = vunpack.c.l.b16 %v471
    %v1447 = vunpack.c.h.b16 %v471
    %v1448 = vunpack.c.l.b16 %v472
    %v1449 = vunpack.c.h.b16 %v472
    %v1450 = vunpack.c.l.b16 %v473
    %v1451 = vunpack.c.h.b16 %v473
    %v1452 = vunpack.c.l.b16 %v474
    %v1453 = vunpack.c.h.b16 %v474
    %v1454 = vunpack.c.l.b16 %v475
    %v1455 = vunpack.c.h.b16 %v475
    %v1456 = vunpack.c.l.b16 %v476
    %v1457 = vunpack.c.h.b16 %v476
    %v1458 = vunpack.c.l.b16 %v477
    %v1459 = vunpack.c.h.b16 %v477
    %v1460 = vunpack.c.l.b16 %v478
    %v1461 = vunpack.c.h.b16 %v478
    %v1462 = vunpack.c.l.b16 %v479
    %v1463 = vunpack.c.h.b16 %v479
    %v1464 = vunpack.c.l.b16 %v480
    %v1465 = vunpack.c.h.b16 %v480
    %v1466 = vunpack.c.l.b16 %v481
    %v1467 = vunpack.c.h.b16 %v481
    %v1468 = vunpack.c.l.b16 %v482
    %v1469 = vunpack.c.h.b16 %v482
    %v1470 = vunpack.c.l.b16 %v483
    %v1471 = vunpack.c.h.b16 %v483
    %v1472 = vunpack.c.l.b16 %v484
    %v1473 = vunpack.c.h.b16 %v484
    %v1474 = vunpack.c.l.b16 %v485
    %v1475 = vunpack.c.h.b16 %v485
    %v1476 = vunpack.c.l.b16 %v486
    %v1477 = vunpack.c.h.b16 %v486
    %v1478 = vunpack.c.l.b16 %v487
    %v1479 = vunpack.c.h.b16 %v487
    %v1480 = vunpack.c.l.b16 %v488
    %v1481 = vunpack.c.h.b16 %v488
    %v1482 = vunpack.c.l.b16 %v489
    %v1483 = vunpack.c.h.b16 %v489
    %v1484 = vunpack.c.l.b16 %v490
    %v1485 = vunpack.c.h.b16 %v490
    %v1486 = vunpack.c.l.b16 %v491
    %v1487 = vunpack.c.h.b16 %v491
    %v1488 = vunpack.c.l.b16 %v492
    %v1489 = vunpack.c.h.b16 %v492
    %v1490 = vunpack.c.l.b16 %v493
    %v1491 = vunpack.c.h.b16 %v493
    %v1492 = vunpack.c.l.b16 %v494
    %v1493 = vunpack.c.h.b16 %v494
    %v1494 = vunpack.c.l.b16 %v495
    %v1495 = vunpack.c.h.b16 %v495
    %v1496 = vunpack.c.l.b16 %v496
    %v1497 = vunpack.c.h.b16 %v496
    %v1498 = vunpack.c.l.b16 %v497
    %v1499 = vunpack.c.h.b16 %v497
    %v1500 = vunpack.c.l.b16 %v498
    %v1501 = vunpack.c.h.b16 %v498
    %v1502 = vunpack.c.l.b16 %v499
    %v1503 = vunpack.c.h.b16 %v499
    %v1504 = vunpack.c.l.b16 %v500
    %v1505 = vunpack.c.h.b16 %v500
    %v1506 = vunpack.c.l.b16 %v501
    %v1507 = vunpack.c.h.b16 %v501
    %v1508 = vunpack.c.l.b16 %v502
    %v1509 = vunpack.c.h.b16 %v502
    %v1510 = vunpack.c.l.b16 %v503
    %v1511 = vunpack.c.h.b16 %v503
    %v1512 = vunpack.c.l.b16 %v504
    %v1513 = vunpack.c.h.b16 %v504
    %v1514 = vunpack.c.l.b16 %v505
    %v1515 = vunpack.c.h.b16 %v505
    %v1516 = vunpack.c.l.b16 %v506
    %v1517 = vunpack.c.h.b16 %v506
    %v1518 = vunpack.c.l.b16 %v507
    %v1519 = vunpack.c.h.b16 %v507
    %v1520 = vunpack.c.l.b16 %v508
    %v1521 = vunpack.c.h.b16 %v508
    %v1522 = vunpack.c.l.b16 %v509
    %v1523 = vunpack.c.h.b16 %v509
    %v1524 = vunpack.c.l.b16 %v510
    %v1525 = vunpack.c.h.b16 %v510
    %v1526 = vunpack.c.l.b16 %v511
    %v1527 = vunpack.c.h.b16 %v511
    %v1528 = vunpack.c.l.b16 %v512
    %v1529 = vunpack.c.h.b16 %v512
    %v1530 = vunpack.c.l.b16 %v513
    %v1531 = vunpack.c.h.b16 %v513
    %v1532 = vunpack.c.l.b16 %v514
    %v1533 = vunpack.c.h.b16 %v514
    %v1534 = vunpack.c.l.b16 %v515
    %v1535 = vunpack.c.h.b16 %v515
    %v1536 = vunpack.c.l.b16 %v516
    %v1537 = vunpack.c.h.b16 %v516
    %v1538 = vunpack.c.l.b16 %v517
    %v1539 = vunpack.c.h.b16 %v517
    %v1540 = vunpack.c.l.b16 %v518
    %v1541 = vunpack.c.h.b16 %v518
    %v1542 = vunpack.c.l.b16 %v519
    %v1543 = vunpack.c.h.b16 %v519
    %v1544 = vunpack.c.l.b16 %v520
    %v1545 = vunpack.c.h.b16 %v520
    %v1546 = vunpack.c.l.b16 %v521
    %v1547 = vunpack.c.h.b16 %v521
    %v1548 = vunpack.c.l.b16 %v522
    %v1549 = vunpack.c.h.b16 %v522
    %v1550 = vunpack.c.l.b16 %v523
    %v1551 = vunpack.c.h.b16 %v523
    %v1552 = vunpack.c.l.b16 %v524
    %v1553 = vunpack.c.h.b16 %v524
    %v1554 = vunpack.c.l.b16 %v525
    %v1555 = vunpack.c.h.b16 %v525
    %v1556 = vunpack.c.l.b16 %v526
    %v1557 = vunpack.c.h.b16 %v526
    %v1558 = vunpack.c.l.b16 %v527
    %v1559 = vunpack.c.h.b16 %v527
    %v1560 = vunpack.c.l.b16 %v528
    %v1561 = vunpack.c.h.b16 %v528
    %v1562 = vunpack.c.l.b16 %v529
    %v1563 = vunpack.c.h.b16 %v529
    %v1564 = vunpack.c.l.b16 %v530
    %v1565 = vunpack.c.h.b16 %v530
    %v1566 = vunpack.c.l.b16 %v531
    %v1567 = vunpack.c.h.b16 %v531
    %v1568 = vunpack.c.l.b16 %v532
    %v1569 = vunpack.c.h.b16 %v532
    %v1570 = vunpack.c.l.b16 %v533
    %v1571 = vunpack.c.h.b16 %v533
    %v1572 = vunpack.c.l.b16 %v534
    %v1573 = vunpack.c.h.b16 %v534
    %v1574 = vunpack.c.l.b16 %v535
    %v1575 = vunpack.c.h.b16 %v535
    %v1576 = vunpack.c.l.b16 %v536
    %v1577 = vunpack.c.h.b16 %v536
    %v1578 = vunpack.c.l.b16 %v537
    %v1579 = vunpack.c.h.b16 %v537
    %v1580 = vunpack.c.l.b16 %v538
    %v1581 = vunpack.c.h.b16 %v538
    %v1582 = vunpack.c.l.b16 %v539
    %v1583 = vunpack.c.h.b16 %v539
    %v1584 = vunpack.c.l.b16 %v540
    %v1585 = vunpack.c.h.b16 %v540
    %v1586 = vunpack.c.l.b16 %v541
    %v1587 = vunpack.c.h.b16 %v541
    %v1588 = vunpack.c.l.b16 %v542
    %v1589 = vunpack.c.h.b16 %v542
    %v1590 = vunpack.c.l.b16 %v543
    %v1591 = vunpack.c.h.b16 %v543
    %v1592 = vunpack.c.l.b16 %v544
    %v1593 = vunpack.c.h.b16 %v544
    %v1594 = vunpack.c.l.b16 %v545
    %v1595 = vunpack.c.h.b16 %v545
    %v1596 = vunpack.c.l.b16 %v546
    %v1597 = vunpack.c.h.b16 %v546
    %v1598 = vunpack.c.l.b16 %v547
    %v1599 = vunpack.c.h.b16 %v547
    %v1600 = vunpack.c.l.b16 %v548
    %v1601 = vunpack.c.h.b16 %v548
    %v1602 = vunpack.c.l.b16 %v549
    %v1603 = vunpack.c.h.b16 %v549
    %v1604 = vunpack.c.l.b16 %v550
    %v1605 = vunpack.c.h.b16 %v550
    %v1606 = vunpack.c.l.b16 %v551
    %v1607 = vunpack.c.h.b16 %v551
    %v1608 = vpack.c.b16 %v908, %v904
    %v1609 = vpack.c.b16 %v909, %v905
    %v1610 = vpack.c.b16 %v910, %v906
    %v1611 = vpack.c.b16 %v911, %v907
    %v1612 = vpack.c.b16 %v916, %v912
    %v1613 = vpack.c.b16 %v917, %v913
    %v1614 = vpack.c.b16 %v918, %v914
    %v1615 = vpack.c.b16 %v919, %v915
    %v1616 = vpack.c.b16 %v924, %v920
    %v1617 = vpack.c.b16 %v925, %v921
    %v1618 = vpack.c.b16 %v926, %v922
    %v1619 = vpack.c.b16 %v927, %v923
    %v1620 = vpack.c.b16 %v932, %v928
    %v1621 = vpack.c.b16 %v933, %v929
    %v1622 = vpack.c.b16 %v934, %v930
    %v1623 = vpack.c.b16 %v935, %v931
    %v1624 = vpack.c.b16 %v940, %v936
    %v1625 = vpack.c.b16 %v941, %v937
    %v1626 = vpack.c.b16 %v942, %v938
    %v1627 = vpack.c.b16 %v943, %v939
    %v1628 = vpack.c.b16 %v948, %v944
    %v1629 = vpack.c.b16 %v949, %v945
    %v1630 = vpack.c.b16 %v950, %v946
    %v1631 = vpack.c.b16 %v951, %v947
    %v1632 = vpack.c.b16 %v956, %v952
    %v1633 = vpack.c.b16 %v957, %v953
    %v1634 = vpack.c.b16 %v958, %v954
    %v1635 = vpack.c.b16 %v959, %v955
    %v1636 = vpack.c.b16 %v964, %v960
    %v1637 = vpack.c.b16 %v965, %v961
    %v1638 = vpack.c.b16 %v966, %v962
    %v1639 = vpack.c.b16 %v967, %v963
    %v1640 = vpack.c.b16 %v972, %v968
    %v1641 = vpack.c.b16 %v973, %v969
    %v1642 = vpack.c.b16 %v974, %v970
    %v1643 = vpack.c.b16 %v975, %v971
    %v1644 = vpack.c.b16 %v980, %v976
    %v1645 = vpack.c.b16 %v981, %v977
    %v1646 = vpack.c.b16 %v982, %v978
    %v1647 = vpack.c.b16 %v983, %v979
    %v1648 = vpack.c.b16 %v988, %v984
    %v1649 = vpack.c.b16 %v989, %v985
    %v1650 = vpack.c.b16 %v990, %v986
    %v1651 = vpack.c.b16 %v991, %v987
    %v1652 = vpack.c.b16 %v996, %v992
    %v1653 = vpack.c.b16 %v997, %v993
    %v1654 = vpack.c.b16 %v998, %v994
    %v1655 = vpack.c.b16 %v999, %v995
    %v1656 = vpack.c.b16 %v1004, %v1000
    %v1657 = vpack.c.b16 %v1005, %v1001
    %v1658 = vpack.c.b16 %v1006, %v1002
    %v1659 = vpack.c.b16 %v1007, %v1003
    %v1660 = vpack.c.b16 %v1012, %v1008
    %v1661 = vpack.c.b16 %v1013, %v1009
    %v1662 = vpack.c.b16 %v1014, %v1010
    %v1663 = vpack.c.b16 %v1015, %v1011
    %v1664 = vpack.c.b16 %v1020, %v1016
    %v1665 = vpack.c.b16 %v1021, %v1017
    %v1666 = vpack.c.b16 %v1022, %v1018
    %v1667 = vpack.c.b16 %v1023, %v1019
    %v1668 = vpack.c.b16 %v1028, %v1024
    %v1669 = vpack.c.b16 %v1029, %v1025
    %v1670 = vpack.c.b16 %v1030, %v1026
    %v1671 = vpack.c.b16 %v1031, %v1027
    %v1672 = vpack.c.b16 %v1036, %v1032
    %v1673 = vpack.c.b16 %v1037, %v1033
    %v1674 = vpack.c.b16 %v1038, %v1034
    %v1675 = vpack.c.b16 %v1039, %v1035
    %v1676 = vpack.c.b16 %v1044, %v1040
    %v1677 = vpack.c.b16 %v1045, %v1041
    %v1678 = vpack.c.b16 %v1046, %v1042
    %v1679 = vpack.c.b16 %v1047, %v1043
    %v1680 = vpack.c.b16 %v1052, %v1048
    %v1681 = vpack.c.b16 %v1053, %v1049
    %v1682 = vpack.c.b16 %v1054, %v1050
    %v1683 = vpack.c.b16 %v1055, %v1051
    %v1684 = vpack.c.b16 %v1060, %v1056
    %v1685 = vpack.c.b16 %v1061, %v1057
    %v1686 = vpack.c.b16 %v1062, %v1058
    %v1687 = vpack.c.b16 %v1063, %v1059
    %v1688 = vpack.c.b16 %v1068, %v1064
    %v1689 = vpack.c.b16 %v1069, %v1065
    %v1690 = vpack.c.b16 %v1070, %v1066
    %v1691 = vpack.c.b16 %v1071, %v1067
    %v1692 = vpack.c.b16 %v1076, %v1072
    %v1693 = vpack.c.b16 %v1077, %v1073
    %v1694 = vpack.c.b16 %v1078, %v1074
    %v1695 = vpack.c.b16 %v1079, %v1075
    %v1696 = vpack.c.b16 %v1084, %v1080
    %v1697 = vpack.c.b16 %v1085, %v1081
    %v1698 = vpack.c.b16 %v1086, %v1082
    %v1699 = vpack.c.b16 %v1087, %v1083
    %v1700 = vpack.c.b16 %v1092, %v1088
    %v1701 = vpack.c.b16 %v1093, %v1089
    %v1702 = vpack.c.b16 %v1094, %v1090
    %v1703 = vpack.c.b16 %v1095, %v1091
    %v1704 = vpack.c.b16 %v1100, %v1096
    %v1705 = vpack.c.b16 %v1101, %v1097
    %v1706 = vpack.c.b16 %v1102, %v1098
    %v1707 = vpack.c.b16 %v1103, %v1099
    %v1708 = vpack.c.b16 %v1108, %v1104
    %v1709 = vpack.c.b16 %v1109, %v1105
    %v1710 = vpack.c.b16 %v1110, %v1106
    %v1711 = vpack.c.b16 %v1111, %v1107
    %v1712 = vpack.c.b16 %v1116, %v1112
    %v1713 = vpack.c.b16 %v1117, %v1113
    %v1714 = vpack.c.b16 %v1118, %v1114
    %v1715 = vpack.c.b16 %v1119, %v1115
    %v1716 = vpack.c.b16 %v1124, %v1120
    %v1717 = vpack.c.b16 %v1125, %v1121
    %v1718 = vpack.c.b16 %v1126, %v1122
    %v1719 = vpack.c.b16 %v1127, %v1123
    %v1720 = vpack.c.b16 %v1132, %v1128
    %v1721 = vpack.c.b16 %v1133, %v1129
    %v1722 = vpack.c.b16 %v1134, %v1130
    %v1723 = vpack.c.b16 %v1135, %v1131
    %v1724 = vpack.c.b16 %v1140, %v1136
    %v1725 = vpack.c.b16 %v1141, %v1137
    %v1726 = vpack.c.b16 %v1142, %v1138
    %v1727 = vpack.c.b16 %v1143, %v1139
    %v1728 = vpack.c.b16 %v1148, %v1144
    %v1729 = vpack.c.b16 %v1149, %v1145
    %v1730 = vpack.c.b16 %v1150, %v1146
    %v1731 = vpack.c.b16 %v1151, %v1147
    %v1732 = vpack.c.b16 %v1156, %v1152
    %v1733 = vpack.c.b16 %v1157, %v1153
    %v1734 = vpack.c.b16 %v1158, %v1154
    %v1735 = vpack.c.b16 %v1159, %v1155
    %v1736 = vpack.c.b16 %v1164, %v1160
    %v1737 = vpack.c.b16 %v1165, %v1161
    %v1738 = vpack.c.b16 %v1166, %v1162
    %v1739 = vpack.c.b16 %v1167, %v1163
    %v1740 = vpack.c.b16 %v1172, %v1168
    %v1741 = vpack.c.b16 %v1173, %v1169
    %v1742 = vpack.c.b16 %v1174, %v1170
    %v1743 = vpack.c.b16 %v1175, %v1171
    %v1744 = vpack.c.b16 %v1180, %v1176
    %v1745 = vpack.c.b16 %v1181, %v1177
    %v1746 = vpack.c.b16 %v1182, %v1178
    %v1747 = vpack.c.b16 %v1183, %v1179
    %v1748 = vpack.c.b16 %v1188, %v1184
    %v1749 = vpack.c.b16 %v1189, %v1185
    %v1750 = vpack.c.b16 %v1190, %v1186
    %v1751 = vpack.c.b16 %v1191, %v1187
    %v1752 = vpack.c.b16 %v1196, %v1192
    %v1753 = vpack.c.b16 %v1197, %v1193
    %v1754 = vpack.c.b16 %v1198, %v1194
    %v1755 = vpack.c.b16 %v1199, %v1195
    %v1756 = vpack.c.b16 %v1204, %v1200
    %v1757 = vpack.c.b16 %v1205, %v1201
    %v1758 = vpack.c.b16 %v1206, %v1202
    %v1759 = vpack.c.b16 %v1207, %v1203
    %v1760 = vpack.c.b16 %v1212, %v1208
    %v1761 = vpack.c.b16 %v1213, %v1209
    %v1762 = vpack.c.b16 %v1214, %v1210
    %v1763 = vpack.c.b16 %v1215, %v1211
    %v1764 = vpack.c.b16 %v1220, %v1216
    %v1765 = vpack.c.b16 %v1221, %v1217
    %v1766 = vpack.c.b16 %v1222, %v1218
    %v1767 = vpack.c.b16 %v1223, %v1219
    %v1768 = vpack.c.b16 %v1228, %v1224
    %v1769 = vpack.c.b16 %v1229, %v1225
    %v1770 = vpack.c.b16 %v1230, %v1226
    %v1771 = vpack.c.b16 %v1231, %v1227
    %v1772 = vpack.c.b16 %v1236, %v1232
    %v1773 = vpack.c.b16 %v1237, %v1233
    %v1774 = vpack.c.b16 %v1238, %v1234
    %v1775 = vpack.c.b16 %v1239, %v1235
    %v1776 = vpack.c.b16 %v1244, %v1240
    %v1777 = vpack.c.b16 %v1245, %v1241
    %v1778 = vpack.c.b16 %v1246, %v1242
    %v1779 = vpack.c.b16 %v1247, %v1243
    %v1780 = vpack.c.b16 %v1252, %v1248
    %v1781 = vpack.c.b16 %v1253, %v1249
    %v1782 = vpack.c.b16 %v1254, %v1250
    %v1783 = vpack.c.b16 %v1255, %v1251
    %v1784 = vpack.c.b16 %v1260, %v1256
    %v1785 = vpack.c.b16 %v1261, %v1257
    %v1786 = vpack.c.b16 %v1262, %v1258
    %v1787 = vpack.c.b16 %v1263, %v1259
    %v1788 = vpack.c.b16 %v1268, %v1264
    %v1789 = vpack.c.b16 %v1269, %v1265
    %v1790 = vpack.c.b16 %v1270, %v1266
    %v1791 = vpack.c.b16 %v1271, %v1267
    %v1792 = vpack.c.b16 %v1276, %v1272
    %v1793 = vpack.c.b16 %v1277, %v1273
    %v1794 = vpack.c.b16 %v1278, %v1274
    %v1795 = vpack.c.b16 %v1279, %v1275
    %v1796 = vpack.c.b16 %v1284, %v1280
    %v1797 = vpack.c.b16 %v1285, %v1281
    %v1798 = vpack.c.b16 %v1286, %v1282
    %v1799 = vpack.c.b16 %v1287, %v1283
    %v1800 = vpack.c.b16 %v1292, %v1288
    %v1801 = vpack.c.b16 %v1293, %v1289
    %v1802 = vpack.c.b16 %v1294, %v1290
    %v1803 = vpack.c.b16 %v1295, %v1291
    %v1804 = vpack.c.b16 %v1300, %v1296
    %v1805 = vpack.c.b16 %v1301, %v1297
    %v1806 = vpack.c.b16 %v1302, %v1298
    %v1807 = vpack.c.b16 %v1303, %v1299
    %v1808 = vpack.c.b16 %v1308, %v1304
    %v1809 = vpack.c.b16 %v1309, %v1305
    %v1810 = vpack.c.b16 %v1310, %v1306
    %v1811 = vpack.c.b16 %v1311, %v1307
    %v1812 = vpack.c.b16 %v1316, %v1312
    %v1813 = vpack.c.b16 %v1317, %v1313
    %v1814 = vpack.c.b16 %v1318, %v1314
    %v1815 = vpack.c.b16 %v1319, %v1315
    %v1816 = vpack.c.b16 %v1324, %v1320
    %v1817 = vpack.c.b16 %v1325, %v1321
    %v1818 = vpack.c.b16 %v1326, %v1322
    %v1819 = vpack.c.b16 %v1327, %v1323
    %v1820 = vpack.c.b16 %v1332, %v1328
    %v1821 = vpack.c.b16 %v1333, %v1329
    %v1822 = vpack.c.b16 %v1334, %v1330
    %v1823 = vpack.c.b16 %v1335, %v1331
    %v1824 = vpack.c.b16 %v1340, %v1336
    %v1825 = vpack.c.b16 %v1341, %v1337
    %v1826 = vpack.c.b16 %v1342, %v1338
    %v1827 = vpack.c.b16 %v1343, %v1339
    %v1828 = vpack.c.b16 %v1348, %v1344
    %v1829 = vpack.c.b16 %v1349, %v1345
    %v1830 = vpack.c.b16 %v1350, %v1346
    %v1831 = vpack.c.b16 %v1351, %v1347
    %v1832 = vpack.c.b16 %v1356, %v1352
    %v1833 = vpack.c.b16 %v1357, %v1353
    %v1834 = vpack.c.b16 %v1358, %v1354
    %v1835 = vpack.c.b16 %v1359, %v1355
    %v1836 = vpack.c.b16 %v1364, %v1360
    %v1837 = vpack.c.b16 %v1365, %v1361
    %v1838 = vpack.c.b16 %v1366, %v1362
    %v1839 = vpack.c.b16 %v1367, %v1363
    %v1840 = vpack.c.b16 %v1372, %v1368
    %v1841 = vpack.c.b16 %v1373, %v1369
    %v1842 = vpack.c.b16 %v1374, %v1370
    %v1843 = vpack.c.b16 %v1375, %v1371
    %v1844 = vpack.c.b16 %v1380, %v1376
    %v1845 = vpack.c.b16 %v1381, %v1377
    %v1846 = vpack.c.b16 %v1382, %v1378
    %v1847 = vpack.c.b16 %v1383, %v1379
    %v1848 = vpack.c.b16 %v1388, %v1384
    %v1849 = vpack.c.b16 %v1389, %v1385
    %v1850 = vpack.c.b16 %v1390, %v1386
    %v1851 = vpack.c.b16 %v1391, %v1387
    %v1852 = vpack.c.b16 %v1396, %v1392
    %v1853 = vpack.c.b16 %v1397, %v1393
    %v1854 = vpack.c.b16 %v1398, %v1394
    %v1855 = vpack.c.b16 %v1399, %v1395
    %v1856 = vpack.c.b16 %v1404, %v1400
    %v1857 = vpack.c.b16 %v1405, %v1401
    %v1858 = vpack.c.b16 %v1406, %v1402
    %v1859 = vpack.c.b16 %v1407, %v1403
    %v1860 = vpack.c.b16 %v1412, %v1408
    %v1861 = vpack.c.b16 %v1413, %v1409
    %v1862 = vpack.c.b16 %v1414, %v1410
    %v1863 = vpack.c.b16 %v1415, %v1411
    %v1864 = vpack.c.b16 %v1420, %v1416
    %v1865 = vpack.c.b16 %v1421, %v1417
    %v1866 = vpack.c.b16 %v1422, %v1418
    %v1867 = vpack.c.b16 %v1423, %v1419
    %v1868 = vpack.c.b16 %v1428, %v1424
    %v1869 = vpack.c.b16 %v1429, %v1425
    %v1870 = vpack.c.b16 %v1430, %v1426
    %v1871 = vpack.c.b16 %v1431, %v1427
    %v1872 = vpack.c.b16 %v1436, %v1432
    %v1873 = vpack.c.b16 %v1437, %v1433
    %v1874 = vpack.c.b16 %v1438, %v1434
    %v1875 = vpack.c.b16 %v1439, %v1435
    %v1876 = vpack.c.b16 %v1444, %v1440
    %v1877 = vpack.c.b16 %v1445, %v1441
    %v1878 = vpack.c.b16 %v1446, %v1442
    %v1879 = vpack.c.b16 %v1447, %v1443
    %v1880 = vpack.c.b16 %v1452, %v1448
    %v1881 = vpack.c.b16 %v1453, %v1449
    %v1882 = vpack.c.b16 %v1454, %v1450
    %v1883 = vpack.c.b16 %v1455, %v1451
    %v1884 = vpack.c.b16 %v1460, %v1456
    %v1885 = vpack.c.b16 %v1461, %v1457
    %v1886 = vpack.c.b16 %v1462, %v1458
    %v1887 = vpack.c.b16 %v1463, %v1459
    %v1888 = vpack.c.b16 %v1468, %v1464
    %v1889 = vpack.c.b16 %v1469, %v1465
    %v1890 = vpack.c.b16 %v1470, %v1466
    %v1891 = vpack.c.b16 %v1471, %v1467
    %v1892 = vpack.c.b16 %v1476, %v1472
    %v1893 = vpack.c.b16 %v1477, %v1473
    %v1894 = vpack.c.b16 %v1478, %v1474
    %v1895 = vpack.c.b16 %v1479, %v1475
    %v1896 = vpack.c.b16 %v1484, %v1480
    %v1897 = vpack.c.b16 %v1485, %v1481
    %v1898 = vpack.c.b16 %v1486, %v1482
    %v1899 = vpack.c.b16 %v1487, %v1483
    %v1900 = vpack.c.b16 %v1492, %v1488
    %v1901 = vpack.c.b16 %v1493, %v1489
    %v1902 = vpack.c.b16 %v1494, %v1490
    %v1903 = vpack.c.b16 %v1495, %v1491
    %v1904 = vpack.c.b16 %v1500, %v1496
    %v1905 = vpack.c.b16 %v1501, %v1497
    %v1906 = vpack.c.b16 %v1502, %v1498
    %v1907 = vpack.c.b16 %v1503, %v1499
    %v1908 = vpack.c.b16 %v1508, %v1504
    %v1909 = vpack.c.b16 %v1509, %v1505
    %v1910 = vpack.c.b16 %v1510, %v1506
    %v1911 = vpack.c.b16 %v1511, %v1507
    %v1912 = vpack.c.b16 %v1516, %v1512
    %v1913 = vpack.c.b16 %v1517, %v1513
    %v1914 = vpack.c.b16 %v1518, %v1514
    %v1915 = vpack.c.b16 %v1519, %v1515
    %v1916 = vpack.c.b16 %v1524, %v1520
    %v1917 = vpack.c.b16 %v1525, %v1521
    %v1918 = vpack.c.b16 %v1526, %v1522
    %v1919 = vpack.c.b16 %v1527, %v1523
    %v1920 = vpack.c.b16 %v1532, %v1528
    %v1921 = vpack.c.b16 %v1533, %v1529
    %v1922 = vpack.c.b16 %v1534, %v1530
    %v1923 = vpack.c.b16 %v1535, %v1531
    %v1924 = vpack.c.b16 %v1540, %v1536
    %v1925 = vpack.c.b16 %v1541, %v1537
    %v1926 = vpack.c.b16 %v1542, %v1538
    %v1927 = vpack.c.b16 %v1543, %v1539
    %v1928 = vpack.c.b16 %v1548, %v1544
    %v1929 = vpack.c.b16 %v1549, %v1545
    %v1930 = vpack.c.b16 %v1550, %v1546
    %v1931 = vpack.c.b16 %v1551, %v1547
    %v1932 = vpack.c.b16 %v1556, %v1552
    %v1933 = vpack.c.b16 %v1557, %v1553
    %v1934 = vpack.c.b16 %v1558, %v1554
    %v1935 = vpack.c.b16 %v1559, %v1555
    %v1936 = vpack.c.b16 %v1564, %v1560
    %v1937 = vpack.c.b16 %v1565, %v1561
    %v1938 = vpack.c.b16 %v1566, %v1562
    %v1939 = vpack.c.b16 %v1567, %v1563
    %v1940 = vpack.c.b16 %v1572, %v1568
    %v1941 = vpack.c.b16 %v1573, %v1569
    %v1942 = vpack.c.b16 %v1574, %v1570
    %v1943 = vpack.c.b16 %v1575, %v1571
    %v1944 = vpack.c.b16 %v1580, %v1576
    %v1945 = vpack.c.b16 %v1581, %v1577
    %v1946 = vpack.c.b16 %v1582, %v1578
    %v1947 = vpack.c.b16 %v1583, %v1579
    %v1948 = vpack.c.b16 %v1588, %v1584
    %v1949 = vpack.c.b16 %v1589, %v1585
    %v1950 = vpack.c.b16 %v1590, %v1586
    %v1951 = vpack.c.b16 %v1591, %v1587
    %v1952 = vpack.c.b16 %v1596, %v1592
    %v1953 = vpack.c.b16 %v1597, %v1593
    %v1954 = vpack.c.b16 %v1598, %v1594
    %v1955 = vpack.c.b16 %v1599, %v1595
    %v1956 = vpack.c.b16 %v1604, %v1600
    %v1957 = vpack.c.b16 %v1605, %v1601
    %v1958 = vpack.c.b16 %v1606, %v1602
    %v1959 = vpack.c.b16 %v1607, %v1603
    %2312 = vmatprep.subr.bf16.mxu0 %v1609
    %2313 = vmatpush1.bf16.msra.mxu0 %v1608
    %2314 = vmatprep.subr.bf16.mxu0 %v1613
    %2315 = vmatpush1.bf16.msra.mxu0 %v1612
    %2316 = vmatprep.subr.bf16.mxu0 %v1617
    %2317 = vmatpush1.bf16.msra.mxu0 %v1616
    %2318 = vmatprep.subr.bf16.mxu0 %v1621
    %2319 = vmatpush1.bf16.msra.mxu0 %v1620
    %2320 = vmatprep.subr.bf16.mxu0 %v1625
    %2321 = vmatpush1.bf16.msra.mxu0 %v1624
    %2322 = vmatprep.subr.bf16.mxu0 %v1629
    %2323 = vmatpush1.bf16.msra.mxu0 %v1628
    %2324 = vmatprep.subr.bf16.mxu0 %v1633
    %2325 = vmatpush1.bf16.msra.mxu0 %v1632
    %2326 = vmatprep.subr.bf16.mxu0 %v1637
    %2327 = vmatpush1.bf16.msra.mxu0 %v1636
    %2328 = vmatprep.subr.bf16.mxu0 %v1641
    %2329 = vmatpush1.bf16.msra.mxu0 %v1640
    %2330 = vmatprep.subr.bf16.mxu0 %v1645
    %2331 = vmatpush1.bf16.msra.mxu0 %v1644
    %2332 = vmatprep.subr.bf16.mxu0 %v1649
    %2333 = vmatpush1.bf16.msra.mxu0 %v1648
    %2334 = vmatprep.subr.bf16.mxu0 %v1653
    %2335 = vmatpush1.bf16.msra.mxu0 %v1652
    %2336 = vmatprep.subr.bf16.mxu0 %v1657
    %2337 = vmatpush1.bf16.msra.mxu0 %v1656
    %2338 = vmatprep.subr.bf16.mxu0 %v1661
    %2339 = vmatpush1.bf16.msra.mxu0 %v1660
    %2340 = vmatprep.subr.bf16.mxu0 %v1665
    %2341 = vmatpush1.bf16.msra.mxu0 %v1664
    %2342 = vmatprep.subr.bf16.mxu0 %v1669
    %2343 = vmatpush1.bf16.msra.mxu0 %v1668
    %2344 = vmatprep.mubr.bf16.mxu0 %v190
    %2345 = vmatmul.mubr.bf16.gmra.mrb[0].mxu0 %v189
    %v2346 = vpop.f32.mrb[0].mxu0
    %v2347 = vadd.f32 0.0, %v2346
    %v2348 = vpop.f32.mrb[0].mxu0
    %v2349 = vadd.f32 0.0, %v2348
    %v2350 = vpop.f32.mrb[0].mxu0
    %v2351 = vpop.f32.mrb[0].mxu0
    %2352 = vdwg.mxu0
    %2353 = vmatprep.subr.bf16.mxu0 %v1673
    %2354 = vmatpush1.bf16.msra.mxu0 %v1672
    %2355 = vmatprep.subr.bf16.mxu0 %v1677
    %2356 = vmatpush1.bf16.msra.mxu0 %v1676
    %2357 = vmatprep.subr.bf16.mxu0 %v1681
    %2358 = vmatpush1.bf16.msra.mxu0 %v1680
    %2359 = vmatprep.subr.bf16.mxu0 %v1685
    %2360 = vmatpush1.bf16.msra.mxu0 %v1684
    %2361 = vmatprep.subr.bf16.mxu0 %v1689
    %2362 = vmatpush1.bf16.msra.mxu0 %v1688
    %2363 = vmatprep.subr.bf16.mxu0 %v1693
    %2364 = vmatpush1.bf16.msra.mxu0 %v1692
    %2365 = vmatprep.subr.bf16.mxu0 %v1697
    %2366 = vmatpush1.bf16.msra.mxu0 %v1696
    %2367 = vmatprep.subr.bf16.mxu0 %v1701
    %2368 = vmatpush1.bf16.msra.mxu0 %v1700
    %2369 = vmatprep.subr.bf16.mxu0 %v1705
    %2370 = vmatpush1.bf16.msra.mxu0 %v1704
    %2371 = vmatprep.subr.bf16.mxu0 %v1709
    %2372 = vmatpush1.bf16.msra.mxu0 %v1708
    %2373 = vmatprep.subr.bf16.mxu0 %v1713
    %2374 = vmatpush1.bf16.msra.mxu0 %v1712
    %2375 = vmatprep.subr.bf16.mxu0 %v1717
    %2376 = vmatpush1.bf16.msra.mxu0 %v1716
    %2377 = vmatprep.subr.bf16.mxu0 %v1721
    %2378 = vmatpush1.bf16.msra.mxu0 %v1720
    %2379 = vmatprep.subr.bf16.mxu0 %v1725
    %2380 = vmatpush1.bf16.msra.mxu0 %v1724
    %2381 = vmatprep.subr.bf16.mxu0 %v1729
    %2382 = vmatpush1.bf16.msra.mxu0 %v1728
    %2383 = vmatprep.subr.bf16.mxu0 %v1733
    %2384 = vmatpush1.bf16.msra.mxu0 %v1732
    %2385 = vmatprep.mubr.bf16.mxu0 %v192
    %2386 = vmatmul.mubr.bf16.gmra.mrb[0].mxu0 %v191
    %v2387 = vpop.f32.mrb[0].mxu0
    %v2388 = vadd.f32 %v2347, %v2387
    %v2389 = vpop.f32.mrb[0].mxu0
    %v2390 = vadd.f32 %v2349, %v2389
    %v2391 = vpop.f32.mrb[0].mxu0
    %v2392 = vpop.f32.mrb[0].mxu0
    %2393 = vdwg.mxu0
    %2394 = vmatprep.subr.bf16.mxu0 %v1737
    %2395 = vmatpush1.bf16.msra.mxu0 %v1736
    %2396 = vmatprep.subr.bf16.mxu0 %v1741
    %2397 = vmatpush1.bf16.msra.mxu0 %v1740
    %2398 = vmatprep.subr.bf16.mxu0 %v1745
    %2399 = vmatpush1.bf16.msra.mxu0 %v1744
    %2400 = vmatprep.subr.bf16.mxu0 %v1749
    %2401 = vmatpush1.bf16.msra.mxu0 %v1748
    %2402 = vmatprep.subr.bf16.mxu0 %v1753
    %2403 = vmatpush1.bf16.msra.mxu0 %v1752
    %2404 = vmatprep.subr.bf16.mxu0 %v1757
    %2405 = vmatpush1.bf16.msra.mxu0 %v1756
    %2406 = vmatprep.subr.bf16.mxu0 %v1761
    %2407 = vmatpush1.bf16.msra.mxu0 %v1760
    %2408 = vmatprep.subr.bf16.mxu0 %v1765
    %2409 = vmatpush1.bf16.msra.mxu0 %v1764
    %2410 = vmatprep.subr.bf16.mxu0 %v1769
    %2411 = vmatpush1.bf16.msra.mxu0 %v1768
    %2412 = vmatprep.subr.bf16.mxu0 %v1773
    %2413 = vmatpush1.bf16.msra.mxu0 %v1772
    %2414 = vmatprep.subr.bf16.mxu0 %v1777
    %2415 = vmatpush1.bf16.msra.mxu0 %v1776
    %2416 = vmatprep.subr.bf16.mxu0 %v1781
    %2417 = vmatpush1.bf16.msra.mxu0 %v1780
    %2418 = vmatprep.subr.bf16.mxu0 %v1785
    %2419 = vmatpush1.bf16.msra.mxu0 %v1784
    %2420 = vmatprep.subr.bf16.mxu0 %v1789
    %2421 = vmatpush1.bf16.msra.mxu0 %v1788
    %2422 = vmatprep.subr.bf16.mxu0 %v1793
    %2423 = vmatpush1.bf16.msra.mxu0 %v1792
    %2424 = vmatprep.subr.bf16.mxu0 %v1797
    %2425 = vmatpush1.bf16.msra.mxu0 %v1796
    %2426 = vmatprep.mubr.bf16.mxu0 %v194
    %2427 = vmatmul.mubr.bf16.gmra.mrb[0].mxu0 %v193
    %v2428 = vpop.f32.mrb[0].mxu0
    %v2429 = vadd.f32 %v2388, %v2428
    %v2430 = vpop.f32.mrb[0].mxu0
    %v2431 = vadd.f32 %v2390, %v2430
    %v2432 = vpop.f32.mrb[0].mxu0
    %v2433 = vpop.f32.mrb[0].mxu0
    %2434 = vdwg.mxu0
    %2435 = vmatprep.subr.bf16.mxu0 %v1801
    %2436 = vmatpush1.bf16.msra.mxu0 %v1800
    %2437 = vmatprep.subr.bf16.mxu0 %v1805
    %2438 = vmatpush1.bf16.msra.mxu0 %v1804
    %2439 = vmatprep.subr.bf16.mxu0 %v1809
    %2440 = vmatpush1.bf16.msra.mxu0 %v1808
    %2441 = vmatprep.subr.bf16.mxu0 %v1813
    %2442 = vmatpush1.bf16.msra.mxu0 %v1812
    %2443 = vmatprep.subr.bf16.mxu0 %v1817
    %2444 = vmatpush1.bf16.msra.mxu0 %v1816
    %2445 = vmatprep.subr.bf16.mxu0 %v1821
    %2446 = vmatpush1.bf16.msra.mxu0 %v1820
    %2447 = vmatprep.subr.bf16.mxu0 %v1825
    %2448 = vmatpush1.bf16.msra.mxu0 %v1824
    %2449 = vmatprep.subr.bf16.mxu0 %v1829
    %2450 = vmatpush1.bf16.msra.mxu0 %v1828
    %2451 = vmatprep.subr.bf16.mxu0 %v1833
    %2452 = vmatpush1.bf16.msra.mxu0 %v1832
    %2453 = vmatprep.subr.bf16.mxu0 %v1837
    %2454 = vmatpush1.bf16.msra.mxu0 %v1836
    %2455 = vmatprep.subr.bf16.mxu0 %v1841
    %2456 = vmatpush1.bf16.msra.mxu0 %v1840
    %2457 = vmatprep.subr.bf16.mxu0 %v1845
    %2458 = vmatpush1.bf16.msra.mxu0 %v1844
    %2459 = vmatprep.subr.bf16.mxu0 %v1849
    %2460 = vmatpush1.bf16.msra.mxu0 %v1848
    %2461 = vmatprep.subr.bf16.mxu0 %v1853
    %2462 = vmatpush1.bf16.msra.mxu0 %v1852
    %2463 = vmatprep.subr.bf16.mxu0 %v1857
    %2464 = vmatpush1.bf16.msra.mxu0 %v1856
    %2465 = vmatprep.subr.bf16.mxu0 %v1861
    %2466 = vmatpush1.bf16.msra.mxu0 %v1860
    %2467 = vmatprep.mubr.bf16.mxu0 %v196
    %2468 = vmatmul.mubr.bf16.gmra.mrb[0].mxu0 %v195
    %v2469 = vpop.f32.mrb[0].mxu0
    %v2470 = vadd.f32 %v2429, %v2469
    %v2471 = vpop.f32.mrb[0].mxu0
    %v2472 = vadd.f32 %v2431, %v2471
    %v2473 = vpop.f32.mrb[0].mxu0
    %v2474 = vpop.f32.mrb[0].mxu0
    %2475 = vdwg.mxu0
    %2476 = vmatprep.subr.bf16.mxu0 %v1865
    %2477 = vmatpush1.bf16.msra.mxu0 %v1864
    %2478 = vmatprep.subr.bf16.mxu0 %v1869
    %2479 = vmatpush1.bf16.msra.mxu0 %v1868
    %2480 = vmatprep.subr.bf16.mxu0 %v1873
    %2481 = vmatpush1.bf16.msra.mxu0 %v1872
    %2482 = vmatprep.subr.bf16.mxu0 %v1877
    %2483 = vmatpush1.bf16.msra.mxu0 %v1876
    %2484 = vmatprep.subr.bf16.mxu0 %v1881
    %2485 = vmatpush1.bf16.msra.mxu0 %v1880
    %2486 = vmatprep.subr.bf16.mxu0 %v1885
    %2487 = vmatpush1.bf16.msra.mxu0 %v1884
    %2488 = vmatprep.subr.bf16.mxu0 %v1889
    %2489 = vmatpush1.bf16.msra.mxu0 %v1888
    %2490 = vmatprep.subr.bf16.mxu0 %v1893
    %2491 = vmatpush1.bf16.msra.mxu0 %v1892
    %2492 = vmatprep.subr.bf16.mxu0 %v1897
    %2493 = vmatpush1.bf16.msra.mxu0 %v1896
    %2494 = vmatprep.subr.bf16.mxu0 %v1901
    %2495 = vmatpush1.bf16.msra.mxu0 %v1900
    %2496 = vmatprep.subr.bf16.mxu0 %v1905
    %2497 = vmatpush1.bf16.msra.mxu0 %v1904
    %2498 = vmatprep.subr.bf16.mxu0 %v1909
    %2499 = vmatpush1.bf16.msra.mxu0 %v1908
    %2500 = vmatprep.subr.bf16.mxu0 %v1913
    %2501 = vmatpush1.bf16.msra.mxu0 %v1912
    %2502 = vmatprep.subr.bf16.mxu0 %v1917
    %2503 = vmatpush1.bf16.msra.mxu0 %v1916
    %2504 = vmatprep.subr.bf16.mxu0 %v1921
    %2505 = vmatpush1.bf16.msra.mxu0 %v1920
    %2506 = vmatprep.subr.bf16.mxu0 %v1925
    %2507 = vmatpush1.bf16.msra.mxu0 %v1924
    %2508 = vmatprep.mubr.bf16.mxu0 %v198
    %2509 = vmatmul.mubr.bf16.gmra.mrb[0].mxu0 %v197
    %v2510 = vpop.f32.mrb[0].mxu0
    %v2511 = vadd.f32 %v2470, %v2510
    %v2512 = vpop.f32.mrb[0].mxu0
    %v2513 = vadd.f32 %v2472, %v2512
    %v2514 = vpop.f32.mrb[0].mxu0
    %v2515 = vpop.f32.mrb[0].mxu0
    %2516 = vdwg.mxu0
    %2517 = vmatprep.subr.bf16.mxu0 %v1929
    %2518 = vmatpush1.bf16.msra.mxu0 %v1928
    %2519 = vmatprep.subr.bf16.mxu0 %v1933
    %2520 = vmatpush1.bf16.msra.mxu0 %v1932
    %2521 = vmatprep.subr.bf16.mxu0 %v1937
    %2522 = vmatpush1.bf16.msra.mxu0 %v1936
    %2523 = vmatprep.subr.bf16.mxu0 %v1941
    %2524 = vmatpush1.bf16.msra.mxu0 %v1940
    %2525 = vmatprep.subr.bf16.mxu0 %v1945
    %2526 = vmatpush1.bf16.msra.mxu0 %v1944
    %2527 = vmatprep.subr.bf16.mxu0 %v1949
    %2528 = vmatpush1.bf16.msra.mxu0 %v1948
    %2529 = vmatprep.subr.bf16.mxu0 %v1953
    %2530 = vmatpush1.bf16.msra.mxu0 %v1952
    %2531 = vmatprep.subr.bf16.mxu0 %v1957
    %2532 = vmatpush1.bf16.msra.mxu0 %v1956
    %2533 = vmatprep.subr.bf16.mxu0 0
    %2534 = vmatpush1.bf16.msra.mxu0 0
    %2535 = vmatprep.subr.bf16.mxu0 0
    %2536 = vmatpush1.bf16.msra.mxu0 0
    %2537 = vmatprep.subr.bf16.mxu0 0
    %2538 = vmatpush1.bf16.msra.mxu0 0
    %2539 = vmatprep.subr.bf16.mxu0 0
    %2540 = vmatpush1.bf16.msra.mxu0 0
    %2541 = vmatprep.subr.bf16.mxu0 0
    %2542 = vmatpush1.bf16.msra.mxu0 0
    %2543 = vmatprep.subr.bf16.mxu0 0
    %2544 = vmatpush1.bf16.msra.mxu0 0
    %2545 = vmatprep.subr.bf16.mxu0 0
    %2546 = vmatpush1.bf16.msra.mxu0 0
    %2547 = vmatprep.subr.bf16.mxu0 0
    %2548 = vmatpush1.bf16.msra.mxu0 0
    %2549 = vmatprep.mubr.bf16.mxu0 0
    %2550 = vmatmul.mubr.bf16.gmra.mrb[0].mxu0 %v199
    %v2551 = vpop.f32.mrb[0].mxu0
    %v2552 = vadd.f32 %v2511, %v2551
    %v2553 = vpop.f32.mrb[0].mxu0
    %v2554 = vadd.f32 %v2513, %v2553
    %v2555 = vpop.f32.mrb[0].mxu0
    %v2556 = vpop.f32.mrb[0].mxu0
    %2557 = vdwg.mxu0
    %2558 = vmatprep.subr.bf16.mxu0 %v1611
    %2559 = vmatpush1.bf16.msra.mxu0 %v1610
    %2560 = vmatprep.subr.bf16.mxu0 %v1615
    %2561 = vmatpush1.bf16.msra.mxu0 %v1614
    %2562 = vmatprep.subr.bf16.mxu0 %v1619
    %2563 = vmatpush1.bf16.msra.mxu0 %v1618
    %2564 = vmatprep.subr.bf16.mxu0 %v1623
    %2565 = vmatpush1.bf16.msra.mxu0 %v1622
    %2566 = vmatprep.subr.bf16.mxu0 %v1627
    %2567 = vmatpush1.bf16.msra.mxu0 %v1626
    %2568 = vmatprep.subr.bf16.mxu0 %v1631
    %2569 = vmatpush1.bf16.msra.mxu0 %v1630
    %2570 = vmatprep.subr.bf16.mxu0 %v1635
    %2571 = vmatpush1.bf16.msra.mxu0 %v1634
    %2572 = vmatprep.subr.bf16.mxu0 %v1639
    %2573 = vmatpush1.bf16.msra.mxu0 %v1638
    %2574 = vmatprep.subr.bf16.mxu0 %v1643
    %2575 = vmatpush1.bf16.msra.mxu0 %v1642
    %2576 = vmatprep.subr.bf16.mxu0 %v1647
    %2577 = vmatpush1.bf16.msra.mxu0 %v1646
    %2578 = vmatprep.subr.bf16.mxu0 %v1651
    %2579 = vmatpush1.bf16.msra.mxu0 %v1650
    %2580 = vmatprep.subr.bf16.mxu0 %v1655
    %2581 = vmatpush1.bf16.msra.mxu0 %v1654
    %2582 = vmatprep.subr.bf16.mxu0 %v1659
    %2583 = vmatpush1.bf16.msra.mxu0 %v1658
    %2584 = vmatprep.subr.bf16.mxu0 %v1663
    %2585 = vmatpush1.bf16.msra.mxu0 %v1662
    %2586 = vmatprep.subr.bf16.mxu0 %v1667
    %2587 = vmatpush1.bf16.msra.mxu0 %v1666
    %2588 = vmatprep.subr.bf16.mxu0 %v1671
    %2589 = vmatpush1.bf16.msra.mxu0 %v1670
    %2590 = vmatprep.mubr.bf16.mxu0 %v190
    %2591 = vmatmul.mubr.bf16.gmra.mrb[0].mxu0 %v189
    %v2592 = vpop.f32.mrb[0].mxu0
    %v2593 = vadd.f32 0.0, %v2592
    %v2594 = vpop.f32.mrb[0].mxu0
    %v2595 = vadd.f32 0.0, %v2594
    %v2596 = vpop.f32.mrb[0].mxu0
    %v2597 = vpop.f32.mrb[0].mxu0
    %2598 = vdwg.mxu0
    %2599 = vmatprep.subr.bf16.mxu0 %v1675
    %2600 = vmatpush1.bf16.msra.mxu0 %v1674
    %2601 = vmatprep.subr.bf16.mxu0 %v1679
    %2602 = vmatpush1.bf16.msra.mxu0 %v1678
    %2603 = vmatprep.subr.bf16.mxu0 %v1683
    %2604 = vmatpush1.bf16.msra.mxu0 %v1682
    %2605 = vmatprep.subr.bf16.mxu0 %v1687
    %2606 = vmatpush1.bf16.msra.mxu0 %v1686
    %2607 = vmatprep.subr.bf16.mxu0 %v1691
    %2608 = vmatpush1.bf16.msra.mxu0 %v1690
    %2609 = vmatprep.subr.bf16.mxu0 %v1695
    %2610 = vmatpush1.bf16.msra.mxu0 %v1694
    %2611 = vmatprep.subr.bf16.mxu0 %v1699
    %2612 = vmatpush1.bf16.msra.mxu0 %v1698
    %2613 = vmatprep.subr.bf16.mxu0 %v1703
    %2614 = vmatpush1.bf16.msra.mxu0 %v1702
    %2615 = vmatprep.subr.bf16.mxu0 %v1707
    %2616 = vmatpush1.bf16.msra.mxu0 %v1706
    %2617 = vmatprep.subr.bf16.mxu0 %v1711
    %2618 = vmatpush1.bf16.msra.mxu0 %v1710
    %2619 = vmatprep.subr.bf16.mxu0 %v1715
    %2620 = vmatpush1.bf16.msra.mxu0 %v1714
    %2621 = vmatprep.subr.bf16.mxu0 %v1719
    %2622 = vmatpush1.bf16.msra.mxu0 %v1718
    %2623 = vmatprep.subr.bf16.mxu0 %v1723
    %2624 = vmatpush1.bf16.msra.mxu0 %v1722
    %2625 = vmatprep.subr.bf16.mxu0 %v1727
    %2626 = vmatpush1.bf16.msra.mxu0 %v1726
    %2627 = vmatprep.subr.bf16.mxu0 %v1731
    %2628 = vmatpush1.bf16.msra.mxu0 %v1730
    %2629 = vmatprep.subr.bf16.mxu0 %v1735
    %2630 = vmatpush1.bf16.msra.mxu0 %v1734
    %2631 = vmatprep.mubr.bf16.mxu0 %v192
    %2632 = vmatmul.mubr.bf16.gmra.mrb[0].mxu0 %v191
    %v2633 = vpop.f32.mrb[0].mxu0
    %v2634 = vadd.f32 %v2593, %v2633
    %v2635 = vpop.f32.mrb[0].mxu0
    %v2636 = vadd.f32 %v2595, %v2635
    %v2637 = vpop.f32.mrb[0].mxu0
    %v2638 = vpop.f32.mrb[0].mxu0
    %2639 = vdwg.mxu0
    %2640 = vmatprep.subr.bf16.mxu0 %v1739
    %2641 = vmatpush1.bf16.msra.mxu0 %v1738
    %2642 = vmatprep.subr.bf16.mxu0 %v1743
    %2643 = vmatpush1.bf16.msra.mxu0 %v1742
    %2644 = vmatprep.subr.bf16.mxu0 %v1747
    %2645 = vmatpush1.bf16.msra.mxu0 %v1746
    %2646 = vmatprep.subr.bf16.mxu0 %v1751
    %2647 = vmatpush1.bf16.msra.mxu0 %v1750
    %2648 = vmatprep.subr.bf16.mxu0 %v1755
    %2649 = vmatpush1.bf16.msra.mxu0 %v1754
    %2650 = vmatprep.subr.bf16.mxu0 %v1759
    %2651 = vmatpush1.bf16.msra.mxu0 %v1758
    %2652 = vmatprep.subr.bf16.mxu0 %v1763
    %2653 = vmatpush1.bf16.msra.mxu0 %v1762
    %2654 = vmatprep.subr.bf16.mxu0 %v1767
    %2655 = vmatpush1.bf16.msra.mxu0 %v1766
    %2656 = vmatprep.subr.bf16.mxu0 %v1771
    %2657 = vmatpush1.bf16.msra.mxu0 %v1770
    %2658 = vmatprep.subr.bf16.mxu0 %v1775
    %2659 = vmatpush1.bf16.msra.mxu0 %v1774
    %2660 = vmatprep.subr.bf16.mxu0 %v1779
    %2661 = vmatpush1.bf16.msra.mxu0 %v1778
    %2662 = vmatprep.subr.bf16.mxu0 %v1783
    %2663 = vmatpush1.bf16.msra.mxu0 %v1782
    %2664 = vmatprep.subr.bf16.mxu0 %v1787
    %2665 = vmatpush1.bf16.msra.mxu0 %v1786
    %2666 = vmatprep.subr.bf16.mxu0 %v1791
    %2667 = vmatpush1.bf16.msra.mxu0 %v1790
    %2668 = vmatprep.subr.bf16.mxu0 %v1795
    %2669 = vmatpush1.bf16.msra.mxu0 %v1794
    %2670 = vmatprep.subr.bf16.mxu0 %v1799
    %2671 = vmatpush1.bf16.msra.mxu0 %v1798
    %2672 = vmatprep.mubr.bf16.mxu0 %v194
    %2673 = vmatmul.mubr.bf16.gmra.mrb[0].mxu0 %v193
    %v2674 = vpop.f32.mrb[0].mxu0
    %v2675 = vadd.f32 %v2634, %v2674
    %v2676 = vpop.f32.mrb[0].mxu0
    %v2677 = vadd.f32 %v2636, %v2676
    %v2678 = vpop.f32.mrb[0].mxu0
    %v2679 = vpop.f32.mrb[0].mxu0
    %2680 = vdwg.mxu0
    %2681 = vmatprep.subr.bf16.mxu0 %v1803
    %2682 = vmatpush1.bf16.msra.mxu0 %v1802
    %2683 = vmatprep.subr.bf16.mxu0 %v1807
    %2684 = vmatpush1.bf16.msra.mxu0 %v1806
    %2685 = vmatprep.subr.bf16.mxu0 %v1811
    %2686 = vmatpush1.bf16.msra.mxu0 %v1810
    %2687 = vmatprep.subr.bf16.mxu0 %v1815
    %2688 = vmatpush1.bf16.msra.mxu0 %v1814
    %2689 = vmatprep.subr.bf16.mxu0 %v1819
    %2690 = vmatpush1.bf16.msra.mxu0 %v1818
    %2691 = vmatprep.subr.bf16.mxu0 %v1823
    %2692 = vmatpush1.bf16.msra.mxu0 %v1822
    %2693 = vmatprep.subr.bf16.mxu0 %v1827
    %2694 = vmatpush1.bf16.msra.mxu0 %v1826
    %2695 = vmatprep.subr.bf16.mxu0 %v1831
    %2696 = vmatpush1.bf16.msra.mxu0 %v1830
    %2697 = vmatprep.subr.bf16.mxu0 %v1835
    %2698 = vmatpush1.bf16.msra.mxu0 %v1834
    %2699 = vmatprep.subr.bf16.mxu0 %v1839
    %2700 = vmatpush1.bf16.msra.mxu0 %v1838
    %2701 = vmatprep.subr.bf16.mxu0 %v1843
    %2702 = vmatpush1.bf16.msra.mxu0 %v1842
    %2703 = vmatprep.subr.bf16.mxu0 %v1847
    %2704 = vmatpush1.bf16.msra.mxu0 %v1846
    %2705 = vmatprep.subr.bf16.mxu0 %v1851
    %2706 = vmatpush1.bf16.msra.mxu0 %v1850
    %2707 = vmatprep.subr.bf16.mxu0 %v1855
    %2708 = vmatpush1.bf16.msra.mxu0 %v1854
    %2709 = vmatprep.subr.bf16.mxu0 %v1859
    %2710 = vmatpush1.bf16.msra.mxu0 %v1858
    %2711 = vmatprep.subr.bf16.mxu0 %v1863
    %2712 = vmatpush1.bf16.msra.mxu0 %v1862
    %2713 = vmatprep.mubr.bf16.mxu0 %v196
    %2714 = vmatmul.mubr.bf16.gmra.mrb[0].mxu0 %v195
    %v2715 = vpop.f32.mrb[0].mxu0
    %v2716 = vadd.f32 %v2675, %v2715
    %v2717 = vpop.f32.mrb[0].mxu0
    %v2718 = vadd.f32 %v2677, %v2717
    %v2719 = vpop.f32.mrb[0].mxu0
    %v2720 = vpop.f32.mrb[0].mxu0
    %2721 = vdwg.mxu0
    %2722 = vmatprep.subr.bf16.mxu0 %v1867
    %2723 = vmatpush1.bf16.msra.mxu0 %v1866
    %2724 = vmatprep.subr.bf16.mxu0 %v1871
    %2725 = vmatpush1.bf16.msra.mxu0 %v1870
    %2726 = vmatprep.subr.bf16.mxu0 %v1875
    %2727 = vmatpush1.bf16.msra.mxu0 %v1874
    %2728 = vmatprep.subr.bf16.mxu0 %v1879
    %2729 = vmatpush1.bf16.msra.mxu0 %v1878
    %2730 = vmatprep.subr.bf16.mxu0 %v1883
    %2731 = vmatpush1.bf16.msra.mxu0 %v1882
    %2732 = vmatprep.subr.bf16.mxu0 %v1887
    %2733 = vmatpush1.bf16.msra.mxu0 %v1886
    %2734 = vmatprep.subr.bf16.mxu0 %v1891
    %2735 = vmatpush1.bf16.msra.mxu0 %v1890
    %2736 = vmatprep.subr.bf16.mxu0 %v1895
    %2737 = vmatpush1.bf16.msra.mxu0 %v1894
    %2738 = vmatprep.subr.bf16.mxu0 %v1899
    %2739 = vmatpush1.bf16.msra.mxu0 %v1898
    %2740 = vmatprep.subr.bf16.mxu0 %v1903
    %2741 = vmatpush1.bf16.msra.mxu0 %v1902
    %2742 = vmatprep.subr.bf16.mxu0 %v1907
    %2743 = vmatpush1.bf16.msra.mxu0 %v1906
    %2744 = vmatprep.subr.bf16.mxu0 %v1911
    %2745 = vmatpush1.bf16.msra.mxu0 %v1910
    %2746 = vmatprep.subr.bf16.mxu0 %v1915
    %2747 = vmatpush1.bf16.msra.mxu0 %v1914
    %2748 = vmatprep.subr.bf16.mxu0 %v1919
    %2749 = vmatpush1.bf16.msra.mxu0 %v1918
    %2750 = vmatprep.subr.bf16.mxu0 %v1923
    %2751 = vmatpush1.bf16.msra.mxu0 %v1922
    %2752 = vmatprep.subr.bf16.mxu0 %v1927
    %2753 = vmatpush1.bf16.msra.mxu0 %v1926
    %2754 = vmatprep.mubr.bf16.mxu0 %v198
    %2755 = vmatmul.mubr.bf16.gmra.mrb[0].mxu0 %v197
    %v2756 = vpop.f32.mrb[0].mxu0
    %v2757 = vadd.f32 %v2716, %v2756
    %v2758 = vpop.f32.mrb[0].mxu0
    %v2759 = vadd.f32 %v2718, %v2758
    %v2760 = vpop.f32.mrb[0].mxu0
    %v2761 = vpop.f32.mrb[0].mxu0
    %2762 = vdwg.mxu0
    %2763 = vmatprep.subr.bf16.mxu0 %v1931
    %2764 = vmatpush1.bf16.msra.mxu0 %v1930
    %2765 = vmatprep.subr.bf16.mxu0 %v1935
    %2766 = vmatpush1.bf16.msra.mxu0 %v1934
    %2767 = vmatprep.subr.bf16.mxu0 %v1939
    %2768 = vmatpush1.bf16.msra.mxu0 %v1938
    %2769 = vmatprep.subr.bf16.mxu0 %v1943
    %2770 = vmatpush1.bf16.msra.mxu0 %v1942
    %2771 = vmatprep.subr.bf16.mxu0 %v1947
    %2772 = vmatpush1.bf16.msra.mxu0 %v1946
    %2773 = vmatprep.subr.bf16.mxu0 %v1951
    %2774 = vmatpush1.bf16.msra.mxu0 %v1950
    %2775 = vmatprep.subr.bf16.mxu0 %v1955
    %2776 = vmatpush1.bf16.msra.mxu0 %v1954
    %2777 = vmatprep.subr.bf16.mxu0 %v1959
    %2778 = vmatpush1.bf16.msra.mxu0 %v1958
    %2779 = vmatprep.subr.bf16.mxu0 0
    %2780 = vmatpush1.bf16.msra.mxu0 0
    %2781 = vmatprep.subr.bf16.mxu0 0
    %2782 = vmatpush1.bf16.msra.mxu0 0
    %2783 = vmatprep.subr.bf16.mxu0 0
    %2784 = vmatpush1.bf16.msra.mxu0 0
    %2785 = vmatprep.subr.bf16.mxu0 0
    %2786 = vmatpush1.bf16.msra.mxu0 0
    %2787 = vmatprep.subr.bf16.mxu0 0
    %2788 = vmatpush1.bf16.msra.mxu0 0
    %2789 = vmatprep.subr.bf16.mxu0 0
    %2790 = vmatpush1.bf16.msra.mxu0 0
    %2791 = vmatprep.subr.bf16.mxu0 0
    %2792 = vmatpush1.bf16.msra.mxu0 0
    %2793 = vmatprep.subr.bf16.mxu0 0
    %2794 = vmatpush1.bf16.msra.mxu0 0
    %2795 = vmatprep.mubr.bf16.mxu0 0
    %2796 = vmatmul.mubr.bf16.gmra.mrb[0].mxu0 %v199
    %v2797 = vpop.f32.mrb[0].mxu0
    %v2798 = vadd.f32 %v2757, %v2797
    %v2799 = vpop.f32.mrb[0].mxu0
    %v2800 = vadd.f32 %v2759, %v2799
    %v2801 = vpop.f32.mrb[0].mxu0
    %v2802 = vpop.f32.mrb[0].mxu0
    %2803 = vdwg.mxu0
    %v2804 = vld [vmem:[#allocation5] sm:$0xf]
    %v2806 = vlaneseq
    %v2807 = vshrl.u32 %v2806, 7
    %v2808 = vsub.s32 0, %v2807
    %v2809 = vrot.slane %v2804, %v2808
    %v2810 = vlaneseq
    %v2811 = vshrl.u32 %v2810, 7
    %v2812 = vsub.s32 1, %v2811
    %v2813 = vrot.slane %v2804, %v2812
    %v2814 = vlaneseq
    %v2815 = vshrl.u32 %v2814, 7
    %v2816 = vsub.s32 2, %v2815
    %v2817 = vrot.slane %v2804, %v2816
    %v2818 = vlaneseq
    %v2819 = vshrl.u32 %v2818, 7
    %v2820 = vsub.s32 3, %v2819
    %v2821 = vrot.slane %v2804, %v2820
    %v2826 = vmul.f32 %v2552, %v2809
    %v2827 = vmul.f32 %v2554, %v2813
    %v2828 = vmul.f32 %v2798, %v2817
    %v2829 = vmul.f32 %v2800, %v2821
    %v2830 = vld [vmem:[#allocation7] sm:$0xf]
    %v2832 = vlaneseq
    %v2833 = vshrl.u32 %v2832, 7
    %v2834 = vsub.s32 0, %v2833
    %v2835 = vrot.slane %v2830, %v2834
    %v2836 = vlaneseq
    %v2837 = vshrl.u32 %v2836, 7
    %v2838 = vsub.s32 1, %v2837
    %v2839 = vrot.slane %v2830, %v2838
    %v2840 = vlaneseq
    %v2841 = vshrl.u32 %v2840, 7
    %v2842 = vsub.s32 2, %v2841
    %v2843 = vrot.slane %v2830, %v2842
    %v2844 = vlaneseq
    %v2845 = vshrl.u32 %v2844, 7
    %v2846 = vsub.s32 3, %v2845
    %v2847 = vrot.slane %v2830, %v2846
    %v2852 = vadd.f32 %v2826, %v2835
    %v2853 = vadd.f32 %v2827, %v2839
    %v2854 = vadd.f32 %v2828, %v2843
    %v2855 = vadd.f32 %v2829, %v2847
    %v2856 = vmax.f32 %v2852, 0.0
    %v2857 = vmax.f32 %v2853, 0.0
    %v2858 = vmax.f32 %v2854, 0.0
    %v2859 = vmax.f32 %v2855, 0.0
    %v2860 = vpack.c.bf16 %v2856, %v2856
    %v2861 = vpack.c.bf16 %v2857, %v2857
    %v2862 = vpack.c.bf16 %v2858, %v2858
    %v2863 = vpack.c.bf16 %v2859, %v2859
    %v2864 = vld [vmem:[#allocation8] sm:$0xff]
    %v2865 = vld [vmem:[#allocation8 + $0x8] sm:$0xff]
    %v2866 = vld [vmem:[#allocation8 + $0x10] sm:$0xff]
    %v2867 = vld [vmem:[#allocation8 + $0x18] sm:$0xff]
    %v2868 = vld [vmem:[#allocation8 + $0x20] sm:$0xff]
    %v2869 = vld [vmem:[#allocation8 + $0x28] sm:$0xff]
    %v2870 = vld [vmem:[#allocation8 + $0x30] sm:$0xff]
    %v2871 = vld [vmem:[#allocation8 + $0x38] sm:$0xff]
    %v2872 = vld [vmem:[#allocation8 + $0x40] sm:$0xff]
    %v2873 = vld [vmem:[#allocation8 + $0x48] sm:$0xff]
    %v2874 = vld [vmem:[#allocation8 + $0x50] sm:$0xff]
    %v2875 = vld [vmem:[#allocation8 + $0x58] sm:$0xff]
    %v2876 = vld [vmem:[#allocation8 + $0x60] sm:$0xff]
    %v2877 = vld [vmem:[#allocation8 + $0x68] sm:$0xff]
    %v2878 = vld [vmem:[#allocation8 + $0x70] sm:$0xff]
    %v2879 = vld [vmem:[#allocation8 + $0x78] sm:$0xff]
    %v2880 = vld [vmem:[#allocation8 + $0x80] sm:$0xff]
    %v2881 = vld [vmem:[#allocation8 + $0x88] sm:$0xff]
    %v2882 = vld [vmem:[#allocation8 + $0x90] sm:$0xff]
    %v2883 = vld [vmem:[#allocation8 + $0x98] sm:$0xff]
    %v2884 = vld [vmem:[#allocation8 + $0xa0] sm:$0xff]
    %v2885 = vld [vmem:[#allocation8 + $0xa8] sm:$0xff]
    %v2886 = vld [vmem:[#allocation8 + $0xb0] sm:$0xff]
    %v2887 = vld [vmem:[#allocation8 + $0xb8] sm:$0xff]
    %v2888 = vld [vmem:[#allocation8 + $0xc0] sm:$0xff]
    %v2889 = vld [vmem:[#allocation8 + $0xc8] sm:$0xff]
    %v2890 = vld [vmem:[#allocation8 + $0xd0] sm:$0xff]
    %v2891 = vld [vmem:[#allocation8 + $0xd8] sm:$0xff]
    %v2892 = vld [vmem:[#allocation8 + $0xe0] sm:$0xff]
    %v2893 = vld [vmem:[#allocation8 + $0xe8] sm:$0xff]
    %v2894 = vld [vmem:[#allocation8 + $0xf0] sm:$0xff]
    %v2895 = vld [vmem:[#allocation8 + $0xf8] sm:$0xff]
    %v2896 = vld [vmem:[#allocation8 + $0x100] sm:$0xff]
    %v2897 = vld [vmem:[#allocation8 + $0x108] sm:$0xff]
    %v2898 = vld [vmem:[#allocation8 + $0x110] sm:$0xff]
    %v2899 = vld [vmem:[#allocation8 + $0x118] sm:$0xff]
    %v2900 = vld [vmem:[#allocation8 + $0x120] sm:$0xff]
    %v2901 = vld [vmem:[#allocation8 + $0x128] sm:$0xff]
    %v2902 = vld [vmem:[#allocation8 + $0x130] sm:$0xff]
    %v2903 = vld [vmem:[#allocation8 + $0x138] sm:$0xff]
    %v2904 = vld [vmem:[#allocation8 + $0x140] sm:$0xff]
    %v2905 = vld [vmem:[#allocation8 + $0x148] sm:$0xff]
    %v2906 = vld [vmem:[#allocation8 + $0x150] sm:$0xff]
    %v2907 = vld [vmem:[#allocation8 + $0x158] sm:$0xff]
    %v2908 = vld [vmem:[#allocation8 + $0x160] sm:$0xff]
    %v2909 = vld [vmem:[#allocation8 + $0x168] sm:$0xff]
    %v2910 = vld [vmem:[#allocation8 + $0x170] sm:$0xff]
    %v2911 = vld [vmem:[#allocation8 + $0x178] sm:$0xff]
    %v2912 = vld [vmem:[#allocation8 + $0x180] sm:$0xff]
    %v2913 = vld [vmem:[#allocation8 + $0x188] sm:$0xff]
    %v2914 = vld [vmem:[#allocation8 + $0x190] sm:$0xff]
    %v2915 = vld [vmem:[#allocation8 + $0x198] sm:$0xff]
    %v2916 = vld [vmem:[#allocation8 + $0x1a0] sm:$0xff]
    %v2917 = vld [vmem:[#allocation8 + $0x1a8] sm:$0xff]
    %v2918 = vld [vmem:[#allocation8 + $0x1b0] sm:$0xff]
    %v2919 = vld [vmem:[#allocation8 + $0x1b8] sm:$0xff]
    %v2920 = vld [vmem:[#allocation8 + $0x1c0] sm:$0xff]
    %v2921 = vld [vmem:[#allocation8 + $0x1c8] sm:$0xff]
    %v2922 = vld [vmem:[#allocation8 + $0x1d0] sm:$0xff]
    %v2923 = vld [vmem:[#allocation8 + $0x1d8] sm:$0xff]
    %v2924 = vld [vmem:[#allocation8 + $0x1e0] sm:$0xff]
    %v2925 = vld [vmem:[#allocation8 + $0x1e8] sm:$0xff]
    %v2926 = vld [vmem:[#allocation8 + $0x1f0] sm:$0xff]
    %v2927 = vld [vmem:[#allocation8 + $0x1f8] sm:$0xff]
    %v2992 = vunpack.c.l.b16 %v2864
    %v2993 = vunpack.c.h.b16 %v2864
    %v2994 = vunpack.c.l.b16 %v2865
    %v2995 = vunpack.c.h.b16 %v2865
    %v2996 = vunpack.c.l.b16 %v2866
    %v2997 = vunpack.c.h.b16 %v2866
    %v2998 = vunpack.c.l.b16 %v2867
    %v2999 = vunpack.c.h.b16 %v2867
    %v3000 = vunpack.c.l.b16 %v2868
    %v3001 = vunpack.c.h.b16 %v2868
    %v3002 = vunpack.c.l.b16 %v2869
    %v3003 = vunpack.c.h.b16 %v2869
    %v3004 = vunpack.c.l.b16 %v2870
    %v3005 = vunpack.c.h.b16 %v2870
    %v3006 = vunpack.c.l.b16 %v2871
    %v3007 = vunpack.c.h.b16 %v2871
    %v3008 = vunpack.c.l.b16 %v2872
    %v3009 = vunpack.c.h.b16 %v2872
    %v3010 = vunpack.c.l.b16 %v2873
    %v3011 = vunpack.c.h.b16 %v2873
    %v3012 = vunpack.c.l.b16 %v2874
    %v3013 = vunpack.c.h.b16 %v2874
    %v3014 = vunpack.c.l.b16 %v2875
    %v3015 = vunpack.c.h.b16 %v2875
    %v3016 = vunpack.c.l.b16 %v2876
    %v3017 = vunpack.c.h.b16 %v2876
    %v3018 = vunpack.c.l.b16 %v2877
    %v3019 = vunpack.c.h.b16 %v2877
    %v3020 = vunpack.c.l.b16 %v2878
    %v3021 = vunpack.c.h.b16 %v2878
    %v3022 = vunpack.c.l.b16 %v2879
    %v3023 = vunpack.c.h.b16 %v2879
    %v3024 = vunpack.c.l.b16 %v2880
    %v3025 = vunpack.c.h.b16 %v2880
    %v3026 = vunpack.c.l.b16 %v2881
    %v3027 = vunpack.c.h.b16 %v2881
    %v3028 = vunpack.c.l.b16 %v2882
    %v3029 = vunpack.c.h.b16 %v2882
    %v3030 = vunpack.c.l.b16 %v2883
    %v3031 = vunpack.c.h.b16 %v2883
    %v3032 = vunpack.c.l.b16 %v2884
    %v3033 = vunpack.c.h.b16 %v2884
    %v3034 = vunpack.c.l.b16 %v2885
    %v3035 = vunpack.c.h.b16 %v2885
    %v3036 = vunpack.c.l.b16 %v2886
    %v3037 = vunpack.c.h.b16 %v2886
    %v3038 = vunpack.c.l.b16 %v2887
    %v3039 = vunpack.c.h.b16 %v2887
    %v3040 = vunpack.c.l.b16 %v2888
    %v3041 = vunpack.c.h.b16 %v2888
    %v3042 = vunpack.c.l.b16 %v2889
    %v3043 = vunpack.c.h.b16 %v2889
    %v3044 = vunpack.c.l.b16 %v2890
    %v3045 = vunpack.c.h.b16 %v2890
    %v3046 = vunpack.c.l.b16 %v2891
    %v3047 = vunpack.c.h.b16 %v2891
    %v3048 = vunpack.c.l.b16 %v2892
    %v3049 = vunpack.c.h.b16 %v2892
    %v3050 = vunpack.c.l.b16 %v2893
    %v3051 = vunpack.c.h.b16 %v2893
    %v3052 = vunpack.c.l.b16 %v2894
    %v3053 = vunpack.c.h.b16 %v2894
    %v3054 = vunpack.c.l.b16 %v2895
    %v3055 = vunpack.c.h.b16 %v2895
    %v3056 = vunpack.c.l.b16 %v2896
    %v3057 = vunpack.c.h.b16 %v2896
    %v3058 = vunpack.c.l.b16 %v2897
    %v3059 = vunpack.c.h.b16 %v2897
    %v3060 = vunpack.c.l.b16 %v2898
    %v3061 = vunpack.c.h.b16 %v2898
    %v3062 = vunpack.c.l.b16 %v2899
    %v3063 = vunpack.c.h.b16 %v2899
    %v3064 = vunpack.c.l.b16 %v2900
    %v3065 = vunpack.c.h.b16 %v2900
    %v3066 = vunpack.c.l.b16 %v2901
    %v3067 = vunpack.c.h.b16 %v2901
    %v3068 = vunpack.c.l.b16 %v2902
    %v3069 = vunpack.c.h.b16 %v2902
    %v3070 = vunpack.c.l.b16 %v2903
    %v3071 = vunpack.c.h.b16 %v2903
    %v3072 = vunpack.c.l.b16 %v2904
    %v3073 = vunpack.c.h.b16 %v2904
    %v3074 = vunpack.c.l.b16 %v2905
    %v3075 = vunpack.c.h.b16 %v2905
    %v3076 = vunpack.c.l.b16 %v2906
    %v3077 = vunpack.c.h.b16 %v2906
    %v3078 = vunpack.c.l.b16 %v2907
    %v3079 = vunpack.c.h.b16 %v2907
    %v3080 = vunpack.c.l.b16 %v2908
    %v3081 = vunpack.c.h.b16 %v2908
    %v3082 = vunpack.c.l.b16 %v2909
    %v3083 = vunpack.c.h.b16 %v2909
    %v3084 = vunpack.c.l.b16 %v2910
    %v3085 = vunpack.c.h.b16 %v2910
    %v3086 = vunpack.c.l.b16 %v2911
    %v3087 = vunpack.c.h.b16 %v2911
    %v3088 = vunpack.c.l.b16 %v2912
    %v3089 = vunpack.c.h.b16 %v2912
    %v3090 = vunpack.c.l.b16 %v2913
    %v3091 = vunpack.c.h.b16 %v2913
    %v3092 = vunpack.c.l.b16 %v2914
    %v3093 = vunpack.c.h.b16 %v2914
    %v3094 = vunpack.c.l.b16 %v2915
    %v3095 = vunpack.c.h.b16 %v2915
    %v3096 = vunpack.c.l.b16 %v2916
    %v3097 = vunpack.c.h.b16 %v2916
    %v3098 = vunpack.c.l.b16 %v2917
    %v3099 = vunpack.c.h.b16 %v2917
    %v3100 = vunpack.c.l.b16 %v2918
    %v3101 = vunpack.c.h.b16 %v2918
    %v3102 = vunpack.c.l.b16 %v2919
    %v3103 = vunpack.c.h.b16 %v2919
    %v3104 = vunpack.c.l.b16 %v2920
    %v3105 = vunpack.c.h.b16 %v2920
    %v3106 = vunpack.c.l.b16 %v2921
    %v3107 = vunpack.c.h.b16 %v2921
    %v3108 = vunpack.c.l.b16 %v2922
    %v3109 = vunpack.c.h.b16 %v2922
    %v3110 = vunpack.c.l.b16 %v2923
    %v3111 = vunpack.c.h.b16 %v2923
    %v3112 = vunpack.c.l.b16 %v2924
    %v3113 = vunpack.c.h.b16 %v2924
    %v3114 = vunpack.c.l.b16 %v2925
    %v3115 = vunpack.c.h.b16 %v2925
    %v3116 = vunpack.c.l.b16 %v2926
    %v3117 = vunpack.c.h.b16 %v2926
    %v3118 = vunpack.c.l.b16 %v2927
    %v3119 = vunpack.c.h.b16 %v2927
    %v3120 = vpack.c.b16 %v2994, %v2992
    %v3121 = vpack.c.b16 %v2995, %v2993
    %v3122 = vpack.c.b16 %v2998, %v2996
    %v3123 = vpack.c.b16 %v2999, %v2997
    %v3124 = vpack.c.b16 %v3002, %v3000
    %v3125 = vpack.c.b16 %v3003, %v3001
    %v3126 = vpack.c.b16 %v3006, %v3004
    %v3127 = vpack.c.b16 %v3007, %v3005
    %v3128 = vpack.c.b16 %v3010, %v3008
    %v3129 = vpack.c.b16 %v3011, %v3009
    %v3130 = vpack.c.b16 %v3014, %v3012
    %v3131 = vpack.c.b16 %v3015, %v3013
    %v3132 = vpack.c.b16 %v3018, %v3016
    %v3133 = vpack.c.b16 %v3019, %v3017
    %v3134 = vpack.c.b16 %v3022, %v3020
    %v3135 = vpack.c.b16 %v3023, %v3021
    %v3136 = vpack.c.b16 %v3026, %v3024
    %v3137 = vpack.c.b16 %v3027, %v3025
    %v3138 = vpack.c.b16 %v3030, %v3028
    %v3139 = vpack.c.b16 %v3031, %v3029
    %v3140 = vpack.c.b16 %v3034, %v3032
    %v3141 = vpack.c.b16 %v3035, %v3033
    %v3142 = vpack.c.b16 %v3038, %v3036
    %v3143 = vpack.c.b16 %v3039, %v3037
    %v3144 = vpack.c.b16 %v3042, %v3040
    %v3145 = vpack.c.b16 %v3043, %v3041
    %v3146 = vpack.c.b16 %v3046, %v3044
    %v3147 = vpack.c.b16 %v3047, %v3045
    %v3148 = vpack.c.b16 %v3050, %v3048
    %v3149 = vpack.c.b16 %v3051, %v3049
    %v3150 = vpack.c.b16 %v3054, %v3052
    %v3151 = vpack.c.b16 %v3055, %v3053
    %v3152 = vpack.c.b16 %v3058, %v3056
    %v3153 = vpack.c.b16 %v3059, %v3057
    %v3154 = vpack.c.b16 %v3062, %v3060
    %v3155 = vpack.c.b16 %v3063, %v3061
    %v3156 = vpack.c.b16 %v3066, %v3064
    %v3157 = vpack.c.b16 %v3067, %v3065
    %v3158 = vpack.c.b16 %v3070, %v3068
    %v3159 = vpack.c.b16 %v3071, %v3069
    %v3160 = vpack.c.b16 %v3074, %v3072
    %v3161 = vpack.c.b16 %v3075, %v3073
    %v3162 = vpack.c.b16 %v3078, %v3076
    %v3163 = vpack.c.b16 %v3079, %v3077
    %v3164 = vpack.c.b16 %v3082, %v3080
    %v3165 = vpack.c.b16 %v3083, %v3081
    %v3166 = vpack.c.b16 %v3086, %v3084
    %v3167 = vpack.c.b16 %v3087, %v3085
    %v3168 = vpack.c.b16 %v3090, %v3088
    %v3169 = vpack.c.b16 %v3091, %v3089
    %v3170 = vpack.c.b16 %v3094, %v3092
    %v3171 = vpack.c.b16 %v3095, %v3093
    %v3172 = vpack.c.b16 %v3098, %v3096
    %v3173 = vpack.c.b16 %v3099, %v3097
    %v3174 = vpack.c.b16 %v3102, %v3100
    %v3175 = vpack.c.b16 %v3103, %v3101
    %v3176 = vpack.c.b16 %v3106, %v3104
    %v3177 = vpack.c.b16 %v3107, %v3105
    %v3178 = vpack.c.b16 %v3110, %v3108
    %v3179 = vpack.c.b16 %v3111, %v3109
    %v3180 = vpack.c.b16 %v3114, %v3112
    %v3181 = vpack.c.b16 %v3115, %v3113
    %v3182 = vpack.c.b16 %v3118, %v3116
    %v3183 = vpack.c.b16 %v3119, %v3117
    %3248 = vmatprep.subr.bf16.mxu0 %v3121
    %3249 = vmatpush1.bf16.msra.mxu0 %v3120
    %3250 = vmatprep.subr.bf16.mxu0 %v3123
    %3251 = vmatpush1.bf16.msra.mxu0 %v3122
    %3252 = vmatprep.subr.bf16.mxu0 %v3125
    %3253 = vmatpush1.bf16.msra.mxu0 %v3124
    %3254 = vmatprep.subr.bf16.mxu0 %v3127
    %3255 = vmatpush1.bf16.msra.mxu0 %v3126
    %3256 = vmatprep.subr.bf16.mxu0 %v3129
    %3257 = vmatpush1.bf16.msra.mxu0 %v3128
    %3258 = vmatprep.subr.bf16.mxu0 %v3131
    %3259 = vmatpush1.bf16.msra.mxu0 %v3130
    %3260 = vmatprep.subr.bf16.mxu0 %v3133
    %3261 = vmatpush1.bf16.msra.mxu0 %v3132
    %3262 = vmatprep.subr.bf16.mxu0 %v3135
    %3263 = vmatpush1.bf16.msra.mxu0 %v3134
    %3264 = vmatprep.subr.bf16.mxu0 %v3137
    %3265 = vmatpush1.bf16.msra.mxu0 %v3136
    %3266 = vmatprep.subr.bf16.mxu0 %v3139
    %3267 = vmatpush1.bf16.msra.mxu0 %v3138
    %3268 = vmatprep.subr.bf16.mxu0 %v3141
    %3269 = vmatpush1.bf16.msra.mxu0 %v3140
    %3270 = vmatprep.subr.bf16.mxu0 %v3143
    %3271 = vmatpush1.bf16.msra.mxu0 %v3142
    %3272 = vmatprep.subr.bf16.mxu0 %v3145
    %3273 = vmatpush1.bf16.msra.mxu0 %v3144
    %3274 = vmatprep.subr.bf16.mxu0 %v3147
    %3275 = vmatpush1.bf16.msra.mxu0 %v3146
    %3276 = vmatprep.subr.bf16.mxu0 %v3149
    %3277 = vmatpush1.bf16.msra.mxu0 %v3148
    %3278 = vmatprep.subr.bf16.mxu0 %v3151
    %3279 = vmatpush1.bf16.msra.mxu0 %v3150
    %3280 = vmatprep.mubr.bf16.mxu0 %v2861
    %3281 = vmatmul.mubr.bf16.gmra.mrb[0].mxu0 %v2860
    %v3282 = vpop.f32.mrb[0].mxu0
    %v3283 = vadd.f32 0.0, %v3282
    %v3284 = vpop.f32.mrb[0].mxu0
    %v3285 = vadd.f32 0.0, %v3284
    %v3286 = vpop.f32.mrb[0].mxu0
    %v3287 = vpop.f32.mrb[0].mxu0
    %3288 = vdwg.mxu0
    %3289 = vmatprep.subr.bf16.mxu0 %v3153
    %3290 = vmatpush1.bf16.msra.mxu0 %v3152
    %3291 = vmatprep.subr.bf16.mxu0 %v3155
    %3292 = vmatpush1.bf16.msra.mxu0 %v3154
    %3293 = vmatprep.subr.bf16.mxu0 %v3157
    %3294 = vmatpush1.bf16.msra.mxu0 %v3156
    %3295 = vmatprep.subr.bf16.mxu0 %v3159
    %3296 = vmatpush1.bf16.msra.mxu0 %v3158
    %3297 = vmatprep.subr.bf16.mxu0 %v3161
    %3298 = vmatpush1.bf16.msra.mxu0 %v3160
    %3299 = vmatprep.subr.bf16.mxu0 %v3163
    %3300 = vmatpush1.bf16.msra.mxu0 %v3162
    %3301 = vmatprep.subr.bf16.mxu0 %v3165
    %3302 = vmatpush1.bf16.msra.mxu0 %v3164
    %3303 = vmatprep.subr.bf16.mxu0 %v3167
    %3304 = vmatpush1.bf16.msra.mxu0 %v3166
    %3305 = vmatprep.subr.bf16.mxu0 %v3169
    %3306 = vmatpush1.bf16.msra.mxu0 %v3168
    %3307 = vmatprep.subr.bf16.mxu0 %v3171
    %3308 = vmatpush1.bf16.msra.mxu0 %v3170
    %3309 = vmatprep.subr.bf16.mxu0 %v3173
    %3310 = vmatpush1.bf16.msra.mxu0 %v3172
    %3311 = vmatprep.subr.bf16.mxu0 %v3175
    %3312 = vmatpush1.bf16.msra.mxu0 %v3174
    %3313 = vmatprep.subr.bf16.mxu0 %v3177
    %3314 = vmatpush1.bf16.msra.mxu0 %v3176
    %3315 = vmatprep.subr.bf16.mxu0 %v3179
    %3316 = vmatpush1.bf16.msra.mxu0 %v3178
    %3317 = vmatprep.subr.bf16.mxu0 %v3181
    %3318 = vmatpush1.bf16.msra.mxu0 %v3180
    %3319 = vmatprep.subr.bf16.mxu0 %v3183
    %3320 = vmatpush1.bf16.msra.mxu0 %v3182
    %3321 = vmatprep.mubr.bf16.mxu0 %v2863
    %3322 = vmatmul.mubr.bf16.gmra.mrb[0].mxu0 %v2862
    %v3323 = vpop.f32.mrb[0].mxu0
    %v3324 = vadd.f32 %v3283, %v3323
    %v3325 = vpop.f32.mrb[0].mxu0
    %v3326 = vadd.f32 %v3285, %v3325
    %v3327 = vpop.f32.mrb[0].mxu0
    %v3328 = vpop.f32.mrb[0].mxu0
    %3329 = vdwg.mxu0
    %v3330 = vld [vmem:[#allocation10] sm:$0x3]
    %v3332 = vlaneseq
    %v3333 = vshrl.u32 %v3332, 7
    %v3334 = vsub.s32 0, %v3333
    %v3335 = vrot.slane %v3330, %v3334
    %v3336 = vlaneseq
    %v3337 = vshrl.u32 %v3336, 7
    %v3338 = vsub.s32 1, %v3337
    %v3339 = vrot.slane %v3330, %v3338
    %v3342 = vmul.f32 %v3324, %v3335
    %v3343 = vmul.f32 %v3326, %v3339
    %v3344 = vld [vmem:[#allocation11] sm:$0x3]
    %v3346 = vlaneseq
    %v3347 = vshrl.u32 %v3346, 7
    %v3348 = vsub.s32 0, %v3347
    %v3349 = vrot.slane %v3344, %v3348
    %v3350 = vlaneseq
    %v3351 = vshrl.u32 %v3350, 7
    %v3352 = vsub.s32 1, %v3351
    %v3353 = vrot.slane %v3344, %v3352
    %v3356 = vadd.f32 %v3342, %v3349
    %v3357 = vadd.f32 %v3343, %v3353
    %v3358 = vmax.f32 %v3356, 0.0
    %v3359 = vmax.f32 %v3357, 0.0
    %v3360 = vpack.c.bf16 %v3358, %v3358
    %v3361 = vpack.c.bf16 %v3359, %v3359
    %v3362 = vld [vmem:[#allocation13] sm:$0xf]
    %v3363 = vld [vmem:[#allocation13 + $0x4] sm:$0xf]
    %v3364 = vld [vmem:[#allocation13 + $0x8] sm:$0xf]
    %v3365 = vld [vmem:[#allocation13 + $0xc] sm:$0xf]
    %v3366 = vld [vmem:[#allocation13 + $0x10] sm:$0xf]
    %v3367 = vld [vmem:[#allocation13 + $0x14] sm:$0xf]
    %v3368 = vld [vmem:[#allocation13 + $0x18] sm:$0xf]
    %v3369 = vld [vmem:[#allocation13 + $0x1c] sm:$0xf]
    %v3370 = vld [vmem:[#allocation13 + $0x20] sm:$0xf]
    %v3371 = vld [vmem:[#allocation13 + $0x24] sm:$0xf]
    %v3372 = vld [vmem:[#allocation13 + $0x28] sm:$0xf]
    %v3373 = vld [vmem:[#allocation13 + $0x2c] sm:$0xf]
    %v3374 = vld [vmem:[#allocation13 + $0x30] sm:$0xf]
    %v3375 = vld [vmem:[#allocation13 + $0x34] sm:$0xf]
    %v3376 = vld [vmem:[#allocation13 + $0x38] sm:$0xf]
    %v3377 = vld [vmem:[#allocation13 + $0x3c] sm:$0xf]
    %v3378 = vld [vmem:[#allocation13 + $0x40] sm:$0xf]
    %v3379 = vld [vmem:[#allocation13 + $0x44] sm:$0xf]
    %v3380 = vld [vmem:[#allocation13 + $0x48] sm:$0xf]
    %v3381 = vld [vmem:[#allocation13 + $0x4c] sm:$0xf]
    %v3382 = vld [vmem:[#allocation13 + $0x50] sm:$0xf]
    %v3383 = vld [vmem:[#allocation13 + $0x54] sm:$0xf]
    %v3384 = vld [vmem:[#allocation13 + $0x58] sm:$0xf]
    %v3385 = vld [vmem:[#allocation13 + $0x5c] sm:$0xf]
    %v3386 = vld [vmem:[#allocation13 + $0x60] sm:$0xf]
    %v3387 = vld [vmem:[#allocation13 + $0x64] sm:$0xf]
    %v3388 = vld [vmem:[#allocation13 + $0x68] sm:$0xf]
    %v3389 = vld [vmem:[#allocation13 + $0x6c] sm:$0xf]
    %v3390 = vld [vmem:[#allocation13 + $0x70] sm:$0xf]
    %v3391 = vld [vmem:[#allocation13 + $0x74] sm:$0xf]
    %v3392 = vld [vmem:[#allocation13 + $0x78] sm:$0xf]
    %v3393 = vld [vmem:[#allocation13 + $0x7c] sm:$0xf]
    %v3426 = vunpack.c.l.b16 %v3362
    %v3427 = vunpack.c.l.b16 %v3363
    %v3428 = vunpack.c.l.b16 %v3364
    %v3429 = vunpack.c.l.b16 %v3365
    %v3430 = vunpack.c.l.b16 %v3366
    %v3431 = vunpack.c.l.b16 %v3367
    %v3432 = vunpack.c.l.b16 %v3368
    %v3433 = vunpack.c.l.b16 %v3369
    %v3434 = vunpack.c.l.b16 %v3370
    %v3435 = vunpack.c.l.b16 %v3371
    %v3436 = vunpack.c.l.b16 %v3372
    %v3437 = vunpack.c.l.b16 %v3373
    %v3438 = vunpack.c.l.b16 %v3374
    %v3439 = vunpack.c.l.b16 %v3375
    %v3440 = vunpack.c.l.b16 %v3376
    %v3441 = vunpack.c.l.b16 %v3377
    %v3442 = vunpack.c.l.b16 %v3378
    %v3443 = vunpack.c.l.b16 %v3379
    %v3444 = vunpack.c.l.b16 %v3380
    %v3445 = vunpack.c.l.b16 %v3381
    %v3446 = vunpack.c.l.b16 %v3382
    %v3447 = vunpack.c.l.b16 %v3383
    %v3448 = vunpack.c.l.b16 %v3384
    %v3449 = vunpack.c.l.b16 %v3385
    %v3450 = vunpack.c.l.b16 %v3386
    %v3451 = vunpack.c.l.b16 %v3387
    %v3452 = vunpack.c.l.b16 %v3388
    %v3453 = vunpack.c.l.b16 %v3389
    %v3454 = vunpack.c.l.b16 %v3390
    %v3455 = vunpack.c.l.b16 %v3391
    %v3456 = vunpack.c.l.b16 %v3392
    %v3457 = vunpack.c.l.b16 %v3393
    %v3458 = vpack.c.b16 %v3427, %v3426
    %v3459 = vpack.c.b16 %v3429, %v3428
    %v3460 = vpack.c.b16 %v3431, %v3430
    %v3461 = vpack.c.b16 %v3433, %v3432
    %v3462 = vpack.c.b16 %v3435, %v3434
    %v3463 = vpack.c.b16 %v3437, %v3436
    %v3464 = vpack.c.b16 %v3439, %v3438
    %v3465 = vpack.c.b16 %v3441, %v3440
    %v3466 = vpack.c.b16 %v3443, %v3442
    %v3467 = vpack.c.b16 %v3445, %v3444
    %v3468 = vpack.c.b16 %v3447, %v3446
    %v3469 = vpack.c.b16 %v3449, %v3448
    %v3470 = vpack.c.b16 %v3451, %v3450
    %v3471 = vpack.c.b16 %v3453, %v3452
    %v3472 = vpack.c.b16 %v3455, %v3454
    %v3473 = vpack.c.b16 %v3457, %v3456
    %3490 = vmatprep.subr.bf16.mxu0 0
    %3491 = vmatpush1.bf16.msra.mxu0 %v3458
    %3492 = vmatprep.subr.bf16.mxu0 0
    %3493 = vmatpush1.bf16.msra.mxu0 %v3459
    %3494 = vmatprep.subr.bf16.mxu0 0
    %3495 = vmatpush1.bf16.msra.mxu0 %v3460
    %3496 = vmatprep.subr.bf16.mxu0 0
    %3497 = vmatpush1.bf16.msra.mxu0 %v3461
    %3498 = vmatprep.subr.bf16.mxu0 0
    %3499 = vmatpush1.bf16.msra.mxu0 %v3462
    %3500 = vmatprep.subr.bf16.mxu0 0
    %3501 = vmatpush1.bf16.msra.mxu0 %v3463
    %3502 = vmatprep.subr.bf16.mxu0 0
    %3503 = vmatpush1.bf16.msra.mxu0 %v3464
    %3504 = vmatprep.subr.bf16.mxu0 0
    %3505 = vmatpush1.bf16.msra.mxu0 %v3465
    %3506 = vmatprep.subr.bf16.mxu0 0
    %3507 = vmatpush1.bf16.msra.mxu0 %v3466
    %3508 = vmatprep.subr.bf16.mxu0 0
    %3509 = vmatpush1.bf16.msra.mxu0 %v3467
    %3510 = vmatprep.subr.bf16.mxu0 0
    %3511 = vmatpush1.bf16.msra.mxu0 %v3468
    %3512 = vmatprep.subr.bf16.mxu0 0
    %3513 = vmatpush1.bf16.msra.mxu0 %v3469
    %3514 = vmatprep.subr.bf16.mxu0 0
    %3515 = vmatpush1.bf16.msra.mxu0 %v3470
    %3516 = vmatprep.subr.bf16.mxu0 0
    %3517 = vmatpush1.bf16.msra.mxu0 %v3471
    %3518 = vmatprep.subr.bf16.mxu0 0
    %3519 = vmatpush1.bf16.msra.mxu0 %v3472
    %3520 = vmatprep.subr.bf16.mxu0 0
    %3521 = vmatpush1.bf16.msra.mxu0 %v3473
    %3522 = vmatprep.mubr.bf16.mxu0 %v3361
    %3523 = vmatmul.mubr.bf16.gmra.mrb[0].mxu0 %v3360
    %v3524 = vpop.f32.mrb[0].mxu0
    %v3525 = vadd.f32 0.0, %v3524
    %v3526 = vpop.f32.mrb[0].mxu0
    %v3527 = vpop.f32.mrb[0].mxu0
    %v3528 = vpop.f32.mrb[0].mxu0
    %3529 = vdwg.mxu0
    %v3530 = vld [vmem:[#allocation14] sm:$0x1]
    %v3532 = vlaneseq
    %v3533 = vshrl.u32 %v3532, 7
    %v3534 = vsub.s32 0, %v3533
    %v3535 = vrot.slane %v3530, %v3534
    %v3537 = vmul.f32 %v3525, %v3535
    %v3538 = vld [vmem:[#allocation16] sm:$0x1]
    %v3540 = vlaneseq
    %v3541 = vshrl.u32 %v3540, 7
    %v3542 = vsub.s32 0, %v3541
    %v3543 = vrot.slane %v3538, %v3542
    %v3545 = vadd.f32 %v3537, %v3543
    %v3546 = vmax.f32 %v3545, 0.0
    %v3547 = vpack.c.bf16 %v3546, %v3546
    %v3548 = vld [vmem:[#allocation17] sm:$0xf]
    %v3549 = vld [vmem:[#allocation17 + $0x4] sm:$0xf]
    %v3550 = vld [vmem:[#allocation17 + $0x8] sm:$0xf]
    %v3551 = vld [vmem:[#allocation17 + $0xc] sm:$0xf]
    %v3552 = vld [vmem:[#allocation17 + $0x10] sm:$0xf]
    %v3553 = vld [vmem:[#allocation17 + $0x14] sm:$0xf]
    %v3554 = vld [vmem:[#allocation17 + $0x18] sm:$0xf]
    %v3555 = vld [vmem:[#allocation17 + $0x1c] sm:$0xf]
    %v3556 = vld [vmem:[#allocation17 + $0x20] sm:$0xf]
    %v3557 = vld [vmem:[#allocation17 + $0x24] sm:$0xf]
    %v3558 = vld [vmem:[#allocation17 + $0x28] sm:$0xf]
    %v3559 = vld [vmem:[#allocation17 + $0x2c] sm:$0xf]
    %v3560 = vld [vmem:[#allocation17 + $0x30] sm:$0xf]
    %v3561 = vld [vmem:[#allocation17 + $0x34] sm:$0xf]
    %v3562 = vld [vmem:[#allocation17 + $0x38] sm:$0xf]
    %v3563 = vld [vmem:[#allocation17 + $0x3c] sm:$0xf]
    %v3564 = vld [vmem:[#allocation19] sm:$0x1]
    %v3566 = vlaneseq
    %v3567 = vshrl.u32 %v3566, 7
    %v3568 = vsub.s32 0, %v3567
    %v3569 = vrot.slane %v3564, %v3568
    %v3587 = vunpack.c.l.b16 %v3548
    %v3588 = vunpack.c.l.b16 %v3549
    %v3589 = vunpack.c.l.b16 %v3550
    %v3590 = vunpack.c.l.b16 %v3551
    %v3591 = vunpack.c.l.b16 %v3552
    %v3592 = vunpack.c.l.b16 %v3553
    %v3593 = vunpack.c.l.b16 %v3554
    %v3594 = vunpack.c.l.b16 %v3555
    %v3595 = vunpack.c.l.b16 %v3556
    %v3596 = vunpack.c.l.b16 %v3557
    %v3597 = vunpack.c.l.b16 %v3558
    %v3598 = vunpack.c.l.b16 %v3559
    %v3599 = vunpack.c.l.b16 %v3560
    %v3600 = vunpack.c.l.b16 %v3561
    %v3601 = vunpack.c.l.b16 %v3562
    %v3602 = vunpack.c.l.b16 %v3563
    %v3603 = vpack.c.b16 %v3588, %v3587
    %v3604 = vpack.c.b16 %v3590, %v3589
    %v3605 = vpack.c.b16 %v3592, %v3591
    %v3606 = vpack.c.b16 %v3594, %v3593
    %v3607 = vpack.c.b16 %v3596, %v3595
    %v3608 = vpack.c.b16 %v3598, %v3597
    %v3609 = vpack.c.b16 %v3600, %v3599
    %v3610 = vpack.c.b16 %v3602, %v3601
    %3619 = vmatprep.subr.bf16.mxu0 0
    %3620 = vmatpush1.bf16.msra.mxu0 %v3603
    %3621 = vmatprep.subr.bf16.mxu0 0
    %3622 = vmatpush1.bf16.msra.mxu0 %v3604
    %3623 = vmatprep.subr.bf16.mxu0 0
    %3624 = vmatpush1.bf16.msra.mxu0 %v3605
    %3625 = vmatprep.subr.bf16.mxu0 0
    %3626 = vmatpush1.bf16.msra.mxu0 %v3606
    %3627 = vmatprep.subr.bf16.mxu0 0
    %3628 = vmatpush1.bf16.msra.mxu0 %v3607
    %3629 = vmatprep.subr.bf16.mxu0 0
    %3630 = vmatpush1.bf16.msra.mxu0 %v3608
    %3631 = vmatprep.subr.bf16.mxu0 0
    %3632 = vmatpush1.bf16.msra.mxu0 %v3609
    %3633 = vmatprep.subr.bf16.mxu0 0
    %3634 = vmatpush1.bf16.msra.mxu0 %v3610
    %3635 = vmatprep.subr.bf16.mxu0 0
    %3636 = vmatpush1.bf16.msra.mxu0 0
    %3637 = vmatprep.subr.bf16.mxu0 0
    %3638 = vmatpush1.bf16.msra.mxu0 0
    %3639 = vmatprep.subr.bf16.mxu0 0
    %3640 = vmatpush1.bf16.msra.mxu0 0
    %3641 = vmatprep.subr.bf16.mxu0 0
    %3642 = vmatpush1.bf16.msra.mxu0 0
    %3643 = vmatprep.subr.bf16.mxu0 0
    %3644 = vmatpush1.bf16.msra.mxu0 0
    %3645 = vmatprep.subr.bf16.mxu0 0
    %3646 = vmatpush1.bf16.msra.mxu0 0
    %3647 = vmatprep.subr.bf16.mxu0 0
    %3648 = vmatpush1.bf16.msra.mxu0 0
    %3649 = vmatprep.subr.bf16.mxu0 0
    %3650 = vmatpush1.bf16.msra.mxu0 0
    %3651 = vmatprep.mubr.bf16.mxu0 0
    %3652 = vmatmul.mubr.bf16.gmra.mrb[0].mxu0 %v3547
    %v3653 = vpop.f32.mrb[0].mxu0
    %v3654 = vadd.f32 %v3569, %v3653
    %v3655 = vpop.f32.mrb[0].mxu0
    %v3656 = vpop.f32.mrb[0].mxu0
    %v3657 = vpop.f32.mrb[0].mxu0
    %3658 = vdwg.mxu0
    %3659 = vst [vmem:[#allocation20] sm:$0xff] %v3654
    // Predicated region
    $region94: #{simple_classifier_forward.1} parent=1 // pred_check
      _
    $region95: #{simple_classifier_forward.1} parent=1 // pred_check_branch
      %3661 = sbr.rel (0) target = $region97
    $region96: #{simple_classifier_forward.1} parent=1 // pred_region
      %s3663 = ssub.s32 128, 128
      %3664 = vsyncadd [#allocation4], %s3663
      %s3666 = sshll.u32 [#allocation20], 4
      %s3667 = int_to_ptr.vmem [resolvable:$true] %s3666
      %3669 = dma.vmem_to_hbm [thread:$0]  %s3667, 128, %s12, [#allocation4]
    $region97: #{simple_classifier_forward.1} parent=1 // pred_fallthru
      _
    // Predicated region
    $region98: #{simple_classifier_forward.1} parent=1 // pred_check
      _
    $region99: #{simple_classifier_forward.1} parent=1 // pred_check_branch
      %3671 = sbr.rel (0) target = $region101
    $region100: #{simple_classifier_forward.1} parent=1 // pred_region
      %3672 = dma.done [#allocation4], 128
    $region101: #{simple_classifier_forward.1} parent=1 // pred_fallthru
      _
    %3673 = vsyncpa [#allocation3], 1
    %3674 = vsyncpa [#allocation6], 1
    %3675 = vsyncpa [#allocation9], 1
    %3676 = vsyncpa [#allocation12], 1
    %3677 = vsyncpa [#allocation15], 1
    %3678 = vsyncpa [#allocation18], 1
    %3679 = vsyncpa [#allocation4], 1

</llo_original>
